<compile_context>
chip_gen: v7x
topology: tpu7x:2x2x1
jax: 0.10.0
libtpu: 0.0.40
codegen_flags: <defaults>
</compile_context>

<pallas_src>
from functools import partial

import jax
import jax.numpy as jnp
from jax.experimental import pallas as pl
from jax.experimental.pallas import tpu as pltpu

BN_EPS = 1e-5
GINE_EPS = 0.0  # PyG GINEConv default


# ------------------------------- kernel -------------------------------------
def mutag_kernel(x_ref, ea_ref, src_ref, dst_ref, batch_ref, invc_ref,
                 w_in_ref, w_h_ref, w_out_ref, vecs_ref, out_ref):
    f32 = jnp.float32
    bf16 = jnp.bfloat16
    N = x_ref.shape[0]
    E = ea_ref.shape[0]
    G = out_ref.shape[0]

    vecs = vecs_ref[...]                                   # [16, 128] f32 (all biases/BN params)

    def vrow(i, w=32):
        return vecs[i:i + 1, :w]                           # [1, w]

    # --- input embeddings (bf16 operands, f32 accumulation) -----------------
    x = jnp.dot(x_ref[...], w_in_ref[0:16, :], preferred_element_type=f32) + vrow(0)
    ea = jnp.dot(ea_ref[...], w_in_ref[16:24, :], preferred_element_type=f32) + vrow(1)

    # --- one-hot gather / scatter / pool matrices (0/1 -> exact in bf16) ----
    src = src_ref[...]                                     # [E, 1] int32
    dst = dst_ref[...]                                     # [1, E] int32
    bidx = batch_ref[...]                                  # [1, N] int32
    S = (src == jax.lax.broadcasted_iota(jnp.int32, (E, N), 1)).astype(bf16)   # S @ x == x[src]
    Dn = (jax.lax.broadcasted_iota(jnp.int32, (N, E), 0) == dst).astype(bf16)  # Dn @ m == scatter_add
    P = (jax.lax.broadcasted_iota(jnp.int32, (G, N), 0) == bidx).astype(bf16)  # pooling segments

    def gine_block(x, layer):
        w1 = w_h_ref[32 * layer:32 * layer + 32, :]        # [32, 128] bf16 (75 cols used)
        w2 = w_out_ref[128 * layer:128 * layer + 128, :]   # [128, 32] bf16 (75 rows used)
        b1 = vrow(2 + 4 * layer, 128)                      # [1, 128]
        b2 = vrow(3 + 4 * layer)
        gamma = vrow(4 + 4 * layer)
        beta = vrow(5 + 4 * layer)

        x_src = jnp.dot(S, x.astype(bf16), preferred_element_type=f32)    # gather x[src]
        msg = jnp.maximum(x_src + ea, 0.0)                                # relu(x_j + e_ji)
        agg = jnp.dot(Dn, msg.astype(bf16), preferred_element_type=f32)   # scatter-add to dst
        # eps == 0 -> skip the (1 + eps) * x multiply entirely (trace-time branch).
        h = x + agg if GINE_EPS == 0.0 else (1.0 + GINE_EPS) * x + agg
        h = jnp.maximum(jnp.dot(h.astype(bf16), w1, preferred_element_type=f32) + b1, 0.0)
        h = jnp.dot(h.astype(bf16), w2, preferred_element_type=f32) + b2
        # BatchNorm1d: training-mode batch statistics, biased variance.
        mu = jnp.mean(h, axis=0, keepdims=True)
        d = h - mu
        var = jnp.mean(d * d, axis=0, keepdims=True)
        h = d * jax.lax.rsqrt(var + BN_EPS) * gamma + beta
        return jnp.maximum(h, 0.0)                                        # ReLU

    x = gine_block(x, 0)
    x = gine_block(x, 1)

    # --- global mean pool (per-graph 1/count precomputed outside the kernel) -
    graph_x = jnp.dot(P, x.astype(bf16), preferred_element_type=f32) * invc_ref[...]

    # --- prediction head ------------------------------------------------------
    wl1 = w_out_ref[256:288, :]                            # [32, 32] bf16 (16 cols used)
    wl2 = w_out_ref[288:320, :]                            # [32, 32] bf16 (16x2 used)
    h = jnp.maximum(jnp.dot(graph_x.astype(bf16), wl1, preferred_element_type=f32) + vrow(10), 0.0)
    pred = jnp.dot(h.astype(bf16), wl2, preferred_element_type=f32) + vrow(11)
    out_ref[...] = pred[:, :out_ref.shape[1]]


# ------------------------- host-side parameter packing ----------------------
def pack_params(params):
    (wn, bnb, we, beb,
     w1_0, b1_0, w2_0, b2_0, g_0, bt_0,
     w1_1, b1_1, w2_1, b2_1, g_1, bt_1,
     wl1, bl1, wl2, bl2) = params
    f32, bf16 = jnp.float32, jnp.bfloat16

    # w_in: [24, 32] — node_emb W (rows 0:16, 14 used) + edge_emb W (rows 16:24, 3 used)
    w_in = jnp.zeros((24, 32), f32)
    w_in = w_in.at[0:14, :].set(wn).at[16:19, :].set(we)

    # w_h: [64, 128] — the two 32x75 GINE MLP first layers, hidden padded to 128 lanes
    w_h = jnp.zeros((64, 128), f32)
    w_h = w_h.at[0:32, 0:75].set(w1_0).at[32:64, 0:75].set(w1_1)

    # w_out: [320, 32] — the two 75x32 second layers (rows padded to 128),
    #        lin1 (32x16 -> 32x32) and lin2 (16x2 -> 32x32), all zero-padded.
    w_out = jnp.zeros((320, 32), f32)
    w_out = (w_out.at[0:75, :].set(w2_0)
                  .at[128:203, :].set(w2_1)
                  .at[256:288, 0:16].set(wl1)
                  .at[288:304, 0:2].set(wl2))

    # vecs: [16, 128] f32 — every bias / BN gamma / BN beta, one per row.
    vecs = jnp.zeros((16, 128), f32)
    for row, v in ((0, bnb), (1, beb),
                   (2, b1_0), (3, b2_0), (4, g_0), (5, bt_0),
                   (6, b1_1), (7, b2_1), (8, g_1), (9, bt_1),
                   (10, bl1), (11, bl2)):
        vecs = vecs.at[row, :v.shape[0]].set(v)

    return w_in.astype(bf16), w_h.astype(bf16), w_out.astype(bf16), vecs


# ------------------------------- wrapper -------------------------------------
@partial(jax.jit, static_argnums=(4,))
def mutag_forward(x, edge_index, edge_attr, batch, num_graphs, params):
    f32, bf16 = jnp.float32, jnp.bfloat16
    N = x.shape[0]
    E = edge_attr.shape[0]
    G = num_graphs

    # Sublane/lane-friendly zero padding of the tiny feature dims (14 -> 16, 3 -> 8);
    # bf16 cast halves the DMA bytes (one-hot inputs are exact in bf16).
    x_pad = jnp.zeros((N, 16), f32).at[:, :14].set(x.astype(f32)).astype(bf16)
    ea_pad = jnp.zeros((E, 8), f32).at[:, :3].set(edge_attr.astype(f32)).astype(bf16)
    src = edge_index[0].reshape(E, 1).astype(jnp.int32)
    dst = edge_index[1].reshape(1, E).astype(jnp.int32)
    bidx = batch.reshape(1, N).astype(jnp.int32)

    # Precompute per-graph inverse node counts (guard against empty graphs).
    counts = jax.ops.segment_sum(jnp.ones((N,), f32), batch, num_segments=G)
    inv_counts = (1.0 / jnp.maximum(counts, 1.0)).reshape(G, 1)

    w_in, w_h, w_out, vecs = pack_params(params)

    inputs = [x_pad, ea_pad, src, dst, bidx, inv_counts, w_in, w_h, w_out, vecs]
    vmem = pl.BlockSpec(memory_space=pltpu.MemorySpace.VMEM)
    return pl.pallas_call(
        mutag_kernel,
        out_shape=jax.ShapeDtypeStruct((G, 2), jnp.float32),
        in_specs=[vmem] * len(inputs),
        out_specs=vmem,
        compiler_params=pltpu.CompilerParams(vmem_limit_bytes=64 * 1024 * 1024),
    )(*inputs)


# ----------------------------- parameter init --------------------------------
def linear_params(key, fan_in, fan_out):
    k1, k2 = jax.random.split(key)
    bound = 1.0 / (fan_in ** 0.5)
    w = jax.random.uniform(k1, (fan_in, fan_out), minval=-bound, maxval=bound, dtype=jnp.float32)
    b = jax.random.uniform(k2, (fan_out,), minval=-bound, maxval=bound, dtype=jnp.float32)
    return w, b


def make_params(key):
    keys = jax.random.split(key, 8)
    wn, bnb = linear_params(keys[0], 14, 32)      # node_emb
    we, beb = linear_params(keys[1], 3, 32)       # edge_emb
    conv = []
    for i in range(2):
        w1, b1 = linear_params(keys[2 + 2 * i], 32, 75)
        w2, b2 = linear_params(keys[3 + 2 * i], 75, 32)
        gamma = jnp.ones((32,), jnp.float32)      # BatchNorm weight
        beta = jnp.zeros((32,), jnp.float32)      # BatchNorm bias
        conv += [w1, b1, w2, b2, gamma, beta]
    wl1, bl1 = linear_params(keys[6], 32, 16)
    wl2, bl2 = linear_params(keys[7], 16, 2)
    return [wn, bnb, we, beb] + conv + [wl1, bl1, wl2, bl2]


# ----------------------------- pure-JAX references ---------------------------
def _ref_forward(x, edge_index, edge_attr, batch, num_graphs, params, matmul_bf16):
    (wn, bnb, we, beb,
     w1_0, b1_0, w2_0, b2_0, g_0, bt_0,
     w1_1, b1_1, w2_1, b2_1, g_1, bt_1,
     wl1, bl1, wl2, bl2) = params
    f32, bf16 = jnp.float32, jnp.bfloat16
    N = x.shape[0]

    if matmul_bf16:
        def mm(a, b):
            return jnp.dot(a.astype(bf16), b.astype(bf16), preferred_element_type=f32)

        def rnd(a):
            return a.astype(bf16).astype(f32)
    else:
        def mm(a, b):
            return jnp.dot(a, b, preferred_element_type=f32)

        def rnd(a):
            return a

    x = mm(x.astype(f32), wn) + bnb
    ea = mm(edge_attr.astype(f32), we) + beb
    src, dst = edge_index[0], edge_index[1]
    for (w1, b1, w2, b2, g, bt) in ((w1_0, b1_0, w2_0, b2_0, g_0, bt_0),
                                    (w1_1, b1_1, w2_1, b2_1, g_1, bt_1)):
        msg = jax.nn.relu(rnd(x)[src] + ea)
        agg = jax.ops.segment_sum(rnd(msg), dst, num_segments=N)
        h = (1.0 + GINE_EPS) * x + agg
        h = jax.nn.relu(mm(h, w1) + b1)
        h = mm(h, w2) + b2
        mu = h.mean(0, keepdims=True)
        var = ((h - mu) ** 2).mean(0, keepdims=True)
        h = (h - mu) / jnp.sqrt(var + BN_EPS) * g + bt
        x = jax.nn.relu(h)
    counts = jax.ops.segment_sum(jnp.ones((N,), f32), batch, num_segments=num_graphs)
    gx = jax.ops.segment_sum(rnd(x), batch, num_segments=num_graphs) / jnp.maximum(counts, 1.0)[:, None]
    h = jax.nn.relu(mm(gx, wl1) + bl1)
    return mm(h, wl2) + bl2


if __name__ == "__main__":
    key = jax.random.PRNGKey(0)
    k_param, k_x, k_ea, k_src, k_dst = jax.random.split(key, 5)

    # Small but MXU-friendly demo batch: 8 graphs x 16 nodes, 256 edges
    # (review: raise effective matmul M to >= 128).
    N, E, G = 128, 256, 8
    x = jax.nn.one_hot(jax.random.randint(k_x, (N,), 0, 14), 14, dtype=jnp.float32)
    edge_attr = jax.nn.one_hot(jax.random.randint(k_ea, (E,), 0, 3), 3, dtype=jnp.float32)
    edge_index = jnp.stack([
        jax.random.randint(k_src, (E,), 0, N),
        jax.random.randint(k_dst, (E,), 0, N),
    ]).astype(jnp.int32)
    batch = jnp.repeat(jnp.arange(G, dtype=jnp.int32), N // G)

    params = make_params(k_param)

    out = mutag_forward(x, edge_index, edge_attr, batch, G, params)
    out = jax.block_until_ready(out)
    assert out.shape == (G, 2)

    # 1) Exact-numerics reference (same bf16-operand / f32-accumulate matmuls as
    #    the kernel): tight check of gather / scatter / BN / pool / head logic.
    ref_bf16 = _ref_forward(x, edge_index, edge_attr, batch, G, params, matmul_bf16=True)
    assert jnp.allclose(out, ref_bf16, atol=2e-3, rtol=2e-3), (out, ref_bf16)

    # 2) Full-f32 PyTorch-faithful reference: loose sanity bound on the bf16-vs-f32
    #    drift (logits are O(0.1-0.5); drift is typically ~1e-2 after two BatchNorms).
    ref_f32 = _ref_forward(x, edge_index, edge_attr, batch, G, params, matmul_bf16=False)
    assert jnp.allclose(out, ref_f32, atol=1e-1, rtol=1e-1), (out, ref_f32)

    print("KERNEL_OK")
</pallas_src>

<mosaic_0001>
module attributes {stable_mosaic.version = 11 : i64} {
  func.func private @main(%arg0: i32) attributes {dimension_semantics = [#tpu.dimension_semantics<core_parallel>], iteration_bounds = array<i64: 2>, tpu.core_type = #tpu.core_type<sc_scalar_subcore>, window_params = []} {
    return
  }
}

module attributes {stable_mosaic.version = 11 : i64} {
  func.func private @main(%arg0: i32) attributes {dimension_semantics = [#tpu.dimension_semantics<core_parallel>], iteration_bounds = array<i64: 2>, tpu.core_type = #tpu.core_type<sc_scalar_subcore>, window_params = []} {
    return
  }
}

module attributes {stable_mosaic.version = 11 : i64} {
  func.func @mutag_kernel(%arg0: memref<128x16xbf16, #tpu.memory_space<vmem>>, %arg1: memref<256x8xbf16, #tpu.memory_space<vmem>>, %arg2: memref<256x1xi32, #tpu.memory_space<vmem>>, %arg3: memref<1x256xi32, #tpu.memory_space<vmem>>, %arg4: memref<1x128xi32, #tpu.memory_space<vmem>>, %arg5: memref<8x1xf32, #tpu.memory_space<vmem>>, %arg6: memref<24x32xbf16, #tpu.memory_space<vmem>>, %arg7: memref<64x128xbf16, #tpu.memory_space<vmem>>, %arg8: memref<320x32xbf16, #tpu.memory_space<vmem>>, %arg9: memref<16x128xf32, #tpu.memory_space<vmem>>, %arg10: memref<8x2xf32, #tpu.memory_space<vmem>>) attributes {dimension_semantics = [], scalar_prefetch = 0 : i64, scratch_operands = 0 : i64, tpu.core_type = #tpu.core_type<tc>} {
    %c0 = arith.constant 0 : index
    %c0_0 = arith.constant 0 : index
    %0 = vector.load %arg9[%c0, %c0_0] : memref<16x128xf32, #tpu.memory_space<vmem>>, vector<16x128xf32>
    %c0_1 = arith.constant 0 : index
    %c0_2 = arith.constant 0 : index
    %1 = vector.load %arg0[%c0_1, %c0_2] : memref<128x16xbf16, #tpu.memory_space<vmem>>, vector<128x16xbf16>
    %c0_3 = arith.constant 0 : index
    %c0_4 = arith.constant 0 : index
    %2 = vector.load %arg6[%c0_3, %c0_4] : memref<24x32xbf16, #tpu.memory_space<vmem>>, vector<16x32xbf16>
    %cst = arith.constant dense<0.000000e+00> : vector<128x32xf32>
    %3 = tpu.matmul %1, %2, %cst {dimension_numbers = #tpu.dot_dimension_numbers<[1], [0], [0], [1], [0, 0, 1, 1], [], []>} : vector<128x16xbf16>, vector<16x32xbf16>, vector<128x32xf32> -> vector<128x32xf32>
    %4 = vector.extract_strided_slice %0 {offsets = [0, 0], sizes = [1, 32], strides = [1, 1]} : vector<16x128xf32> to vector<1x32xf32>
    %5 = vector.broadcast %4 : vector<1x32xf32> to vector<128x32xf32>
    %6 = arith.addf %3, %5 : vector<128x32xf32>
    %c0_5 = arith.constant 0 : index
    %c0_6 = arith.constant 0 : index
    %7 = vector.load %arg1[%c0_5, %c0_6] : memref<256x8xbf16, #tpu.memory_space<vmem>>, vector<256x8xbf16>
    %c16 = arith.constant 16 : index
    %c0_7 = arith.constant 0 : index
    %8 = vector.load %arg6[%c16, %c0_7] : memref<24x32xbf16, #tpu.memory_space<vmem>>, vector<8x32xbf16>
    %cst_8 = arith.constant dense<0.000000e+00> : vector<256x32xf32>
    %9 = tpu.matmul %7, %8, %cst_8 {dimension_numbers = #tpu.dot_dimension_numbers<[1], [0], [0], [1], [0, 0, 1, 1], [], []>} : vector<256x8xbf16>, vector<8x32xbf16>, vector<256x32xf32> -> vector<256x32xf32>
    %10 = vector.extract_strided_slice %0 {offsets = [1, 0], sizes = [1, 32], strides = [1, 1]} : vector<16x128xf32> to vector<1x32xf32>
    %11 = vector.broadcast %10 : vector<1x32xf32> to vector<256x32xf32>
    %12 = arith.addf %9, %11 : vector<256x32xf32>
    %c0_9 = arith.constant 0 : index
    %c0_10 = arith.constant 0 : index
    %13 = vector.load %arg2[%c0_9, %c0_10] : memref<256x1xi32, #tpu.memory_space<vmem>>, vector<256x1xi32>
    %c0_11 = arith.constant 0 : index
    %c0_12 = arith.constant 0 : index
    %14 = vector.load %arg3[%c0_11, %c0_12] : memref<1x256xi32, #tpu.memory_space<vmem>>, vector<1x256xi32>
    %c0_13 = arith.constant 0 : index
    %c0_14 = arith.constant 0 : index
    %15 = vector.load %arg4[%c0_13, %c0_14] : memref<1x128xi32, #tpu.memory_space<vmem>>, vector<1x128xi32>
    %16 = tpu.iota {dimensions = array<i32: 1>} : vector<256x128xi32>
    %17 = vector.broadcast %13 : vector<256x1xi32> to vector<256x128xi32>
    %18 = arith.cmpi eq, %17, %16 : vector<256x128xi32>
    %19 = arith.extui %18 : vector<256x128xi1> to vector<256x128xi32>
    %20 = arith.sitofp %19 : vector<256x128xi32> to vector<256x128xf32>
    %21 = arith.truncf %20 : vector<256x128xf32> to vector<256x128xbf16>
    %22 = tpu.iota {dimensions = array<i32: 0>} : vector<128x256xi32>
    %23 = vector.broadcast %14 : vector<1x256xi32> to vector<128x256xi32>
    %24 = arith.cmpi eq, %22, %23 : vector<128x256xi32>
    %25 = arith.extui %24 : vector<128x256xi1> to vector<128x256xi32>
    %26 = arith.sitofp %25 : vector<128x256xi32> to vector<128x256xf32>
    %27 = arith.truncf %26 : vector<128x256xf32> to vector<128x256xbf16>
    %28 = tpu.iota {dimensions = array<i32: 0>} : vector<8x128xi32>
    %29 = vector.broadcast %15 : vector<1x128xi32> to vector<8x128xi32>
    %30 = arith.cmpi eq, %28, %29 : vector<8x128xi32>
    %31 = arith.extui %30 : vector<8x128xi1> to vector<8x128xi32>
    %32 = arith.sitofp %31 : vector<8x128xi32> to vector<8x128xf32>
    %33 = arith.truncf %32 : vector<8x128xf32> to vector<8x128xbf16>
    %c0_15 = arith.constant 0 : index
    %c0_16 = arith.constant 0 : index
    %34 = vector.load %arg7[%c0_15, %c0_16] : memref<64x128xbf16, #tpu.memory_space<vmem>>, vector<32x128xbf16>
    %c0_17 = arith.constant 0 : index
    %c0_18 = arith.constant 0 : index
    %35 = vector.load %arg8[%c0_17, %c0_18] : memref<320x32xbf16, #tpu.memory_space<vmem>>, vector<128x32xbf16>
    %36 = vector.extract_strided_slice %0 {offsets = [2, 0], sizes = [1, 128], strides = [1, 1]} : vector<16x128xf32> to vector<1x128xf32>
    %37 = vector.extract_strided_slice %0 {offsets = [3, 0], sizes = [1, 32], strides = [1, 1]} : vector<16x128xf32> to vector<1x32xf32>
    %38 = vector.extract_strided_slice %0 {offsets = [4, 0], sizes = [1, 32], strides = [1, 1]} : vector<16x128xf32> to vector<1x32xf32>
    %39 = vector.extract_strided_slice %0 {offsets = [5, 0], sizes = [1, 32], strides = [1, 1]} : vector<16x128xf32> to vector<1x32xf32>
    %40 = arith.truncf %6 : vector<128x32xf32> to vector<128x32xbf16>
    %cst_19 = arith.constant dense<0.000000e+00> : vector<256x32xf32>
    %41 = tpu.matmul %21, %40, %cst_19 {dimension_numbers = #tpu.dot_dimension_numbers<[1], [0], [0], [1], [0, 0, 1, 1], [], []>} : vector<256x128xbf16>, vector<128x32xbf16>, vector<256x32xf32> -> vector<256x32xf32>
    %42 = arith.addf %41, %12 : vector<256x32xf32>
    %cst_20 = arith.constant 0.000000e+00 : f32
    %43 = vector.broadcast %cst_20 : f32 to vector<256x32xf32>
    %44 = arith.maximumf %42, %43 : vector<256x32xf32>
    %45 = arith.truncf %44 : vector<256x32xf32> to vector<256x32xbf16>
    %cst_21 = arith.constant dense<0.000000e+00> : vector<128x32xf32>
    %46 = tpu.matmul %27, %45, %cst_21 {dimension_numbers = #tpu.dot_dimension_numbers<[1], [0], [0], [1], [0, 0, 1, 1], [], []>} : vector<128x256xbf16>, vector<256x32xbf16>, vector<128x32xf32> -> vector<128x32xf32>
    %47 = arith.addf %6, %46 : vector<128x32xf32>
    %48 = arith.truncf %47 : vector<128x32xf32> to vector<128x32xbf16>
    %cst_22 = arith.constant dense<0.000000e+00> : vector<128x128xf32>
    %49 = tpu.matmul %48, %34, %cst_22 {dimension_numbers = #tpu.dot_dimension_numbers<[1], [0], [0], [1], [0, 0, 1, 1], [], []>} : vector<128x32xbf16>, vector<32x128xbf16>, vector<128x128xf32> -> vector<128x128xf32>
    %50 = vector.broadcast %36 : vector<1x128xf32> to vector<128x128xf32>
    %51 = arith.addf %49, %50 : vector<128x128xf32>
    %cst_23 = arith.constant 0.000000e+00 : f32
    %52 = vector.broadcast %cst_23 : f32 to vector<128x128xf32>
    %53 = arith.maximumf %51, %52 : vector<128x128xf32>
    %54 = arith.truncf %53 : vector<128x128xf32> to vector<128x128xbf16>
    %cst_24 = arith.constant dense<0.000000e+00> : vector<128x32xf32>
    %55 = tpu.matmul %54, %35, %cst_24 {dimension_numbers = #tpu.dot_dimension_numbers<[1], [0], [0], [1], [0, 0, 1, 1], [], []>} : vector<128x128xbf16>, vector<128x32xbf16>, vector<128x32xf32> -> vector<128x32xf32>
    %56 = vector.broadcast %37 : vector<1x32xf32> to vector<128x32xf32>
    %57 = arith.addf %55, %56 : vector<128x32xf32>
    %cst_25 = arith.constant dense<0.000000e+00> : vector<32xf32>
    %58 = vector.multi_reduction <add>, %57, %cst_25 [0] : vector<128x32xf32> to vector<32xf32>
    %59 = vector.shape_cast %58 : vector<32xf32> to vector<1x32xf32>
    %cst_26 = arith.constant 1.280000e+02 : f32
    %60 = vector.broadcast %cst_26 : f32 to vector<1x32xf32>
    %61 = arith.divf %59, %60 : vector<1x32xf32>
    %62 = vector.broadcast %61 : vector<1x32xf32> to vector<128x32xf32>
    %63 = arith.subf %57, %62 : vector<128x32xf32>
    %64 = arith.mulf %63, %63 : vector<128x32xf32>
    %cst_27 = arith.constant dense<0.000000e+00> : vector<32xf32>
    %65 = vector.multi_reduction <add>, %64, %cst_27 [0] : vector<128x32xf32> to vector<32xf32>
    %66 = vector.shape_cast %65 : vector<32xf32> to vector<1x32xf32>
    %cst_28 = arith.constant 1.280000e+02 : f32
    %67 = vector.broadcast %cst_28 : f32 to vector<1x32xf32>
    %68 = arith.divf %66, %67 : vector<1x32xf32>
    %cst_29 = arith.constant 9.99999974E-6 : f32
    %69 = vector.broadcast %cst_29 : f32 to vector<1x32xf32>
    %70 = arith.addf %68, %69 : vector<1x32xf32>
    %71 = math.rsqrt %70 : vector<1x32xf32>
    %72 = vector.broadcast %71 : vector<1x32xf32> to vector<128x32xf32>
    %73 = arith.mulf %63, %72 : vector<128x32xf32>
    %74 = vector.broadcast %38 : vector<1x32xf32> to vector<128x32xf32>
    %75 = arith.mulf %73, %74 : vector<128x32xf32>
    %76 = vector.broadcast %39 : vector<1x32xf32> to vector<128x32xf32>
    %77 = arith.addf %75, %76 : vector<128x32xf32>
    %cst_30 = arith.constant 0.000000e+00 : f32
    %78 = vector.broadcast %cst_30 : f32 to vector<128x32xf32>
    %79 = arith.maximumf %77, %78 : vector<128x32xf32>
    %c32 = arith.constant 32 : index
    %c0_31 = arith.constant 0 : index
    %80 = vector.load %arg7[%c32, %c0_31] : memref<64x128xbf16, #tpu.memory_space<vmem>>, vector<32x128xbf16>
    %c128 = arith.constant 128 : index
    %c0_32 = arith.constant 0 : index
    %81 = vector.load %arg8[%c128, %c0_32] : memref<320x32xbf16, #tpu.memory_space<vmem>>, vector<128x32xbf16>
    %82 = vector.extract_strided_slice %0 {offsets = [6, 0], sizes = [1, 128], strides = [1, 1]} : vector<16x128xf32> to vector<1x128xf32>
    %83 = vector.extract_strided_slice %0 {offsets = [7, 0], sizes = [1, 32], strides = [1, 1]} : vector<16x128xf32> to vector<1x32xf32>
    %84 = vector.extract_strided_slice %0 {offsets = [8, 0], sizes = [1, 32], strides = [1, 1]} : vector<16x128xf32> to vector<1x32xf32>
    %85 = vector.extract_strided_slice %0 {offsets = [9, 0], sizes = [1, 32], strides = [1, 1]} : vector<16x128xf32> to vector<1x32xf32>
    %86 = arith.truncf %79 : vector<128x32xf32> to vector<128x32xbf16>
    %cst_33 = arith.constant dense<0.000000e+00> : vector<256x32xf32>
    %87 = tpu.matmul %21, %86, %cst_33 {dimension_numbers = #tpu.dot_dimension_numbers<[1], [0], [0], [1], [0, 0, 1, 1], [], []>} : vector<256x128xbf16>, vector<128x32xbf16>, vector<256x32xf32> -> vector<256x32xf32>
    %88 = arith.addf %87, %12 : vector<256x32xf32>
    %cst_34 = arith.constant 0.000000e+00 : f32
    %89 = vector.broadcast %cst_34 : f32 to vector<256x32xf32>
    %90 = arith.maximumf %88, %89 : vector<256x32xf32>
    %91 = arith.truncf %90 : vector<256x32xf32> to vector<256x32xbf16>
    %cst_35 = arith.constant dense<0.000000e+00> : vector<128x32xf32>
    %92 = tpu.matmul %27, %91, %cst_35 {dimension_numbers = #tpu.dot_dimension_numbers<[1], [0], [0], [1], [0, 0, 1, 1], [], []>} : vector<128x256xbf16>, vector<256x32xbf16>, vector<128x32xf32> -> vector<128x32xf32>
    %93 = arith.addf %79, %92 : vector<128x32xf32>
    %94 = arith.truncf %93 : vector<128x32xf32> to vector<128x32xbf16>
    %cst_36 = arith.constant dense<0.000000e+00> : vector<128x128xf32>
    %95 = tpu.matmul %94, %80, %cst_36 {dimension_numbers = #tpu.dot_dimension_numbers<[1], [0], [0], [1], [0, 0, 1, 1], [], []>} : vector<128x32xbf16>, vector<32x128xbf16>, vector<128x128xf32> -> vector<128x128xf32>
    %96 = vector.broadcast %82 : vector<1x128xf32> to vector<128x128xf32>
    %97 = arith.addf %95, %96 : vector<128x128xf32>
    %cst_37 = arith.constant 0.000000e+00 : f32
    %98 = vector.broadcast %cst_37 : f32 to vector<128x128xf32>
    %99 = arith.maximumf %97, %98 : vector<128x128xf32>
    %100 = arith.truncf %99 : vector<128x128xf32> to vector<128x128xbf16>
    %cst_38 = arith.constant dense<0.000000e+00> : vector<128x32xf32>
    %101 = tpu.matmul %100, %81, %cst_38 {dimension_numbers = #tpu.dot_dimension_numbers<[1], [0], [0], [1], [0, 0, 1, 1], [], []>} : vector<128x128xbf16>, vector<128x32xbf16>, vector<128x32xf32> -> vector<128x32xf32>
    %102 = vector.broadcast %83 : vector<1x32xf32> to vector<128x32xf32>
    %103 = arith.addf %101, %102 : vector<128x32xf32>
    %cst_39 = arith.constant dense<0.000000e+00> : vector<32xf32>
    %104 = vector.multi_reduction <add>, %103, %cst_39 [0] : vector<128x32xf32> to vector<32xf32>
    %105 = vector.shape_cast %104 : vector<32xf32> to vector<1x32xf32>
    %cst_40 = arith.constant 1.280000e+02 : f32
    %106 = vector.broadcast %cst_40 : f32 to vector<1x32xf32>
    %107 = arith.divf %105, %106 : vector<1x32xf32>
    %108 = vector.broadcast %107 : vector<1x32xf32> to vector<128x32xf32>
    %109 = arith.subf %103, %108 : vector<128x32xf32>
    %110 = arith.mulf %109, %109 : vector<128x32xf32>
    %cst_41 = arith.constant dense<0.000000e+00> : vector<32xf32>
    %111 = vector.multi_reduction <add>, %110, %cst_41 [0] : vector<128x32xf32> to vector<32xf32>
    %112 = vector.shape_cast %111 : vector<32xf32> to vector<1x32xf32>
    %cst_42 = arith.constant 1.280000e+02 : f32
    %113 = vector.broadcast %cst_42 : f32 to vector<1x32xf32>
    %114 = arith.divf %112, %113 : vector<1x32xf32>
    %cst_43 = arith.constant 9.99999974E-6 : f32
    %115 = vector.broadcast %cst_43 : f32 to vector<1x32xf32>
    %116 = arith.addf %114, %115 : vector<1x32xf32>
    %117 = math.rsqrt %116 : vector<1x32xf32>
    %118 = vector.broadcast %117 : vector<1x32xf32> to vector<128x32xf32>
    %119 = arith.mulf %109, %118 : vector<128x32xf32>
    %120 = vector.broadcast %84 : vector<1x32xf32> to vector<128x32xf32>
    %121 = arith.mulf %119, %120 : vector<128x32xf32>
    %122 = vector.broadcast %85 : vector<1x32xf32> to vector<128x32xf32>
    %123 = arith.addf %121, %122 : vector<128x32xf32>
    %cst_44 = arith.constant 0.000000e+00 : f32
    %124 = vector.broadcast %cst_44 : f32 to vector<128x32xf32>
    %125 = arith.maximumf %123, %124 : vector<128x32xf32>
    %126 = arith.truncf %125 : vector<128x32xf32> to vector<128x32xbf16>
    %cst_45 = arith.constant dense<0.000000e+00> : vector<8x32xf32>
    %127 = tpu.matmul %33, %126, %cst_45 {dimension_numbers = #tpu.dot_dimension_numbers<[1], [0], [0], [1], [0, 0, 1, 1], [], []>} : vector<8x128xbf16>, vector<128x32xbf16>, vector<8x32xf32> -> vector<8x32xf32>
    %c0_46 = arith.constant 0 : index
    %c0_47 = arith.constant 0 : index
    %128 = vector.load %arg5[%c0_46, %c0_47] : memref<8x1xf32, #tpu.memory_space<vmem>>, vector<8x1xf32>
    %129 = vector.broadcast %128 : vector<8x1xf32> to vector<8x32xf32>
    %130 = arith.mulf %127, %129 : vector<8x32xf32>
    %c256 = arith.constant 256 : index
    %c0_48 = arith.constant 0 : index
    %131 = vector.load %arg8[%c256, %c0_48] : memref<320x32xbf16, #tpu.memory_space<vmem>>, vector<32x32xbf16>
    %c288 = arith.constant 288 : index
    %c0_49 = arith.constant 0 : index
    %132 = vector.load %arg8[%c288, %c0_49] : memref<320x32xbf16, #tpu.memory_space<vmem>>, vector<32x32xbf16>
    %133 = arith.truncf %130 : vector<8x32xf32> to vector<8x32xbf16>
    %cst_50 = arith.constant dense<0.000000e+00> : vector<8x32xf32>
    %134 = tpu.matmul %133, %131, %cst_50 {dimension_numbers = #tpu.dot_dimension_numbers<[1], [0], [0], [1], [0, 0, 1, 1], [], []>} : vector<8x32xbf16>, vector<32x32xbf16>, vector<8x32xf32> -> vector<8x32xf32>
    %135 = vector.extract_strided_slice %0 {offsets = [10, 0], sizes = [1, 32], strides = [1, 1]} : vector<16x128xf32> to vector<1x32xf32>
    %136 = vector.broadcast %135 : vector<1x32xf32> to vector<8x32xf32>
    %137 = arith.addf %134, %136 : vector<8x32xf32>
    %cst_51 = arith.constant 0.000000e+00 : f32
    %138 = vector.broadcast %cst_51 : f32 to vector<8x32xf32>
    %139 = arith.maximumf %137, %138 : vector<8x32xf32>
    %140 = arith.truncf %139 : vector<8x32xf32> to vector<8x32xbf16>
    %cst_52 = arith.constant dense<0.000000e+00> : vector<8x32xf32>
    %141 = tpu.matmul %140, %132, %cst_52 {dimension_numbers = #tpu.dot_dimension_numbers<[1], [0], [0], [1], [0, 0, 1, 1], [], []>} : vector<8x32xbf16>, vector<32x32xbf16>, vector<8x32xf32> -> vector<8x32xf32>
    %142 = vector.extract_strided_slice %0 {offsets = [11, 0], sizes = [1, 32], strides = [1, 1]} : vector<16x128xf32> to vector<1x32xf32>
    %143 = vector.broadcast %142 : vector<1x32xf32> to vector<8x32xf32>
    %144 = arith.addf %141, %143 : vector<8x32xf32>
    %145 = vector.extract_strided_slice %144 {offsets = [0, 0], sizes = [8, 2], strides = [1, 1]} : vector<8x32xf32> to vector<8x2xf32>
    %c0_53 = arith.constant 0 : index
    %c0_54 = arith.constant 0 : index
    %146 = vector.load %arg10[%c0_53, %c0_54] : memref<8x2xf32, #tpu.memory_space<vmem>>, vector<8x2xf32>
    tpu.vector_store %arg10[%c0_53, %c0_54], %145 {strides = array<i32>} : memref<8x2xf32, #tpu.memory_space<vmem>>, vector<8x2xf32>,
    return
  }
}

</mosaic_0001>

<llo_original>
// kernel: mutag_forward.1
$region0: #{mutag_forward.1}
  #allocation0 [shape = 'u32[]', space=smem, size = 0x4, offset = 0x4, fixed_abs, tag = 'smem constant byte address 0x4 - core index']
  #allocation1 [shape = 'u32[144,128]{1,0:T(1,128)}', space=vmem, size = 0x12000, scoped, tag = 'internal scratch']
  %s0 = inlined_call_operand.hbm [shape: bf16[128,16], index: 0, kind: input, shape index: {}]
  %s1 = inlined_call_operand.hbm [shape: bf16[256,8], index: 1, kind: input, shape index: {}]
  %s2 = inlined_call_operand.hbm [shape: s32[256,1], index: 2, kind: input, shape index: {}]
  %s3 = inlined_call_operand.hbm [shape: s32[1,256], index: 3, kind: input, shape index: {}]
  %s4 = inlined_call_operand.hbm [shape: s32[1,128], index: 4, kind: input, shape index: {}]
  %s5 = inlined_call_operand.hbm [shape: f32[8,1], index: 5, kind: input, shape index: {}]
  %s6 = inlined_call_operand.hbm [shape: bf16[24,32], index: 6, kind: input, shape index: {}]
  %s7 = inlined_call_operand.hbm [shape: bf16[64,128], index: 7, kind: input, shape index: {}]
  %s8 = inlined_call_operand.hbm [shape: bf16[320,32], index: 8, kind: input, shape index: {}]
  %s9 = inlined_call_operand.hbm [shape: f32[16,128], index: 9, kind: input, shape index: {}]
  %s10 = inlined_call_operand.hbm [shape: f32[8,2], index: 10, kind: output, shape index: {}]
  %s11 = sld [smem:[#allocation0]]
  $region90: #{mutag_forward.1} parent=0
    _
  %s13 = ssub.s32 1, %s11
  %s14 = scalar_select 0, %s13, %s11
  $region1: #{mutag_forward.1} parent=0
    #allocation2 [shape = 'u8[32768]{0}', space=vmem, size = 0x8000, scoped, tag = 'input window, operand 0, single buffered']
    #allocation3 [shape = 's32[1]{0}', space=sflag, size = 0x4, scoped, tag = 'scoped memory for mutag_forward.1']
    #allocation4 [shape = 's32[1]{0}', space=sflag, size = 0x4, scoped, tag = 'scoped memory for mutag_forward.1']
    #allocation5 [shape = 'u8[65536]{0}', space=vmem, size = 0x10000, scoped, tag = 'input window, operand 1, single buffered']
    #allocation6 [shape = 's32[1]{0}', space=sflag, size = 0x4, scoped, tag = 'scoped memory for mutag_forward.1']
    #allocation7 [shape = 'u8[131072]{0}', space=vmem, size = 0x20000, scoped, tag = 'input window, operand 2, single buffered']
    #allocation8 [shape = 'u8[1024]{0}', space=vmem, size = 0x400, scoped, tag = 'input window, operand 3, single buffered']
    #allocation9 [shape = 's32[1]{0}', space=sflag, size = 0x4, scoped, tag = 'scoped memory for mutag_forward.1']
    #allocation10 [shape = 'u8[512]{0}', space=vmem, size = 0x400, scoped, tag = 'input window, operand 4, single buffered']
    #allocation11 [shape = 'u8[4096]{0}', space=vmem, size = 0x1000, scoped, tag = 'input window, operand 5, single buffered']
    #allocation12 [shape = 's32[1]{0}', space=sflag, size = 0x4, scoped, tag = 'scoped memory for mutag_forward.1']
    #allocation13 [shape = 'u8[6144]{0}', space=vmem, size = 0x1800, scoped, tag = 'input window, operand 6, single buffered']
    #allocation14 [shape = 'u8[16384]{0}', space=vmem, size = 0x4000, scoped, tag = 'input window, operand 7, single buffered']
    #allocation15 [shape = 's32[1]{0}', space=sflag, size = 0x4, scoped, tag = 'scoped memory for mutag_forward.1']
    #allocation16 [shape = 'u8[81920]{0}', space=vmem, size = 0x14000, scoped, tag = 'input window, operand 8, single buffered']
    #allocation17 [shape = 'u8[8192]{0}', space=vmem, size = 0x2000, scoped, tag = 'input window, operand 9, single buffered']
    #allocation18 [shape = 's32[1]{0}', space=sflag, size = 0x4, scoped, tag = 'scoped memory for mutag_forward.1']
    #allocation19 [shape = 'u8[4096]{0}', space=vmem, size = 0x1000, scoped, tag = 'output window, operand 0, single buffered']
    %15 = vsyncpa [#allocation3], 0
    %16 = vsyncpa [#allocation6], 0
    %17 = vsyncpa [#allocation9], 0
    %18 = vsyncpa [#allocation12], 0
    %19 = vsyncpa [#allocation15], 0
    %20 = vsyncpa [#allocation18], 0
    %21 = vsyncpa [#allocation4], 0
    // Predicated region
    $region2: #{mutag_forward.1} parent=1 // pred_check
      _
    $region3: #{mutag_forward.1} parent=1 // pred_check_branch
      %23 = sbr.rel (0) target = $region5
    $region4: #{mutag_forward.1} parent=1 // pred_region
      %s25 = ssub.s32 1024, 1024
      %26 = vsyncadd [#allocation3], %s25
      %s27 = sshll.u32 [#allocation2], 4
      %s28 = int_to_ptr.vmem [resolvable:$true] %s27
      %33 = dma.hbm_to_vmem [thread:$0]  %s0, 1024, %s28, [#allocation3], 64, 64, 4
    $region5: #{mutag_forward.1} parent=1 // pred_fallthru
      _
    // Predicated region
    $region6: #{mutag_forward.1} parent=1 // pred_check
      _
    $region7: #{mutag_forward.1} parent=1 // pred_check_branch
      %35 = sbr.rel (0) target = $region9
    $region8: #{mutag_forward.1} parent=1 // pred_region
      %s37 = ssub.s32 2048, 2048
      %38 = vsyncadd [#allocation6], %s37
      %s39 = sshll.u32 [#allocation5], 4
      %s40 = int_to_ptr.vmem [resolvable:$true] %s39
      %45 = dma.hbm_to_vmem [thread:$0]  %s1, 2048, %s40, [#allocation6], 64, 64, 4
    $region9: #{mutag_forward.1} parent=1 // pred_fallthru
      _
    // Predicated region
    $region10: #{mutag_forward.1} parent=1 // pred_check
      _
    $region11: #{mutag_forward.1} parent=1 // pred_check_branch
      %47 = sbr.rel (0) target = $region13
    $region12: #{mutag_forward.1} parent=1 // pred_region
      %s49 = ssub.s32 4096, 4096
      %50 = vsyncadd [#allocation6], %s49
      %s51 = sshll.u32 [#allocation7], 4
      %s52 = int_to_ptr.vmem [resolvable:$true] %s51
      %57 = dma.hbm_to_vmem [thread:$0]  %s2, 4096, %s52, [#allocation6], 128, 128, 8
    $region13: #{mutag_forward.1} parent=1 // pred_fallthru
      _
    // Predicated region
    $region14: #{mutag_forward.1} parent=1 // pred_check
      _
    $region15: #{mutag_forward.1} parent=1 // pred_check_branch
      %59 = sbr.rel (0) target = $region17
    $region16: #{mutag_forward.1} parent=1 // pred_region
      %s61 = ssub.s32 32, 32
      %62 = vsyncadd [#allocation9], %s61
      %s64 = sshll.u32 [#allocation8], 4
      %s65 = int_to_ptr.vmem [resolvable:$true] %s64
      %67 = dma.hbm_to_vmem [thread:$0]  %s3, 32, %s65, [#allocation9]
    $region17: #{mutag_forward.1} parent=1 // pred_fallthru
      _
    // Predicated region
    $region18: #{mutag_forward.1} parent=1 // pred_check
      _
    $region19: #{mutag_forward.1} parent=1 // pred_check_branch
      %69 = sbr.rel (0) target = $region21
    $region20: #{mutag_forward.1} parent=1 // pred_region
      %s71 = ssub.s32 16, 16
      %72 = vsyncadd [#allocation9], %s71
      %s74 = sshll.u32 [#allocation10], 4
      %s75 = int_to_ptr.vmem [resolvable:$true] %s74
      %77 = dma.hbm_to_vmem [thread:$0]  %s4, 16, %s75, [#allocation9]
    $region21: #{mutag_forward.1} parent=1 // pred_fallthru
      _
    // Predicated region
    $region22: #{mutag_forward.1} parent=1 // pred_check
      _
    $region23: #{mutag_forward.1} parent=1 // pred_check_branch
      %79 = sbr.rel (0) target = $region25
    $region24: #{mutag_forward.1} parent=1 // pred_region
      %s81 = ssub.s32 128, 128
      %82 = vsyncadd [#allocation12], %s81
      %s84 = sshll.u32 [#allocation11], 4
      %s85 = int_to_ptr.vmem [resolvable:$true] %s84
      %87 = dma.hbm_to_vmem [thread:$0]  %s5, 128, %s85, [#allocation12]
    $region25: #{mutag_forward.1} parent=1 // pred_fallthru
      _
    // Predicated region
    $region26: #{mutag_forward.1} parent=1 // pred_check
      _
    $region27: #{mutag_forward.1} parent=1 // pred_check_branch
      %89 = sbr.rel (0) target = $region29
    $region28: #{mutag_forward.1} parent=1 // pred_region
      %s91 = ssub.s32 192, 192
      %92 = vsyncadd [#allocation12], %s91
      %s93 = sshll.u32 [#allocation13], 4
      %s94 = int_to_ptr.vmem [resolvable:$true] %s93
      %99 = dma.hbm_to_vmem [thread:$0]  %s6, 192, %s94, [#allocation12], 64, 64, 4
    $region29: #{mutag_forward.1} parent=1 // pred_fallthru
      _
    // Predicated region
    $region30: #{mutag_forward.1} parent=1 // pred_check
      _
    $region31: #{mutag_forward.1} parent=1 // pred_check_branch
      %101 = sbr.rel (0) target = $region33
    $region32: #{mutag_forward.1} parent=1 // pred_region
      %s103 = ssub.s32 512, 512
      %104 = vsyncadd [#allocation15], %s103
      %s105 = sshll.u32 [#allocation14], 4
      %s106 = int_to_ptr.vmem [resolvable:$true] %s105
      %111 = dma.hbm_to_vmem [thread:$0]  %s7, 512, %s106, [#allocation15], 64, 64, 4
    $region33: #{mutag_forward.1} parent=1 // pred_fallthru
      _
    // Predicated region
    $region34: #{mutag_forward.1} parent=1 // pred_check
      _
    $region35: #{mutag_forward.1} parent=1 // pred_check_branch
      %113 = sbr.rel (0) target = $region37
    $region36: #{mutag_forward.1} parent=1 // pred_region
      %s115 = ssub.s32 2560, 2560
      %116 = vsyncadd [#allocation15], %s115
      %s117 = sshll.u32 [#allocation16], 4
      %s118 = int_to_ptr.vmem [resolvable:$true] %s117
      %123 = dma.hbm_to_vmem [thread:$0]  %s8, 2560, %s118, [#allocation15], 64, 64, 4
    $region37: #{mutag_forward.1} parent=1 // pred_fallthru
      _
    // Predicated region
    $region38: #{mutag_forward.1} parent=1 // pred_check
      _
    $region39: #{mutag_forward.1} parent=1 // pred_check_branch
      %125 = sbr.rel (0) target = $region41
    $region40: #{mutag_forward.1} parent=1 // pred_region
      %s127 = ssub.s32 256, 256
      %128 = vsyncadd [#allocation18], %s127
      %s129 = sshll.u32 [#allocation17], 4
      %s130 = int_to_ptr.vmem [resolvable:$true] %s129
      %135 = dma.hbm_to_vmem [thread:$0]  %s9, 256, %s130, [#allocation18], 128, 128, 8
    $region41: #{mutag_forward.1} parent=1 // pred_fallthru
      _
    // Predicated region
    $region42: #{mutag_forward.1} parent=1 // pred_check
      _
    $region43: #{mutag_forward.1} parent=1 // pred_check_branch
      %137 = sbr.rel (0) target = $region45
    $region44: #{mutag_forward.1} parent=1 // pred_region
      %138 = dma.done [#allocation3], 1024
    $region45: #{mutag_forward.1} parent=1 // pred_fallthru
      _
    // Predicated region
    $region46: #{mutag_forward.1} parent=1 // pred_check
      _
    $region47: #{mutag_forward.1} parent=1 // pred_check_branch
      %140 = sbr.rel (0) target = $region49
    $region48: #{mutag_forward.1} parent=1 // pred_region
      %141 = dma.done [#allocation6], 2048
    $region49: #{mutag_forward.1} parent=1 // pred_fallthru
      _
    // Predicated region
    $region50: #{mutag_forward.1} parent=1 // pred_check
      _
    $region51: #{mutag_forward.1} parent=1 // pred_check_branch
      %143 = sbr.rel (0) target = $region53
    $region52: #{mutag_forward.1} parent=1 // pred_region
      %144 = dma.done [#allocation6], 4096
    $region53: #{mutag_forward.1} parent=1 // pred_fallthru
      _
    // Predicated region
    $region54: #{mutag_forward.1} parent=1 // pred_check
      _
    $region55: #{mutag_forward.1} parent=1 // pred_check_branch
      %146 = sbr.rel (0) target = $region57
    $region56: #{mutag_forward.1} parent=1 // pred_region
      %147 = dma.done [#allocation9], 32
    $region57: #{mutag_forward.1} parent=1 // pred_fallthru
      _
    // Predicated region
    $region58: #{mutag_forward.1} parent=1 // pred_check
      _
    $region59: #{mutag_forward.1} parent=1 // pred_check_branch
      %149 = sbr.rel (0) target = $region61
    $region60: #{mutag_forward.1} parent=1 // pred_region
      %150 = dma.done [#allocation9], 16
    $region61: #{mutag_forward.1} parent=1 // pred_fallthru
      _
    // Predicated region
    $region62: #{mutag_forward.1} parent=1 // pred_check
      _
    $region63: #{mutag_forward.1} parent=1 // pred_check_branch
      %152 = sbr.rel (0) target = $region65
    $region64: #{mutag_forward.1} parent=1 // pred_region
      %153 = dma.done [#allocation12], 128
    $region65: #{mutag_forward.1} parent=1 // pred_fallthru
      _
    // Predicated region
    $region66: #{mutag_forward.1} parent=1 // pred_check
      _
    $region67: #{mutag_forward.1} parent=1 // pred_check_branch
      %155 = sbr.rel (0) target = $region69
    $region68: #{mutag_forward.1} parent=1 // pred_region
      %156 = dma.done [#allocation12], 192
    $region69: #{mutag_forward.1} parent=1 // pred_fallthru
      _
    // Predicated region
    $region70: #{mutag_forward.1} parent=1 // pred_check
      _
    $region71: #{mutag_forward.1} parent=1 // pred_check_branch
      %158 = sbr.rel (0) target = $region73
    $region72: #{mutag_forward.1} parent=1 // pred_region
      %159 = dma.done [#allocation15], 512
    $region73: #{mutag_forward.1} parent=1 // pred_fallthru
      _
    // Predicated region
    $region74: #{mutag_forward.1} parent=1 // pred_check
      _
    $region75: #{mutag_forward.1} parent=1 // pred_check_branch
      %161 = sbr.rel (0) target = $region77
    $region76: #{mutag_forward.1} parent=1 // pred_region
      %162 = dma.done [#allocation15], 2560
    $region77: #{mutag_forward.1} parent=1 // pred_fallthru
      _
    // Predicated region
    $region78: #{mutag_forward.1} parent=1 // pred_check
      _
    $region79: #{mutag_forward.1} parent=1 // pred_check_branch
      %164 = sbr.rel (0) target = $region81
    $region80: #{mutag_forward.1} parent=1 // pred_region
      %165 = dma.done [#allocation18], 256
    $region81: #{mutag_forward.1} parent=1 // pred_fallthru
      _
    %v167 = vld [vmem:[#allocation17] sm:$0xff]
    %v168 = vld [vmem:[#allocation17 + $0x8] sm:$0xff]
    %v169 = vld [vmem:[#allocation2] sm:$0xf]
    %v170 = vld [vmem:[#allocation2 + $0x4] sm:$0xf]
    %v171 = vld [vmem:[#allocation2 + $0x8] sm:$0xf]
    %v172 = vld [vmem:[#allocation2 + $0xc] sm:$0xf]
    %v173 = vld [vmem:[#allocation2 + $0x10] sm:$0xf]
    %v174 = vld [vmem:[#allocation2 + $0x14] sm:$0xf]
    %v175 = vld [vmem:[#allocation2 + $0x18] sm:$0xf]
    %v176 = vld [vmem:[#allocation2 + $0x1c] sm:$0xf]
    %v177 = vld [vmem:[#allocation2 + $0x20] sm:$0xf]
    %v178 = vld [vmem:[#allocation2 + $0x24] sm:$0xf]
    %v179 = vld [vmem:[#allocation2 + $0x28] sm:$0xf]
    %v180 = vld [vmem:[#allocation2 + $0x2c] sm:$0xf]
    %v181 = vld [vmem:[#allocation2 + $0x30] sm:$0xf]
    %v182 = vld [vmem:[#allocation2 + $0x34] sm:$0xf]
    %v183 = vld [vmem:[#allocation2 + $0x38] sm:$0xf]
    %v184 = vld [vmem:[#allocation2 + $0x3c] sm:$0xf]
    %v185 = vld [vmem:[#allocation13] sm:$0xf]
    %v186 = vld [vmem:[#allocation13 + $0x4] sm:$0xf]
    %v187 = vlaneseq
    %v188 = vshrl.u32 %v187, 7
    %v189 = vsub.s32 0, %v188
    %v190 = vrot.slane %v167, %v189
    %v207 = vunpack.c.l.b16 %v169
    %v208 = vunpack.c.l.b16 %v170
    %v209 = vunpack.c.l.b16 %v171
    %v210 = vunpack.c.l.b16 %v172
    %v211 = vunpack.c.l.b16 %v173
    %v212 = vunpack.c.l.b16 %v174
    %v213 = vunpack.c.l.b16 %v175
    %v214 = vunpack.c.l.b16 %v176
    %v215 = vunpack.c.l.b16 %v177
    %v216 = vunpack.c.l.b16 %v178
    %v217 = vunpack.c.l.b16 %v179
    %v218 = vunpack.c.l.b16 %v180
    %v219 = vunpack.c.l.b16 %v181
    %v220 = vunpack.c.l.b16 %v182
    %v221 = vunpack.c.l.b16 %v183
    %v222 = vunpack.c.l.b16 %v184
    %v223 = vpack.c.b16 %v208, %v207
    %v224 = vpack.c.b16 %v210, %v209
    %v225 = vpack.c.b16 %v212, %v211
    %v226 = vpack.c.b16 %v214, %v213
    %v227 = vpack.c.b16 %v216, %v215
    %v228 = vpack.c.b16 %v218, %v217
    %v229 = vpack.c.b16 %v220, %v219
    %v230 = vpack.c.b16 %v222, %v221
    %v233 = vunpack.c.l.b16 %v185
    %v234 = vunpack.c.l.b16 %v186
    %v235 = vpack.c.b16 %v234, %v233
    %vm237 = vcmask 130048
    %v239 = vsel %vm237, %v223, 0
    %v242 = vsel %vm237, %v224, 0
    %v245 = vsel %vm237, %v225, 0
    %v248 = vsel %vm237, %v226, 0
    %v251 = vsel %vm237, %v227, 0
    %v254 = vsel %vm237, %v228, 0
    %v257 = vsel %vm237, %v229, 0
    %v260 = vsel %vm237, %v230, 0
    %262 = vmatprep.subr.bf16.mxu0 0
    %263 = vmatpush1.bf16.msra.mxu0 %v235
    %264 = vmatprep.subr.bf16.mxu0 0
    %265 = vmatpush1.bf16.msra.mxu0 0
    %266 = vmatprep.subr.bf16.mxu0 0
    %267 = vmatpush1.bf16.msra.mxu0 0
    %268 = vmatprep.subr.bf16.mxu0 0
    %269 = vmatpush1.bf16.msra.mxu0 0
    %270 = vmatprep.subr.bf16.mxu0 0
    %271 = vmatpush1.bf16.msra.mxu0 0
    %272 = vmatprep.subr.bf16.mxu0 0
    %273 = vmatpush1.bf16.msra.mxu0 0
    %274 = vmatprep.subr.bf16.mxu0 0
    %275 = vmatpush1.bf16.msra.mxu0 0
    %276 = vmatprep.subr.bf16.mxu0 0
    %277 = vmatpush1.bf16.msra.mxu0 0
    %278 = vmatprep.subr.bf16.mxu0 0
    %279 = vmatpush1.bf16.msra.mxu0 0
    %280 = vmatprep.subr.bf16.mxu0 0
    %281 = vmatpush1.bf16.msra.mxu0 0
    %282 = vmatprep.subr.bf16.mxu0 0
    %283 = vmatpush1.bf16.msra.mxu0 0
    %284 = vmatprep.subr.bf16.mxu0 0
    %285 = vmatpush1.bf16.msra.mxu0 0
    %286 = vmatprep.subr.bf16.mxu0 0
    %287 = vmatpush1.bf16.msra.mxu0 0
    %288 = vmatprep.subr.bf16.mxu0 0
    %289 = vmatpush1.bf16.msra.mxu0 0
    %290 = vmatprep.subr.bf16.mxu0 0
    %291 = vmatpush1.bf16.msra.mxu0 0
    %292 = vmatprep.subr.bf16.mxu0 0
    %293 = vmatpush1.bf16.msra.mxu0 0
    %294 = vmatprep.mubr.bf16.mxu0 0
    %295 = vmatmul.mubr.bf16.gmra.mrb[0].mxu0 %v239
    %v296 = vpop.f32.mrb[0].mxu0
    %v297 = vadd.f32 %v190, %v296
    %v298 = vpop.f32.mrb[0].mxu0
    %v299 = vpop.f32.mrb[0].mxu0
    %v300 = vadd.f32 %v190, %v299
    %v301 = vpop.f32.mrb[0].mxu0
    %302 = vmatprep.mubr.bf16.mxu0 0
    %303 = vmatmul.mubr.bf16.gmra.mrb[0].mxu0 %v242
    %v304 = vpop.f32.mrb[0].mxu0
    %v305 = vadd.f32 %v190, %v304
    %v306 = vpop.f32.mrb[0].mxu0
    %v307 = vpop.f32.mrb[0].mxu0
    %v308 = vadd.f32 %v190, %v307
    %v309 = vpop.f32.mrb[0].mxu0
    %310 = vmatprep.mubr.bf16.mxu0 0
    %311 = vmatmul.mubr.bf16.gmra.mrb[0].mxu0 %v245
    %v312 = vpop.f32.mrb[0].mxu0
    %v313 = vadd.f32 %v190, %v312
    %v314 = vpop.f32.mrb[0].mxu0
    %v315 = vpop.f32.mrb[0].mxu0
    %v316 = vadd.f32 %v190, %v315
    %v317 = vpop.f32.mrb[0].mxu0
    %318 = vmatprep.mubr.bf16.mxu0 0
    %319 = vmatmul.mubr.bf16.gmra.mrb[0].mxu0 %v248
    %v320 = vpop.f32.mrb[0].mxu0
    %v321 = vadd.f32 %v190, %v320
    %v322 = vpop.f32.mrb[0].mxu0
    %v323 = vpop.f32.mrb[0].mxu0
    %v324 = vadd.f32 %v190, %v323
    %v325 = vpop.f32.mrb[0].mxu0
    %326 = vmatprep.mubr.bf16.mxu0 0
    %327 = vmatmul.mubr.bf16.gmra.mrb[0].mxu0 %v251
    %v328 = vpop.f32.mrb[0].mxu0
    %v329 = vadd.f32 %v190, %v328
    %v330 = vpop.f32.mrb[0].mxu0
    %v331 = vpop.f32.mrb[0].mxu0
    %v332 = vadd.f32 %v190, %v331
    %v333 = vpop.f32.mrb[0].mxu0
    %334 = vmatprep.mubr.bf16.mxu0 0
    %335 = vmatmul.mubr.bf16.gmra.mrb[0].mxu0 %v254
    %v336 = vpop.f32.mrb[0].mxu0
    %v337 = vadd.f32 %v190, %v336
    %v338 = vpop.f32.mrb[0].mxu0
    %v339 = vpop.f32.mrb[0].mxu0
    %v340 = vadd.f32 %v190, %v339
    %v341 = vpop.f32.mrb[0].mxu0
    %342 = vmatprep.mubr.bf16.mxu0 0
    %343 = vmatmul.mubr.bf16.gmra.mrb[0].mxu0 %v257
    %v344 = vpop.f32.mrb[0].mxu0
    %v345 = vadd.f32 %v190, %v344
    %v346 = vpop.f32.mrb[0].mxu0
    %v347 = vpop.f32.mrb[0].mxu0
    %v348 = vadd.f32 %v190, %v347
    %v349 = vpop.f32.mrb[0].mxu0
    %350 = vmatprep.mubr.bf16.mxu0 0
    %351 = vmatmul.mubr.bf16.gmra.mrb[0].mxu0 %v260
    %v352 = vpop.f32.mrb[0].mxu0
    %v353 = vadd.f32 %v190, %v352
    %v354 = vpop.f32.mrb[0].mxu0
    %v355 = vpop.f32.mrb[0].mxu0
    %v356 = vadd.f32 %v190, %v355
    %v357 = vpop.f32.mrb[0].mxu0
    %358 = vdwg.mxu0
    %v359 = vld [vmem:[#allocation5] sm:$0xf]
    %v360 = vld [vmem:[#allocation5 + $0x4] sm:$0xf]
    %v361 = vld [vmem:[#allocation5 + $0x8] sm:$0xf]
    %v362 = vld [vmem:[#allocation5 + $0xc] sm:$0xf]
    %v363 = vld [vmem:[#allocation5 + $0x10] sm:$0xf]
    %v364 = vld [vmem:[#allocation5 + $0x14] sm:$0xf]
    %v365 = vld [vmem:[#allocation5 + $0x18] sm:$0xf]
    %v366 = vld [vmem:[#allocation5 + $0x1c] sm:$0xf]
    %v367 = vld [vmem:[#allocation5 + $0x20] sm:$0xf]
    %v368 = vld [vmem:[#allocation5 + $0x24] sm:$0xf]
    %v369 = vld [vmem:[#allocation5 + $0x28] sm:$0xf]
    %v370 = vld [vmem:[#allocation5 + $0x2c] sm:$0xf]
    %v371 = vld [vmem:[#allocation5 + $0x30] sm:$0xf]
    %v372 = vld [vmem:[#allocation5 + $0x34] sm:$0xf]
    %v373 = vld [vmem:[#allocation5 + $0x38] sm:$0xf]
    %v374 = vld [vmem:[#allocation5 + $0x3c] sm:$0xf]
    %v375 = vld [vmem:[#allocation5 + $0x40] sm:$0xf]
    %v376 = vld [vmem:[#allocation5 + $0x44] sm:$0xf]
    %v377 = vld [vmem:[#allocation5 + $0x48] sm:$0xf]
    %v378 = vld [vmem:[#allocation5 + $0x4c] sm:$0xf]
    %v379 = vld [vmem:[#allocation5 + $0x50] sm:$0xf]
    %v380 = vld [vmem:[#allocation5 + $0x54] sm:$0xf]
    %v381 = vld [vmem:[#allocation5 + $0x58] sm:$0xf]
    %v382 = vld [vmem:[#allocation5 + $0x5c] sm:$0xf]
    %v383 = vld [vmem:[#allocation5 + $0x60] sm:$0xf]
    %v384 = vld [vmem:[#allocation5 + $0x64] sm:$0xf]
    %v385 = vld [vmem:[#allocation5 + $0x68] sm:$0xf]
    %v386 = vld [vmem:[#allocation5 + $0x6c] sm:$0xf]
    %v387 = vld [vmem:[#allocation5 + $0x70] sm:$0xf]
    %v388 = vld [vmem:[#allocation5 + $0x74] sm:$0xf]
    %v389 = vld [vmem:[#allocation5 + $0x78] sm:$0xf]
    %v390 = vld [vmem:[#allocation5 + $0x7c] sm:$0xf]
    %v391 = vld [vmem:[#allocation13 + $0x8] sm:$0xf]
    %v392 = vlaneseq
    %v393 = vshrl.u32 %v392, 7
    %v394 = vsub.s32 1, %v393
    %v395 = vrot.slane %v167, %v394
    %v428 = vunpack.c.l.b16 %v359
    %v429 = vunpack.c.l.b16 %v360
    %v430 = vunpack.c.l.b16 %v361
    %v431 = vunpack.c.l.b16 %v362
    %v432 = vunpack.c.l.b16 %v363
    %v433 = vunpack.c.l.b16 %v364
    %v434 = vunpack.c.l.b16 %v365
    %v435 = vunpack.c.l.b16 %v366
    %v436 = vunpack.c.l.b16 %v367
    %v437 = vunpack.c.l.b16 %v368
    %v438 = vunpack.c.l.b16 %v369
    %v439 = vunpack.c.l.b16 %v370
    %v440 = vunpack.c.l.b16 %v371
    %v441 = vunpack.c.l.b16 %v372
    %v442 = vunpack.c.l.b16 %v373
    %v443 = vunpack.c.l.b16 %v374
    %v444 = vunpack.c.l.b16 %v375
    %v445 = vunpack.c.l.b16 %v376
    %v446 = vunpack.c.l.b16 %v377
    %v447 = vunpack.c.l.b16 %v378
    %v448 = vunpack.c.l.b16 %v379
    %v449 = vunpack.c.l.b16 %v380
    %v450 = vunpack.c.l.b16 %v381
    %v451 = vunpack.c.l.b16 %v382
    %v452 = vunpack.c.l.b16 %v383
    %v453 = vunpack.c.l.b16 %v384
    %v454 = vunpack.c.l.b16 %v385
    %v455 = vunpack.c.l.b16 %v386
    %v456 = vunpack.c.l.b16 %v387
    %v457 = vunpack.c.l.b16 %v388
    %v458 = vunpack.c.l.b16 %v389
    %v459 = vunpack.c.l.b16 %v390
    %v460 = vpack.c.b16 %v429, %v428
    %v461 = vpack.c.b16 %v431, %v430
    %v462 = vpack.c.b16 %v433, %v432
    %v463 = vpack.c.b16 %v435, %v434
    %v464 = vpack.c.b16 %v437, %v436
    %v465 = vpack.c.b16 %v439, %v438
    %v466 = vpack.c.b16 %v441, %v440
    %v467 = vpack.c.b16 %v443, %v442
    %v468 = vpack.c.b16 %v445, %v444
    %v469 = vpack.c.b16 %v447, %v446
    %v470 = vpack.c.b16 %v449, %v448
    %v471 = vpack.c.b16 %v451, %v450
    %v472 = vpack.c.b16 %v453, %v452
    %v473 = vpack.c.b16 %v455, %v454
    %v474 = vpack.c.b16 %v457, %v456
    %v475 = vpack.c.b16 %v459, %v458
    %vm476 = vcmask 64512
    %v478 = vsel %vm476, %v460, 0
    %v481 = vsel %vm476, %v461, 0
    %v484 = vsel %vm476, %v462, 0
    %v487 = vsel %vm476, %v463, 0
    %v490 = vsel %vm476, %v464, 0
    %v493 = vsel %vm476, %v465, 0
    %v496 = vsel %vm476, %v466, 0
    %v499 = vsel %vm476, %v467, 0
    %v502 = vsel %vm476, %v468, 0
    %v505 = vsel %vm476, %v469, 0
    %v508 = vsel %vm476, %v470, 0
    %v511 = vsel %vm476, %v471, 0
    %v514 = vsel %vm476, %v472, 0
    %v517 = vsel %vm476, %v473, 0
    %v520 = vsel %vm476, %v474, 0
    %v523 = vsel %vm476, %v475, 0
    %vm525 = vcmask 1043456
    %v527 = vsel %vm525, %v391, 0
    %529 = vmatprep.subr.bf16.mxu0 0
    %530 = vmatpush1.bf16.msra.mxu0 %v527
    %531 = vmatprep.subr.bf16.mxu0 0
    %532 = vmatpush1.bf16.msra.mxu0 0
    %533 = vmatprep.subr.bf16.mxu0 0
    %534 = vmatpush1.bf16.msra.mxu0 0
    %535 = vmatprep.subr.bf16.mxu0 0
    %536 = vmatpush1.bf16.msra.mxu0 0
    %537 = vmatprep.subr.bf16.mxu0 0
    %538 = vmatpush1.bf16.msra.mxu0 0
    %539 = vmatprep.subr.bf16.mxu0 0
    %540 = vmatpush1.bf16.msra.mxu0 0
    %541 = vmatprep.subr.bf16.mxu0 0
    %542 = vmatpush1.bf16.msra.mxu0 0
    %543 = vmatprep.subr.bf16.mxu0 0
    %544 = vmatpush1.bf16.msra.mxu0 0
    %545 = vmatprep.subr.bf16.mxu0 0
    %546 = vmatpush1.bf16.msra.mxu0 0
    %547 = vmatprep.subr.bf16.mxu0 0
    %548 = vmatpush1.bf16.msra.mxu0 0
    %549 = vmatprep.subr.bf16.mxu0 0
    %550 = vmatpush1.bf16.msra.mxu0 0
    %551 = vmatprep.subr.bf16.mxu0 0
    %552 = vmatpush1.bf16.msra.mxu0 0
    %553 = vmatprep.subr.bf16.mxu0 0
    %554 = vmatpush1.bf16.msra.mxu0 0
    %555 = vmatprep.subr.bf16.mxu0 0
    %556 = vmatpush1.bf16.msra.mxu0 0
    %557 = vmatprep.subr.bf16.mxu0 0
    %558 = vmatpush1.bf16.msra.mxu0 0
    %559 = vmatprep.subr.bf16.mxu0 0
    %560 = vmatpush1.bf16.msra.mxu0 0
    %561 = vmatprep.mubr.bf16.mxu0 0
    %562 = vmatmul.mubr.bf16.gmra.mrb[0].mxu0 %v478
    %v563 = vpop.f32.mrb[0].mxu0
    %v564 = vadd.f32 %v395, %v563
    %v565 = vpop.f32.mrb[0].mxu0
    %v566 = vpop.f32.mrb[0].mxu0
    %v567 = vadd.f32 %v395, %v566
    %v568 = vpop.f32.mrb[0].mxu0
    %569 = vmatprep.mubr.bf16.mxu0 0
    %570 = vmatmul.mubr.bf16.gmra.mrb[0].mxu0 %v481
    %v571 = vpop.f32.mrb[0].mxu0
    %v572 = vadd.f32 %v395, %v571
    %v573 = vpop.f32.mrb[0].mxu0
    %v574 = vpop.f32.mrb[0].mxu0
    %v575 = vadd.f32 %v395, %v574
    %v576 = vpop.f32.mrb[0].mxu0
    %577 = vmatprep.mubr.bf16.mxu0 0
    %578 = vmatmul.mubr.bf16.gmra.mrb[0].mxu0 %v484
    %v579 = vpop.f32.mrb[0].mxu0
    %v580 = vadd.f32 %v395, %v579
    %v581 = vpop.f32.mrb[0].mxu0
    %v582 = vpop.f32.mrb[0].mxu0
    %v583 = vadd.f32 %v395, %v582
    %v584 = vpop.f32.mrb[0].mxu0
    %585 = vmatprep.mubr.bf16.mxu0 0
    %586 = vmatmul.mubr.bf16.gmra.mrb[0].mxu0 %v487
    %v587 = vpop.f32.mrb[0].mxu0
    %v588 = vadd.f32 %v395, %v587
    %v589 = vpop.f32.mrb[0].mxu0
    %v590 = vpop.f32.mrb[0].mxu0
    %v591 = vadd.f32 %v395, %v590
    %v592 = vpop.f32.mrb[0].mxu0
    %593 = vmatprep.mubr.bf16.mxu0 0
    %594 = vmatmul.mubr.bf16.gmra.mrb[0].mxu0 %v490
    %v595 = vpop.f32.mrb[0].mxu0
    %v596 = vadd.f32 %v395, %v595
    %v597 = vpop.f32.mrb[0].mxu0
    %v598 = vpop.f32.mrb[0].mxu0
    %v599 = vadd.f32 %v395, %v598
    %v600 = vpop.f32.mrb[0].mxu0
    %601 = vmatprep.mubr.bf16.mxu0 0
    %602 = vmatmul.mubr.bf16.gmra.mrb[0].mxu0 %v493
    %v603 = vpop.f32.mrb[0].mxu0
    %v604 = vadd.f32 %v395, %v603
    %v605 = vpop.f32.mrb[0].mxu0
    %v606 = vpop.f32.mrb[0].mxu0
    %v607 = vadd.f32 %v395, %v606
    %v608 = vpop.f32.mrb[0].mxu0
    %609 = vmatprep.mubr.bf16.mxu0 0
    %610 = vmatmul.mubr.bf16.gmra.mrb[0].mxu0 %v496
    %v611 = vpop.f32.mrb[0].mxu0
    %v612 = vadd.f32 %v395, %v611
    %v613 = vpop.f32.mrb[0].mxu0
    %v614 = vpop.f32.mrb[0].mxu0
    %v615 = vadd.f32 %v395, %v614
    %v616 = vpop.f32.mrb[0].mxu0
    %617 = vmatprep.mubr.bf16.mxu0 0
    %618 = vmatmul.mubr.bf16.gmra.mrb[0].mxu0 %v499
    %v619 = vpop.f32.mrb[0].mxu0
    %v620 = vadd.f32 %v395, %v619
    %v621 = vpop.f32.mrb[0].mxu0
    %v622 = vpop.f32.mrb[0].mxu0
    %v623 = vadd.f32 %v395, %v622
    %v624 = vpop.f32.mrb[0].mxu0
    %625 = vmatprep.mubr.bf16.mxu0 0
    %626 = vmatmul.mubr.bf16.gmra.mrb[0].mxu0 %v502
    %v627 = vpop.f32.mrb[0].mxu0
    %v628 = vadd.f32 %v395, %v627
    %v629 = vpop.f32.mrb[0].mxu0
    %v630 = vpop.f32.mrb[0].mxu0
    %v631 = vadd.f32 %v395, %v630
    %v632 = vpop.f32.mrb[0].mxu0
    %633 = vmatprep.mubr.bf16.mxu0 0
    %634 = vmatmul.mubr.bf16.gmra.mrb[0].mxu0 %v505
    %v635 = vpop.f32.mrb[0].mxu0
    %v636 = vadd.f32 %v395, %v635
    %v637 = vpop.f32.mrb[0].mxu0
    %v638 = vpop.f32.mrb[0].mxu0
    %v639 = vadd.f32 %v395, %v638
    %v640 = vpop.f32.mrb[0].mxu0
    %641 = vmatprep.mubr.bf16.mxu0 0
    %642 = vmatmul.mubr.bf16.gmra.mrb[0].mxu0 %v508
    %v643 = vpop.f32.mrb[0].mxu0
    %v644 = vadd.f32 %v395, %v643
    %v645 = vpop.f32.mrb[0].mxu0
    %v646 = vpop.f32.mrb[0].mxu0
    %v647 = vadd.f32 %v395, %v646
    %v648 = vpop.f32.mrb[0].mxu0
    %649 = vmatprep.mubr.bf16.mxu0 0
    %650 = vmatmul.mubr.bf16.gmra.mrb[0].mxu0 %v511
    %v651 = vpop.f32.mrb[0].mxu0
    %v652 = vadd.f32 %v395, %v651
    %v653 = vpop.f32.mrb[0].mxu0
    %v654 = vpop.f32.mrb[0].mxu0
    %v655 = vadd.f32 %v395, %v654
    %v656 = vpop.f32.mrb[0].mxu0
    %657 = vmatprep.mubr.bf16.mxu0 0
    %658 = vmatmul.mubr.bf16.gmra.mrb[0].mxu0 %v514
    %v659 = vpop.f32.mrb[0].mxu0
    %v660 = vadd.f32 %v395, %v659
    %v661 = vpop.f32.mrb[0].mxu0
    %v662 = vpop.f32.mrb[0].mxu0
    %v663 = vadd.f32 %v395, %v662
    %v664 = vpop.f32.mrb[0].mxu0
    %665 = vmatprep.mubr.bf16.mxu0 0
    %666 = vmatmul.mubr.bf16.gmra.mrb[0].mxu0 %v517
    %v667 = vpop.f32.mrb[0].mxu0
    %v668 = vadd.f32 %v395, %v667
    %v669 = vpop.f32.mrb[0].mxu0
    %v670 = vpop.f32.mrb[0].mxu0
    %v671 = vadd.f32 %v395, %v670
    %v672 = vpop.f32.mrb[0].mxu0
    %673 = vmatprep.mubr.bf16.mxu0 0
    %674 = vmatmul.mubr.bf16.gmra.mrb[0].mxu0 %v520
    %v675 = vpop.f32.mrb[0].mxu0
    %v676 = vadd.f32 %v395, %v675
    %v677 = vpop.f32.mrb[0].mxu0
    %v678 = vpop.f32.mrb[0].mxu0
    %v679 = vadd.f32 %v395, %v678
    %v680 = vpop.f32.mrb[0].mxu0
    %681 = vmatprep.mubr.bf16.mxu0 0
    %682 = vmatmul.mubr.bf16.gmra.mrb[0].mxu0 %v523
    %v683 = vpop.f32.mrb[0].mxu0
    %v684 = vadd.f32 %v395, %v683
    %v685 = vpop.f32.mrb[0].mxu0
    %v686 = vpop.f32.mrb[0].mxu0
    %v687 = vadd.f32 %v395, %v686
    %v688 = vpop.f32.mrb[0].mxu0
    %689 = vdwg.mxu0
    %v690 = vld [vmem:[#allocation7] sm:$0xff]
    %v691 = vld [vmem:[#allocation7 + $0x8] sm:$0xff]
    %v692 = vld [vmem:[#allocation7 + $0x10] sm:$0xff]
    %v693 = vld [vmem:[#allocation7 + $0x18] sm:$0xff]
    %v694 = vld [vmem:[#allocation7 + $0x20] sm:$0xff]
    %v695 = vld [vmem:[#allocation7 + $0x28] sm:$0xff]
    %v696 = vld [vmem:[#allocation7 + $0x30] sm:$0xff]
    %v697 = vld [vmem:[#allocation7 + $0x38] sm:$0xff]
    %v698 = vld [vmem:[#allocation7 + $0x40] sm:$0xff]
    %v699 = vld [vmem:[#allocation7 + $0x48] sm:$0xff]
    %v700 = vld [vmem:[#allocation7 + $0x50] sm:$0xff]
    %v701 = vld [vmem:[#allocation7 + $0x58] sm:$0xff]
    %v702 = vld [vmem:[#allocation7 + $0x60] sm:$0xff]
    %v703 = vld [vmem:[#allocation7 + $0x68] sm:$0xff]
    %v704 = vld [vmem:[#allocation7 + $0x70] sm:$0xff]
    %v705 = vld [vmem:[#allocation7 + $0x78] sm:$0xff]
    %v706 = vld [vmem:[#allocation7 + $0x80] sm:$0xff]
    %v707 = vld [vmem:[#allocation7 + $0x88] sm:$0xff]
    %v708 = vld [vmem:[#allocation7 + $0x90] sm:$0xff]
    %v709 = vld [vmem:[#allocation7 + $0x98] sm:$0xff]
    %v710 = vld [vmem:[#allocation7 + $0xa0] sm:$0xff]
    %v711 = vld [vmem:[#allocation7 + $0xa8] sm:$0xff]
    %v712 = vld [vmem:[#allocation7 + $0xb0] sm:$0xff]
    %v713 = vld [vmem:[#allocation7 + $0xb8] sm:$0xff]
    %v714 = vld [vmem:[#allocation7 + $0xc0] sm:$0xff]
    %v715 = vld [vmem:[#allocation7 + $0xc8] sm:$0xff]
    %v716 = vld [vmem:[#allocation7 + $0xd0] sm:$0xff]
    %v717 = vld [vmem:[#allocation7 + $0xd8] sm:$0xff]
    %v718 = vld [vmem:[#allocation7 + $0xe0] sm:$0xff]
    %v719 = vld [vmem:[#allocation7 + $0xe8] sm:$0xff]
    %v720 = vld [vmem:[#allocation7 + $0xf0] sm:$0xff]
    %v721 = vld [vmem:[#allocation7 + $0xf8] sm:$0xff]
    %v722 = vld [vmem:[#allocation8] sm:$0x3]
    %v723 = vld [vmem:[#allocation10] sm:$0x1]
    %v724 = vlaneseq
    %v725 = vand.u32 %v724, 127
    %726 = vset.pattern.permute.xlu0 0
    %727 = vperm.xlu0 %726, %v690
    %v728 = vpop.permute.xlu0 %727
    %729 = vset.pattern.permute.xlu0 0
    %730 = vperm.xlu0 %729, %v691
    %v731 = vpop.permute.xlu0 %730
    %732 = vset.pattern.permute.xlu0 0
    %733 = vperm.xlu0 %732, %v692
    %v734 = vpop.permute.xlu0 %733
    %735 = vset.pattern.permute.xlu0 0
    %736 = vperm.xlu0 %735, %v693
    %v737 = vpop.permute.xlu0 %736
    %738 = vset.pattern.permute.xlu0 0
    %739 = vperm.xlu0 %738, %v694
    %v740 = vpop.permute.xlu0 %739
    %741 = vset.pattern.permute.xlu0 0
    %742 = vperm.xlu0 %741, %v695
    %v743 = vpop.permute.xlu0 %742
    %744 = vset.pattern.permute.xlu0 0
    %745 = vperm.xlu0 %744, %v696
    %v746 = vpop.permute.xlu0 %745
    %747 = vset.pattern.permute.xlu0 0
    %748 = vperm.xlu0 %747, %v697
    %v749 = vpop.permute.xlu0 %748
    %750 = vset.pattern.permute.xlu0 0
    %751 = vperm.xlu0 %750, %v698
    %v752 = vpop.permute.xlu0 %751
    %753 = vset.pattern.permute.xlu0 0
    %754 = vperm.xlu0 %753, %v699
    %v755 = vpop.permute.xlu0 %754
    %756 = vset.pattern.permute.xlu0 0
    %757 = vperm.xlu0 %756, %v700
    %v758 = vpop.permute.xlu0 %757
    %759 = vset.pattern.permute.xlu0 0
    %760 = vperm.xlu0 %759, %v701
    %v761 = vpop.permute.xlu0 %760
    %762 = vset.pattern.permute.xlu0 0
    %763 = vperm.xlu0 %762, %v702
    %v764 = vpop.permute.xlu0 %763
    %765 = vset.pattern.permute.xlu0 0
    %766 = vperm.xlu0 %765, %v703
    %v767 = vpop.permute.xlu0 %766
    %768 = vset.pattern.permute.xlu0 0
    %769 = vperm.xlu0 %768, %v704
    %v770 = vpop.permute.xlu0 %769
    %771 = vset.pattern.permute.xlu0 0
    %772 = vperm.xlu0 %771, %v705
    %v773 = vpop.permute.xlu0 %772
    %774 = vset.pattern.permute.xlu0 0
    %775 = vperm.xlu0 %774, %v706
    %v776 = vpop.permute.xlu0 %775
    %777 = vset.pattern.permute.xlu0 0
    %778 = vperm.xlu0 %777, %v707
    %v779 = vpop.permute.xlu0 %778
    %780 = vset.pattern.permute.xlu0 0
    %781 = vperm.xlu0 %780, %v708
    %v782 = vpop.permute.xlu0 %781
    %783 = vset.pattern.permute.xlu0 0
    %784 = vperm.xlu0 %783, %v709
    %v785 = vpop.permute.xlu0 %784
    %786 = vset.pattern.permute.xlu0 0
    %787 = vperm.xlu0 %786, %v710
    %v788 = vpop.permute.xlu0 %787
    %789 = vset.pattern.permute.xlu0 0
    %790 = vperm.xlu0 %789, %v711
    %v791 = vpop.permute.xlu0 %790
    %792 = vset.pattern.permute.xlu0 0
    %793 = vperm.xlu0 %792, %v712
    %v794 = vpop.permute.xlu0 %793
    %795 = vset.pattern.permute.xlu0 0
    %796 = vperm.xlu0 %795, %v713
    %v797 = vpop.permute.xlu0 %796
    %798 = vset.pattern.permute.xlu0 0
    %799 = vperm.xlu0 %798, %v714
    %v800 = vpop.permute.xlu0 %799
    %801 = vset.pattern.permute.xlu0 0
    %802 = vperm.xlu0 %801, %v715
    %v803 = vpop.permute.xlu0 %802
    %804 = vset.pattern.permute.xlu0 0
    %805 = vperm.xlu0 %804, %v716
    %v806 = vpop.permute.xlu0 %805
    %807 = vset.pattern.permute.xlu0 0
    %808 = vperm.xlu0 %807, %v717
    %v809 = vpop.permute.xlu0 %808
    %810 = vset.pattern.permute.xlu0 0
    %811 = vperm.xlu0 %810, %v718
    %v812 = vpop.permute.xlu0 %811
    %813 = vset.pattern.permute.xlu0 0
    %814 = vperm.xlu0 %813, %v719
    %v815 = vpop.permute.xlu0 %814
    %816 = vset.pattern.permute.xlu0 0
    %817 = vperm.xlu0 %816, %v720
    %v818 = vpop.permute.xlu0 %817
    %819 = vset.pattern.permute.xlu0 0
    %820 = vperm.xlu0 %819, %v721
    %v821 = vpop.permute.xlu0 %820
    %vm822 = vcmp.eq.s32.totalorder %v728, %v725
    %vm823 = vcmp.eq.s32.totalorder %v731, %v725
    %vm824 = vcmp.eq.s32.totalorder %v734, %v725
    %vm825 = vcmp.eq.s32.totalorder %v737, %v725
    %vm826 = vcmp.eq.s32.totalorder %v740, %v725
    %vm827 = vcmp.eq.s32.totalorder %v743, %v725
    %vm828 = vcmp.eq.s32.totalorder %v746, %v725
    %vm829 = vcmp.eq.s32.totalorder %v749, %v725
    %vm830 = vcmp.eq.s32.totalorder %v752, %v725
    %vm831 = vcmp.eq.s32.totalorder %v755, %v725
    %vm832 = vcmp.eq.s32.totalorder %v758, %v725
    %vm833 = vcmp.eq.s32.totalorder %v761, %v725
    %vm834 = vcmp.eq.s32.totalorder %v764, %v725
    %vm835 = vcmp.eq.s32.totalorder %v767, %v725
    %vm836 = vcmp.eq.s32.totalorder %v770, %v725
    %vm837 = vcmp.eq.s32.totalorder %v773, %v725
    %vm838 = vcmp.eq.s32.totalorder %v776, %v725
    %vm839 = vcmp.eq.s32.totalorder %v779, %v725
    %vm840 = vcmp.eq.s32.totalorder %v782, %v725
    %vm841 = vcmp.eq.s32.totalorder %v785, %v725
    %vm842 = vcmp.eq.s32.totalorder %v788, %v725
    %vm843 = vcmp.eq.s32.totalorder %v791, %v725
    %vm844 = vcmp.eq.s32.totalorder %v794, %v725
    %vm845 = vcmp.eq.s32.totalorder %v797, %v725
    %vm846 = vcmp.eq.s32.totalorder %v800, %v725
    %vm847 = vcmp.eq.s32.totalorder %v803, %v725
    %vm848 = vcmp.eq.s32.totalorder %v806, %v725
    %vm849 = vcmp.eq.s32.totalorder %v809, %v725
    %vm850 = vcmp.eq.s32.totalorder %v812, %v725
    %vm851 = vcmp.eq.s32.totalorder %v815, %v725
    %vm852 = vcmp.eq.s32.totalorder %v818, %v725
    %vm853 = vcmp.eq.s32.totalorder %v821, %v725
    %v854 = vsel %vm822, 1, 0
    %v855 = vsel %vm823, 1, 0
    %v856 = vsel %vm824, 1, 0
    %v857 = vsel %vm825, 1, 0
    %v858 = vsel %vm826, 1, 0
    %v859 = vsel %vm827, 1, 0
    %v860 = vsel %vm828, 1, 0
    %v861 = vsel %vm829, 1, 0
    %v862 = vsel %vm830, 1, 0
    %v863 = vsel %vm831, 1, 0
    %v864 = vsel %vm832, 1, 0
    %v865 = vsel %vm833, 1, 0
    %v866 = vsel %vm834, 1, 0
    %v867 = vsel %vm835, 1, 0
    %v868 = vsel %vm836, 1, 0
    %v869 = vsel %vm837, 1, 0
    %v870 = vsel %vm838, 1, 0
    %v871 = vsel %vm839, 1, 0
    %v872 = vsel %vm840, 1, 0
    %v873 = vsel %vm841, 1, 0
    %v874 = vsel %vm842, 1, 0
    %v875 = vsel %vm843, 1, 0
    %v876 = vsel %vm844, 1, 0
    %v877 = vsel %vm845, 1, 0
    %v878 = vsel %vm846, 1, 0
    %v879 = vsel %vm847, 1, 0
    %v880 = vsel %vm848, 1, 0
    %v881 = vsel %vm849, 1, 0
    %v882 = vsel %vm850, 1, 0
    %v883 = vsel %vm851, 1, 0
    %v884 = vsel %vm852, 1, 0
    %v885 = vsel %vm853, 1, 0
    %v886 = vcvt.s32.f32 %v854
    %v887 = vcvt.s32.f32 %v855
    %v888 = vcvt.s32.f32 %v856
    %v889 = vcvt.s32.f32 %v857
    %v890 = vcvt.s32.f32 %v858
    %v891 = vcvt.s32.f32 %v859
    %v892 = vcvt.s32.f32 %v860
    %v893 = vcvt.s32.f32 %v861
    %v894 = vcvt.s32.f32 %v862
    %v895 = vcvt.s32.f32 %v863
    %v896 = vcvt.s32.f32 %v864
    %v897 = vcvt.s32.f32 %v865
    %v898 = vcvt.s32.f32 %v866
    %v899 = vcvt.s32.f32 %v867
    %v900 = vcvt.s32.f32 %v868
    %v901 = vcvt.s32.f32 %v869
    %v902 = vcvt.s32.f32 %v870
    %v903 = vcvt.s32.f32 %v871
    %v904 = vcvt.s32.f32 %v872
    %v905 = vcvt.s32.f32 %v873
    %v906 = vcvt.s32.f32 %v874
    %v907 = vcvt.s32.f32 %v875
    %v908 = vcvt.s32.f32 %v876
    %v909 = vcvt.s32.f32 %v877
    %v910 = vcvt.s32.f32 %v878
    %v911 = vcvt.s32.f32 %v879
    %v912 = vcvt.s32.f32 %v880
    %v913 = vcvt.s32.f32 %v881
    %v914 = vcvt.s32.f32 %v882
    %v915 = vcvt.s32.f32 %v883
    %v916 = vcvt.s32.f32 %v884
    %v917 = vcvt.s32.f32 %v885
    %v918 = vpack.c.bf16 %v887, %v886
    %v919 = vpack.c.bf16 %v889, %v888
    %v920 = vpack.c.bf16 %v891, %v890
    %v921 = vpack.c.bf16 %v893, %v892
    %v922 = vpack.c.bf16 %v895, %v894
    %v923 = vpack.c.bf16 %v897, %v896
    %v924 = vpack.c.bf16 %v899, %v898
    %v925 = vpack.c.bf16 %v901, %v900
    %v926 = vpack.c.bf16 %v903, %v902
    %v927 = vpack.c.bf16 %v905, %v904
    %v928 = vpack.c.bf16 %v907, %v906
    %v929 = vpack.c.bf16 %v909, %v908
    %v930 = vpack.c.bf16 %v911, %v910
    %v931 = vpack.c.bf16 %v913, %v912
    %v932 = vpack.c.bf16 %v915, %v914
    %v933 = vpack.c.bf16 %v917, %v916
    %v934 = vlaneseq
    %v935 = vshrl.u32 %v934, 7
    %v936 = vadd.s32 %v935, 8
    %v937 = vadd.s32 %v935, 16
    %v938 = vadd.s32 %v935, 24
    %v939 = vadd.s32 %v935, 32
    %v940 = vadd.s32 %v935, 40
    %v941 = vadd.s32 %v935, 48
    %v942 = vadd.s32 %v935, 56
    %v943 = vadd.s32 %v935, 64
    %v944 = vadd.s32 %v935, 72
    %v945 = vadd.s32 %v935, 80
    %v946 = vadd.s32 %v935, 88
    %v947 = vadd.s32 %v935, 96
    %v948 = vadd.s32 %v935, 104
    %v949 = vadd.s32 %v935, 112
    %v950 = vadd.s32 %v935, 120
    %v951 = vlaneseq
    %v952 = vshrl.u32 %v951, 7
    %v953 = vsub.s32 0, %v952
    %v954 = vrot.slane %v722, %v953
    %v955 = vlaneseq
    %v956 = vshrl.u32 %v955, 7
    %v957 = vsub.s32 1, %v956
    %v958 = vrot.slane %v722, %v957
    %vm959 = vcmp.eq.s32.totalorder %v935, %v954
    %vm960 = vcmp.eq.s32.totalorder %v935, %v958
    %vm961 = vcmp.eq.s32.totalorder %v936, %v954
    %vm962 = vcmp.eq.s32.totalorder %v936, %v958
    %vm963 = vcmp.eq.s32.totalorder %v937, %v954
    %vm964 = vcmp.eq.s32.totalorder %v937, %v958
    %vm965 = vcmp.eq.s32.totalorder %v938, %v954
    %vm966 = vcmp.eq.s32.totalorder %v938, %v958
    %vm967 = vcmp.eq.s32.totalorder %v939, %v954
    %vm968 = vcmp.eq.s32.totalorder %v939, %v958
    %vm969 = vcmp.eq.s32.totalorder %v940, %v954
    %vm970 = vcmp.eq.s32.totalorder %v940, %v958
    %vm971 = vcmp.eq.s32.totalorder %v941, %v954
    %vm972 = vcmp.eq.s32.totalorder %v941, %v958
    %vm973 = vcmp.eq.s32.totalorder %v942, %v954
    %vm974 = vcmp.eq.s32.totalorder %v942, %v958
    %vm975 = vcmp.eq.s32.totalorder %v943, %v954
    %vm976 = vcmp.eq.s32.totalorder %v943, %v958
    %vm977 = vcmp.eq.s32.totalorder %v944, %v954
    %vm978 = vcmp.eq.s32.totalorder %v944, %v958
    %vm979 = vcmp.eq.s32.totalorder %v945, %v954
    %vm980 = vcmp.eq.s32.totalorder %v945, %v958
    %vm981 = vcmp.eq.s32.totalorder %v946, %v954
    %vm982 = vcmp.eq.s32.totalorder %v946, %v958
    %vm983 = vcmp.eq.s32.totalorder %v947, %v954
    %vm984 = vcmp.eq.s32.totalorder %v947, %v958
    %vm985 = vcmp.eq.s32.totalorder %v948, %v954
    %vm986 = vcmp.eq.s32.totalorder %v948, %v958
    %vm987 = vcmp.eq.s32.totalorder %v949, %v954
    %vm988 = vcmp.eq.s32.totalorder %v949, %v958
    %vm989 = vcmp.eq.s32.totalorder %v950, %v954
    %vm990 = vcmp.eq.s32.totalorder %v950, %v958
    %v991 = vsel %vm959, 1, 0
    %v992 = vsel %vm960, 1, 0
    %v993 = vsel %vm961, 1, 0
    %v994 = vsel %vm962, 1, 0
    %v995 = vsel %vm963, 1, 0
    %v996 = vsel %vm964, 1, 0
    %v997 = vsel %vm965, 1, 0
    %v998 = vsel %vm966, 1, 0
    %v999 = vsel %vm967, 1, 0
    %v1000 = vsel %vm968, 1, 0
    %v1001 = vsel %vm969, 1, 0
    %v1002 = vsel %vm970, 1, 0
    %v1003 = vsel %vm971, 1, 0
    %v1004 = vsel %vm972, 1, 0
    %v1005 = vsel %vm973, 1, 0
    %v1006 = vsel %vm974, 1, 0
    %v1007 = vsel %vm975, 1, 0
    %v1008 = vsel %vm976, 1, 0
    %v1009 = vsel %vm977, 1, 0
    %v1010 = vsel %vm978, 1, 0
    %v1011 = vsel %vm979, 1, 0
    %v1012 = vsel %vm980, 1, 0
    %v1013 = vsel %vm981, 1, 0
    %v1014 = vsel %vm982, 1, 0
    %v1015 = vsel %vm983, 1, 0
    %v1016 = vsel %vm984, 1, 0
    %v1017 = vsel %vm985, 1, 0
    %v1018 = vsel %vm986, 1, 0
    %v1019 = vsel %vm987, 1, 0
    %v1020 = vsel %vm988, 1, 0
    %v1021 = vsel %vm989, 1, 0
    %v1022 = vsel %vm990, 1, 0
    %v1023 = vcvt.s32.f32 %v991
    %v1024 = vcvt.s32.f32 %v992
    %v1025 = vcvt.s32.f32 %v993
    %v1026 = vcvt.s32.f32 %v994
    %v1027 = vcvt.s32.f32 %v995
    %v1028 = vcvt.s32.f32 %v996
    %v1029 = vcvt.s32.f32 %v997
    %v1030 = vcvt.s32.f32 %v998
    %v1031 = vcvt.s32.f32 %v999
    %v1032 = vcvt.s32.f32 %v1000
    %v1033 = vcvt.s32.f32 %v1001
    %v1034 = vcvt.s32.f32 %v1002
    %v1035 = vcvt.s32.f32 %v1003
    %v1036 = vcvt.s32.f32 %v1004
    %v1037 = vcvt.s32.f32 %v1005
    %v1038 = vcvt.s32.f32 %v1006
    %v1039 = vcvt.s32.f32 %v1007
    %v1040 = vcvt.s32.f32 %v1008
    %v1041 = vcvt.s32.f32 %v1009
    %v1042 = vcvt.s32.f32 %v1010
    %v1043 = vcvt.s32.f32 %v1011
    %v1044 = vcvt.s32.f32 %v1012
    %v1045 = vcvt.s32.f32 %v1013
    %v1046 = vcvt.s32.f32 %v1014
    %v1047 = vcvt.s32.f32 %v1015
    %v1048 = vcvt.s32.f32 %v1016
    %v1049 = vcvt.s32.f32 %v1017
    %v1050 = vcvt.s32.f32 %v1018
    %v1051 = vcvt.s32.f32 %v1019
    %v1052 = vcvt.s32.f32 %v1020
    %v1053 = vcvt.s32.f32 %v1021
    %v1054 = vcvt.s32.f32 %v1022
    %v1055 = vpack.c.bf16 %v1025, %v1023
    %v1056 = vpack.c.bf16 %v1026, %v1024
    %v1057 = vpack.c.bf16 %v1029, %v1027
    %v1058 = vpack.c.bf16 %v1030, %v1028
    %v1059 = vpack.c.bf16 %v1033, %v1031
    %v1060 = vpack.c.bf16 %v1034, %v1032
    %v1061 = vpack.c.bf16 %v1037, %v1035
    %v1062 = vpack.c.bf16 %v1038, %v1036
    %v1063 = vpack.c.bf16 %v1041, %v1039
    %v1064 = vpack.c.bf16 %v1042, %v1040
    %v1065 = vpack.c.bf16 %v1045, %v1043
    %v1066 = vpack.c.bf16 %v1046, %v1044
    %v1067 = vpack.c.bf16 %v1049, %v1047
    %v1068 = vpack.c.bf16 %v1050, %v1048
    %v1069 = vpack.c.bf16 %v1053, %v1051
    %v1070 = vpack.c.bf16 %v1054, %v1052
    %v1071 = vlaneseq
    %v1072 = vshrl.u32 %v1071, 7
    %v1073 = vsub.s32 0, %v1072
    %v1074 = vrot.slane %v723, %v1073
    %vm1075 = vcmp.eq.s32.totalorder %v935, %v1074
    %v1076 = vsel %vm1075, 1, 0
    %v1077 = vcvt.s32.f32 %v1076
    %v1078 = vpack.c.bf16 %v1077, %v1077
    %v1079 = vld [vmem:[#allocation14] sm:$0xf]
    %v1080 = vld [vmem:[#allocation14 + $0x4] sm:$0xf]
    %v1081 = vld [vmem:[#allocation14 + $0x8] sm:$0xf]
    %v1082 = vld [vmem:[#allocation14 + $0xc] sm:$0xf]
    %v1083 = vld [vmem:[#allocation16] sm:$0xf]
    %v1084 = vld [vmem:[#allocation16 + $0x4] sm:$0xf]
    %v1085 = vld [vmem:[#allocation16 + $0x8] sm:$0xf]
    %v1086 = vld [vmem:[#allocation16 + $0xc] sm:$0xf]
    %v1087 = vld [vmem:[#allocation16 + $0x10] sm:$0xf]
    %v1088 = vld [vmem:[#allocation16 + $0x14] sm:$0xf]
    %v1089 = vld [vmem:[#allocation16 + $0x18] sm:$0xf]
    %v1090 = vld [vmem:[#allocation16 + $0x1c] sm:$0xf]
    %v1091 = vld [vmem:[#allocation16 + $0x20] sm:$0xf]
    %v1092 = vld [vmem:[#allocation16 + $0x24] sm:$0xf]
    %v1093 = vld [vmem:[#allocation16 + $0x28] sm:$0xf]
    %v1094 = vld [vmem:[#allocation16 + $0x2c] sm:$0xf]
    %v1095 = vld [vmem:[#allocation16 + $0x30] sm:$0xf]
    %v1096 = vld [vmem:[#allocation16 + $0x34] sm:$0xf]
    %v1097 = vld [vmem:[#allocation16 + $0x38] sm:$0xf]
    %v1098 = vld [vmem:[#allocation16 + $0x3c] sm:$0xf]
    %v1099 = vpack.c.bf16 %v300, %v297
    %v1100 = vpack.c.bf16 %v308, %v305
    %v1101 = vpack.c.bf16 %v316, %v313
    %v1102 = vpack.c.bf16 %v324, %v321
    %v1103 = vpack.c.bf16 %v332, %v329
    %v1104 = vpack.c.bf16 %v340, %v337
    %v1105 = vpack.c.bf16 %v348, %v345
    %v1106 = vpack.c.bf16 %v356, %v353
    %1107 = vmatprep.subr.bf16.mxu0 0
    %1108 = vmatpush1.bf16.msra.mxu0 %v1099
    %1109 = vmatprep.subr.bf16.mxu0 0
    %1110 = vmatpush1.bf16.msra.mxu0 %v1100
    %1111 = vmatprep.subr.bf16.mxu0 0
    %1112 = vmatpush1.bf16.msra.mxu0 %v1101
    %1113 = vmatprep.subr.bf16.mxu0 0
    %1114 = vmatpush1.bf16.msra.mxu0 %v1102
    %1115 = vmatprep.subr.bf16.mxu0 0
    %1116 = vmatpush1.bf16.msra.mxu0 %v1103
    %1117 = vmatprep.subr.bf16.mxu0 0
    %1118 = vmatpush1.bf16.msra.mxu0 %v1104
    %1119 = vmatprep.subr.bf16.mxu0 0
    %1120 = vmatpush1.bf16.msra.mxu0 %v1105
    %1121 = vmatprep.subr.bf16.mxu0 0
    %1122 = vmatpush1.bf16.msra.mxu0 %v1106
    %1123 = vmatprep.subr.bf16.mxu0 0
    %1124 = vmatpush1.bf16.msra.mxu0 0
    %1125 = vmatprep.subr.bf16.mxu0 0
    %1126 = vmatpush1.bf16.msra.mxu0 0
    %1127 = vmatprep.subr.bf16.mxu0 0
    %1128 = vmatpush1.bf16.msra.mxu0 0
    %1129 = vmatprep.subr.bf16.mxu0 0
    %1130 = vmatpush1.bf16.msra.mxu0 0
    %1131 = vmatprep.subr.bf16.mxu0 0
    %1132 = vmatpush1.bf16.msra.mxu0 0
    %1133 = vmatprep.subr.bf16.mxu0 0
    %1134 = vmatpush1.bf16.msra.mxu0 0
    %1135 = vmatprep.subr.bf16.mxu0 0
    %1136 = vmatpush1.bf16.msra.mxu0 0
    %1137 = vmatprep.subr.bf16.mxu0 0
    %1138 = vmatpush1.bf16.msra.mxu0 0
    %1139 = vmatprep.mubr.bf16.mxu0 0
    %1140 = vmatmul.mubr.bf16.gmra.mrb[0].mxu0 %v918
    %v1141 = vpop.f32.mrb[0].mxu0
    %v1142 = vadd.f32 %v564, %v1141
    %v1143 = vpop.f32.mrb[0].mxu0
    %v1144 = vpop.f32.mrb[0].mxu0
    %v1145 = vadd.f32 %v567, %v1144
    %v1146 = vpop.f32.mrb[0].mxu0
    %1147 = vmatprep.mubr.bf16.mxu0 0
    %1148 = vmatmul.mubr.bf16.gmra.mrb[0].mxu0 %v919
    %v1149 = vpop.f32.mrb[0].mxu0
    %v1150 = vadd.f32 %v572, %v1149
    %v1151 = vpop.f32.mrb[0].mxu0
    %v1152 = vpop.f32.mrb[0].mxu0
    %v1153 = vadd.f32 %v575, %v1152
    %v1154 = vpop.f32.mrb[0].mxu0
    %1155 = vmatprep.mubr.bf16.mxu0 0
    %1156 = vmatmul.mubr.bf16.gmra.mrb[0].mxu0 %v920
    %v1157 = vpop.f32.mrb[0].mxu0
    %v1158 = vadd.f32 %v580, %v1157
    %v1159 = vpop.f32.mrb[0].mxu0
    %v1160 = vpop.f32.mrb[0].mxu0
    %v1161 = vadd.f32 %v583, %v1160
    %v1162 = vpop.f32.mrb[0].mxu0
    %1163 = vmatprep.mubr.bf16.mxu0 0
    %1164 = vmatmul.mubr.bf16.gmra.mrb[0].mxu0 %v921
    %v1165 = vpop.f32.mrb[0].mxu0
    %v1166 = vadd.f32 %v588, %v1165
    %v1167 = vpop.f32.mrb[0].mxu0
    %v1168 = vpop.f32.mrb[0].mxu0
    %v1169 = vadd.f32 %v591, %v1168
    %v1170 = vpop.f32.mrb[0].mxu0
    %1171 = vmatprep.mubr.bf16.mxu0 0
    %1172 = vmatmul.mubr.bf16.gmra.mrb[0].mxu0 %v922
    %v1173 = vpop.f32.mrb[0].mxu0
    %v1174 = vadd.f32 %v596, %v1173
    %v1175 = vpop.f32.mrb[0].mxu0
    %v1176 = vpop.f32.mrb[0].mxu0
    %v1177 = vadd.f32 %v599, %v1176
    %v1178 = vpop.f32.mrb[0].mxu0
    %1179 = vmatprep.mubr.bf16.mxu0 0
    %1180 = vmatmul.mubr.bf16.gmra.mrb[0].mxu0 %v923
    %v1181 = vpop.f32.mrb[0].mxu0
    %v1182 = vadd.f32 %v604, %v1181
    %v1183 = vpop.f32.mrb[0].mxu0
    %v1184 = vpop.f32.mrb[0].mxu0
    %v1185 = vadd.f32 %v607, %v1184
    %v1186 = vpop.f32.mrb[0].mxu0
    %1187 = vmatprep.mubr.bf16.mxu0 0
    %1188 = vmatmul.mubr.bf16.gmra.mrb[0].mxu0 %v924
    %v1189 = vpop.f32.mrb[0].mxu0
    %v1190 = vadd.f32 %v612, %v1189
    %v1191 = vpop.f32.mrb[0].mxu0
    %v1192 = vpop.f32.mrb[0].mxu0
    %v1193 = vadd.f32 %v615, %v1192
    %v1194 = vpop.f32.mrb[0].mxu0
    %1195 = vmatprep.mubr.bf16.mxu0 0
    %1196 = vmatmul.mubr.bf16.gmra.mrb[0].mxu0 %v925
    %v1197 = vpop.f32.mrb[0].mxu0
    %v1198 = vadd.f32 %v620, %v1197
    %v1199 = vpop.f32.mrb[0].mxu0
    %v1200 = vpop.f32.mrb[0].mxu0
    %v1201 = vadd.f32 %v623, %v1200
    %v1202 = vpop.f32.mrb[0].mxu0
    %1203 = vmatprep.mubr.bf16.mxu0 0
    %1204 = vmatmul.mubr.bf16.gmra.mrb[0].mxu0 %v926
    %v1205 = vpop.f32.mrb[0].mxu0
    %v1206 = vadd.f32 %v628, %v1205
    %v1207 = vpop.f32.mrb[0].mxu0
    %v1208 = vpop.f32.mrb[0].mxu0
    %v1209 = vadd.f32 %v631, %v1208
    %v1210 = vpop.f32.mrb[0].mxu0
    %1211 = vmatprep.mubr.bf16.mxu0 0
    %1212 = vmatmul.mubr.bf16.gmra.mrb[0].mxu0 %v927
    %v1213 = vpop.f32.mrb[0].mxu0
    %v1214 = vadd.f32 %v636, %v1213
    %v1215 = vpop.f32.mrb[0].mxu0
    %v1216 = vpop.f32.mrb[0].mxu0
    %v1217 = vadd.f32 %v639, %v1216
    %v1218 = vpop.f32.mrb[0].mxu0
    %1219 = vmatprep.mubr.bf16.mxu0 0
    %1220 = vmatmul.mubr.bf16.gmra.mrb[0].mxu0 %v928
    %v1221 = vpop.f32.mrb[0].mxu0
    %v1222 = vadd.f32 %v644, %v1221
    %v1223 = vpop.f32.mrb[0].mxu0
    %v1224 = vpop.f32.mrb[0].mxu0
    %v1225 = vadd.f32 %v647, %v1224
    %v1226 = vpop.f32.mrb[0].mxu0
    %1227 = vmatprep.mubr.bf16.mxu0 0
    %1228 = vmatmul.mubr.bf16.gmra.mrb[0].mxu0 %v929
    %v1229 = vpop.f32.mrb[0].mxu0
    %v1230 = vadd.f32 %v652, %v1229
    %v1231 = vpop.f32.mrb[0].mxu0
    %v1232 = vpop.f32.mrb[0].mxu0
    %v1233 = vadd.f32 %v655, %v1232
    %v1234 = vpop.f32.mrb[0].mxu0
    %1235 = vmatprep.mubr.bf16.mxu0 0
    %1236 = vmatmul.mubr.bf16.gmra.mrb[0].mxu0 %v930
    %v1237 = vpop.f32.mrb[0].mxu0
    %v1238 = vadd.f32 %v660, %v1237
    %v1239 = vpop.f32.mrb[0].mxu0
    %v1240 = vpop.f32.mrb[0].mxu0
    %v1241 = vadd.f32 %v663, %v1240
    %v1242 = vpop.f32.mrb[0].mxu0
    %1243 = vmatprep.mubr.bf16.mxu0 0
    %1244 = vmatmul.mubr.bf16.gmra.mrb[0].mxu0 %v931
    %v1245 = vpop.f32.mrb[0].mxu0
    %v1246 = vadd.f32 %v668, %v1245
    %v1247 = vpop.f32.mrb[0].mxu0
    %v1248 = vpop.f32.mrb[0].mxu0
    %v1249 = vadd.f32 %v671, %v1248
    %v1250 = vpop.f32.mrb[0].mxu0
    %1251 = vmatprep.mubr.bf16.mxu0 0
    %1252 = vmatmul.mubr.bf16.gmra.mrb[0].mxu0 %v932
    %v1253 = vpop.f32.mrb[0].mxu0
    %v1254 = vadd.f32 %v676, %v1253
    %v1255 = vpop.f32.mrb[0].mxu0
    %v1256 = vpop.f32.mrb[0].mxu0
    %v1257 = vadd.f32 %v679, %v1256
    %v1258 = vpop.f32.mrb[0].mxu0
    %1259 = vmatprep.mubr.bf16.mxu0 0
    %1260 = vmatmul.mubr.bf16.gmra.mrb[0].mxu0 %v933
    %v1261 = vpop.f32.mrb[0].mxu0
    %v1262 = vadd.f32 %v684, %v1261
    %v1263 = vpop.f32.mrb[0].mxu0
    %v1264 = vpop.f32.mrb[0].mxu0
    %v1265 = vadd.f32 %v687, %v1264
    %v1266 = vpop.f32.mrb[0].mxu0
    %1267 = vdwg.mxu0
    %v1268 = vmax.f32 %v1142, 0.0
    %v1269 = vmax.f32 %v1145, 0.0
    %v1270 = vmax.f32 %v1150, 0.0
    %v1271 = vmax.f32 %v1153, 0.0
    %v1272 = vmax.f32 %v1158, 0.0
    %v1273 = vmax.f32 %v1161, 0.0
    %v1274 = vmax.f32 %v1166, 0.0
    %v1275 = vmax.f32 %v1169, 0.0
    %v1276 = vmax.f32 %v1174, 0.0
    %v1277 = vmax.f32 %v1177, 0.0
    %v1278 = vmax.f32 %v1182, 0.0
    %v1279 = vmax.f32 %v1185, 0.0
    %v1280 = vmax.f32 %v1190, 0.0
    %v1281 = vmax.f32 %v1193, 0.0
    %v1282 = vmax.f32 %v1198, 0.0
    %v1283 = vmax.f32 %v1201, 0.0
    %v1284 = vmax.f32 %v1206, 0.0
    %v1285 = vmax.f32 %v1209, 0.0
    %v1286 = vmax.f32 %v1214, 0.0
    %v1287 = vmax.f32 %v1217, 0.0
    %v1288 = vmax.f32 %v1222, 0.0
    %v1289 = vmax.f32 %v1225, 0.0
    %v1290 = vmax.f32 %v1230, 0.0
    %v1291 = vmax.f32 %v1233, 0.0
    %v1292 = vmax.f32 %v1238, 0.0
    %v1293 = vmax.f32 %v1241, 0.0
    %v1294 = vmax.f32 %v1246, 0.0
    %v1295 = vmax.f32 %v1249, 0.0
    %v1296 = vmax.f32 %v1254, 0.0
    %v1297 = vmax.f32 %v1257, 0.0
    %v1298 = vmax.f32 %v1262, 0.0
    %v1299 = vmax.f32 %v1265, 0.0
    %v1300 = vpack.c.bf16 %v1269, %v1268
    %v1301 = vpack.c.bf16 %v1271, %v1270
    %v1302 = vpack.c.bf16 %v1273, %v1272
    %v1303 = vpack.c.bf16 %v1275, %v1274
    %v1304 = vpack.c.bf16 %v1277, %v1276
    %v1305 = vpack.c.bf16 %v1279, %v1278
    %v1306 = vpack.c.bf16 %v1281, %v1280
    %v1307 = vpack.c.bf16 %v1283, %v1282
    %v1308 = vpack.c.bf16 %v1285, %v1284
    %v1309 = vpack.c.bf16 %v1287, %v1286
    %v1310 = vpack.c.bf16 %v1289, %v1288
    %v1311 = vpack.c.bf16 %v1291, %v1290
    %v1312 = vpack.c.bf16 %v1293, %v1292
    %v1313 = vpack.c.bf16 %v1295, %v1294
    %v1314 = vpack.c.bf16 %v1297, %v1296
    %v1315 = vpack.c.bf16 %v1299, %v1298
    %1316 = vmatprep.subr.bf16.mxu0 0
    %1317 = vmatpush1.bf16.msra.mxu0 %v1300
    %1318 = vmatprep.subr.bf16.mxu0 0
    %1319 = vmatpush1.bf16.msra.mxu0 %v1301
    %1320 = vmatprep.subr.bf16.mxu0 0
    %1321 = vmatpush1.bf16.msra.mxu0 %v1302
    %1322 = vmatprep.subr.bf16.mxu0 0
    %1323 = vmatpush1.bf16.msra.mxu0 %v1303
    %1324 = vmatprep.subr.bf16.mxu0 0
    %1325 = vmatpush1.bf16.msra.mxu0 %v1304
    %1326 = vmatprep.subr.bf16.mxu0 0
    %1327 = vmatpush1.bf16.msra.mxu0 %v1305
    %1328 = vmatprep.subr.bf16.mxu0 0
    %1329 = vmatpush1.bf16.msra.mxu0 %v1306
    %1330 = vmatprep.subr.bf16.mxu0 0
    %1331 = vmatpush1.bf16.msra.mxu0 %v1307
    %1332 = vmatprep.subr.bf16.mxu0 0
    %1333 = vmatpush1.bf16.msra.mxu0 %v1308
    %1334 = vmatprep.subr.bf16.mxu0 0
    %1335 = vmatpush1.bf16.msra.mxu0 %v1309
    %1336 = vmatprep.subr.bf16.mxu0 0
    %1337 = vmatpush1.bf16.msra.mxu0 %v1310
    %1338 = vmatprep.subr.bf16.mxu0 0
    %1339 = vmatpush1.bf16.msra.mxu0 %v1311
    %1340 = vmatprep.subr.bf16.mxu0 0
    %1341 = vmatpush1.bf16.msra.mxu0 %v1312
    %1342 = vmatprep.subr.bf16.mxu0 0
    %1343 = vmatpush1.bf16.msra.mxu0 %v1313
    %1344 = vmatprep.subr.bf16.mxu0 0
    %1345 = vmatpush1.bf16.msra.mxu0 %v1314
    %1346 = vmatprep.subr.bf16.mxu0 0
    %1347 = vmatpush1.bf16.msra.mxu0 %v1315
    %1348 = vmatprep.mubr.bf16.mxu0 %v1056
    %1349 = vmatmul.mubr.bf16.gmra.mrb[0].mxu0 %v1055
    %v1350 = vpop.f32.mrb[0].mxu0
    %v1351 = vadd.f32 0.0, %v1350
    %v1352 = vpop.f32.mrb[0].mxu0
    %v1353 = vpop.f32.mrb[0].mxu0
    %v1354 = vadd.f32 0.0, %v1353
    %v1355 = vpop.f32.mrb[0].mxu0
    %1356 = vmatprep.mubr.bf16.mxu0 %v1058
    %1357 = vmatmul.mubr.bf16.gmra.mrb[0].mxu0 %v1057
    %v1358 = vpop.f32.mrb[0].mxu0
    %v1359 = vadd.f32 0.0, %v1358
    %v1360 = vpop.f32.mrb[0].mxu0
    %v1361 = vpop.f32.mrb[0].mxu0
    %v1362 = vadd.f32 0.0, %v1361
    %v1363 = vpop.f32.mrb[0].mxu0
    %1364 = vmatprep.mubr.bf16.mxu0 %v1060
    %1365 = vmatmul.mubr.bf16.gmra.mrb[0].mxu0 %v1059
    %v1366 = vpop.f32.mrb[0].mxu0
    %v1367 = vadd.f32 0.0, %v1366
    %v1368 = vpop.f32.mrb[0].mxu0
    %v1369 = vpop.f32.mrb[0].mxu0
    %v1370 = vadd.f32 0.0, %v1369
    %v1371 = vpop.f32.mrb[0].mxu0
    %1372 = vmatprep.mubr.bf16.mxu0 %v1062
    %1373 = vmatmul.mubr.bf16.gmra.mrb[0].mxu0 %v1061
    %v1374 = vpop.f32.mrb[0].mxu0
    %v1375 = vadd.f32 0.0, %v1374
    %v1376 = vpop.f32.mrb[0].mxu0
    %v1377 = vpop.f32.mrb[0].mxu0
    %v1378 = vadd.f32 0.0, %v1377
    %v1379 = vpop.f32.mrb[0].mxu0
    %1380 = vmatprep.mubr.bf16.mxu0 %v1064
    %1381 = vmatmul.mubr.bf16.gmra.mrb[0].mxu0 %v1063
    %v1382 = vpop.f32.mrb[0].mxu0
    %v1383 = vadd.f32 0.0, %v1382
    %v1384 = vpop.f32.mrb[0].mxu0
    %v1385 = vpop.f32.mrb[0].mxu0
    %v1386 = vadd.f32 0.0, %v1385
    %v1387 = vpop.f32.mrb[0].mxu0
    %1388 = vmatprep.mubr.bf16.mxu0 %v1066
    %1389 = vmatmul.mubr.bf16.gmra.mrb[0].mxu0 %v1065
    %v1390 = vpop.f32.mrb[0].mxu0
    %v1391 = vadd.f32 0.0, %v1390
    %v1392 = vpop.f32.mrb[0].mxu0
    %v1393 = vpop.f32.mrb[0].mxu0
    %v1394 = vadd.f32 0.0, %v1393
    %v1395 = vpop.f32.mrb[0].mxu0
    %1396 = vmatprep.mubr.bf16.mxu0 %v1068
    %1397 = vmatmul.mubr.bf16.gmra.mrb[0].mxu0 %v1067
    %v1398 = vpop.f32.mrb[0].mxu0
    %v1399 = vadd.f32 0.0, %v1398
    %v1400 = vpop.f32.mrb[0].mxu0
    %v1401 = vpop.f32.mrb[0].mxu0
    %v1402 = vadd.f32 0.0, %v1401
    %v1403 = vpop.f32.mrb[0].mxu0
    %1404 = vmatprep.mubr.bf16.mxu0 %v1070
    %1405 = vmatmul.mubr.bf16.gmra.mrb[0].mxu0 %v1069
    %v1406 = vpop.f32.mrb[0].mxu0
    %v1407 = vadd.f32 0.0, %v1406
    %v1408 = vpop.f32.mrb[0].mxu0
    %v1409 = vpop.f32.mrb[0].mxu0
    %v1410 = vadd.f32 0.0, %v1409
    %v1411 = vpop.f32.mrb[0].mxu0
    %1412 = vdwg.mxu0
    %v1413 = vadd.f32 %v297, %v1351
    %v1414 = vadd.f32 %v300, %v1354
    %v1415 = vadd.f32 %v305, %v1359
    %v1416 = vadd.f32 %v308, %v1362
    %v1417 = vadd.f32 %v313, %v1367
    %v1418 = vadd.f32 %v316, %v1370
    %v1419 = vadd.f32 %v321, %v1375
    %v1420 = vadd.f32 %v324, %v1378
    %v1421 = vadd.f32 %v329, %v1383
    %v1422 = vadd.f32 %v332, %v1386
    %v1423 = vadd.f32 %v337, %v1391
    %v1424 = vadd.f32 %v340, %v1394
    %v1425 = vadd.f32 %v345, %v1399
    %v1426 = vadd.f32 %v348, %v1402
    %v1427 = vadd.f32 %v353, %v1407
    %v1428 = vadd.f32 %v356, %v1410
    %v1429 = vpack.c.bf16 %v1414, %v1413
    %v1430 = vpack.c.bf16 %v1416, %v1415
    %v1431 = vpack.c.bf16 %v1418, %v1417
    %v1432 = vpack.c.bf16 %v1420, %v1419
    %v1433 = vpack.c.bf16 %v1422, %v1421
    %v1434 = vpack.c.bf16 %v1424, %v1423
    %v1435 = vpack.c.bf16 %v1426, %v1425
    %v1436 = vpack.c.bf16 %v1428, %v1427
    %v1437 = vlaneseq
    %v1438 = vshrl.u32 %v1437, 7
    %v1439 = vsub.s32 2, %v1438
    %v1440 = vrot.slane %v167, %v1439
    %v1445 = vunpack.c.l.b16 %v1079
    %v1446 = vunpack.c.l.b16 %v1080
    %v1447 = vunpack.c.l.b16 %v1081
    %v1448 = vunpack.c.l.b16 %v1082
    %v1449 = vpack.c.b16 %v1446, %v1445
    %v1450 = vpack.c.b16 %v1448, %v1447
    %vm1453 = vcmask 261120
    %v1455 = vsel %vm1453, %v1429, 0
    %v1458 = vsel %vm1453, %v1430, 0
    %v1461 = vsel %vm1453, %v1431, 0
    %v1464 = vsel %vm1453, %v1432, 0
    %v1467 = vsel %vm1453, %v1433, 0
    %v1470 = vsel %vm1453, %v1434, 0
    %v1473 = vsel %vm1453, %v1435, 0
    %v1476 = vsel %vm1453, %v1436, 0
    %1478 = vmatprep.subr.bf16.mxu0 0
    %1479 = vmatpush1.bf16.msra.mxu0 %v1449
    %1480 = vmatprep.subr.bf16.mxu0 0
    %1481 = vmatpush1.bf16.msra.mxu0 %v1450
    %1482 = vmatprep.subr.bf16.mxu0 0
    %1483 = vmatpush1.bf16.msra.mxu0 0
    %1484 = vmatprep.subr.bf16.mxu0 0
    %1485 = vmatpush1.bf16.msra.mxu0 0
    %1486 = vmatprep.subr.bf16.mxu0 0
    %1487 = vmatpush1.bf16.msra.mxu0 0
    %1488 = vmatprep.subr.bf16.mxu0 0
    %1489 = vmatpush1.bf16.msra.mxu0 0
    %1490 = vmatprep.subr.bf16.mxu0 0
    %1491 = vmatpush1.bf16.msra.mxu0 0
    %1492 = vmatprep.subr.bf16.mxu0 0
    %1493 = vmatpush1.bf16.msra.mxu0 0
    %1494 = vmatprep.subr.bf16.mxu0 0
    %1495 = vmatpush1.bf16.msra.mxu0 0
    %1496 = vmatprep.subr.bf16.mxu0 0
    %1497 = vmatpush1.bf16.msra.mxu0 0
    %1498 = vmatprep.subr.bf16.mxu0 0
    %1499 = vmatpush1.bf16.msra.mxu0 0
    %1500 = vmatprep.subr.bf16.mxu0 0
    %1501 = vmatpush1.bf16.msra.mxu0 0
    %1502 = vmatprep.subr.bf16.mxu0 0
    %1503 = vmatpush1.bf16.msra.mxu0 0
    %1504 = vmatprep.subr.bf16.mxu0 0
    %1505 = vmatpush1.bf16.msra.mxu0 0
    %1506 = vmatprep.subr.bf16.mxu0 0
    %1507 = vmatpush1.bf16.msra.mxu0 0
    %1508 = vmatprep.subr.bf16.mxu0 0
    %1509 = vmatpush1.bf16.msra.mxu0 0
    %1510 = vmatprep.mubr.bf16.mxu0 0
    %1511 = vmatmul.mubr.bf16.gmra.mrb[0].mxu0 %v1455
    %v1512 = vpop.f32.mrb[0].mxu0
    %v1513 = vadd.f32 %v1440, %v1512
    %v1514 = vpop.f32.mrb[0].mxu0
    %v1515 = vpop.f32.mrb[0].mxu0
    %v1516 = vadd.f32 %v1440, %v1515
    %v1517 = vpop.f32.mrb[0].mxu0
    %1518 = vmatprep.mubr.bf16.mxu0 0
    %1519 = vmatmul.mubr.bf16.gmra.mrb[0].mxu0 %v1458
    %v1520 = vpop.f32.mrb[0].mxu0
    %v1521 = vadd.f32 %v1440, %v1520
    %v1522 = vpop.f32.mrb[0].mxu0
    %v1523 = vpop.f32.mrb[0].mxu0
    %v1524 = vadd.f32 %v1440, %v1523
    %v1525 = vpop.f32.mrb[0].mxu0
    %1526 = vmatprep.mubr.bf16.mxu0 0
    %1527 = vmatmul.mubr.bf16.gmra.mrb[0].mxu0 %v1461
    %v1528 = vpop.f32.mrb[0].mxu0
    %v1529 = vadd.f32 %v1440, %v1528
    %v1530 = vpop.f32.mrb[0].mxu0
    %v1531 = vpop.f32.mrb[0].mxu0
    %v1532 = vadd.f32 %v1440, %v1531
    %v1533 = vpop.f32.mrb[0].mxu0
    %1534 = vmatprep.mubr.bf16.mxu0 0
    %1535 = vmatmul.mubr.bf16.gmra.mrb[0].mxu0 %v1464
    %v1536 = vpop.f32.mrb[0].mxu0
    %v1537 = vadd.f32 %v1440, %v1536
    %v1538 = vpop.f32.mrb[0].mxu0
    %v1539 = vpop.f32.mrb[0].mxu0
    %v1540 = vadd.f32 %v1440, %v1539
    %v1541 = vpop.f32.mrb[0].mxu0
    %1542 = vmatprep.mubr.bf16.mxu0 0
    %1543 = vmatmul.mubr.bf16.gmra.mrb[0].mxu0 %v1467
    %v1544 = vpop.f32.mrb[0].mxu0
    %v1545 = vadd.f32 %v1440, %v1544
    %v1546 = vpop.f32.mrb[0].mxu0
    %v1547 = vpop.f32.mrb[0].mxu0
    %v1548 = vadd.f32 %v1440, %v1547
    %v1549 = vpop.f32.mrb[0].mxu0
    %1550 = vmatprep.mubr.bf16.mxu0 0
    %1551 = vmatmul.mubr.bf16.gmra.mrb[0].mxu0 %v1470
    %v1552 = vpop.f32.mrb[0].mxu0
    %v1553 = vadd.f32 %v1440, %v1552
    %v1554 = vpop.f32.mrb[0].mxu0
    %v1555 = vpop.f32.mrb[0].mxu0
    %v1556 = vadd.f32 %v1440, %v1555
    %v1557 = vpop.f32.mrb[0].mxu0
    %1558 = vmatprep.mubr.bf16.mxu0 0
    %1559 = vmatmul.mubr.bf16.gmra.mrb[0].mxu0 %v1473
    %v1560 = vpop.f32.mrb[0].mxu0
    %v1561 = vadd.f32 %v1440, %v1560
    %v1562 = vpop.f32.mrb[0].mxu0
    %v1563 = vpop.f32.mrb[0].mxu0
    %v1564 = vadd.f32 %v1440, %v1563
    %v1565 = vpop.f32.mrb[0].mxu0
    %1566 = vmatprep.mubr.bf16.mxu0 0
    %1567 = vmatmul.mubr.bf16.gmra.mrb[0].mxu0 %v1476
    %v1568 = vpop.f32.mrb[0].mxu0
    %v1569 = vadd.f32 %v1440, %v1568
    %v1570 = vpop.f32.mrb[0].mxu0
    %v1571 = vpop.f32.mrb[0].mxu0
    %v1572 = vadd.f32 %v1440, %v1571
    %v1573 = vpop.f32.mrb[0].mxu0
    %1574 = vdwg.mxu0
    %v1575 = vmax.f32 %v1513, 0.0
    %v1576 = vmax.f32 %v1516, 0.0
    %v1577 = vmax.f32 %v1521, 0.0
    %v1578 = vmax.f32 %v1524, 0.0
    %v1579 = vmax.f32 %v1529, 0.0
    %v1580 = vmax.f32 %v1532, 0.0
    %v1581 = vmax.f32 %v1537, 0.0
    %v1582 = vmax.f32 %v1540, 0.0
    %v1583 = vmax.f32 %v1545, 0.0
    %v1584 = vmax.f32 %v1548, 0.0
    %v1585 = vmax.f32 %v1553, 0.0
    %v1586 = vmax.f32 %v1556, 0.0
    %v1587 = vmax.f32 %v1561, 0.0
    %v1588 = vmax.f32 %v1564, 0.0
    %v1589 = vmax.f32 %v1569, 0.0
    %v1590 = vmax.f32 %v1572, 0.0
    %v1591 = vpack.c.bf16 %v1576, %v1575
    %v1592 = vpack.c.bf16 %v1578, %v1577
    %v1593 = vpack.c.bf16 %v1580, %v1579
    %v1594 = vpack.c.bf16 %v1582, %v1581
    %v1595 = vpack.c.bf16 %v1584, %v1583
    %v1596 = vpack.c.bf16 %v1586, %v1585
    %v1597 = vpack.c.bf16 %v1588, %v1587
    %v1598 = vpack.c.bf16 %v1590, %v1589
    %v1599 = vlaneseq
    %v1600 = vshrl.u32 %v1599, 7
    %v1601 = vsub.s32 3, %v1600
    %v1602 = vrot.slane %v167, %v1601
    %v1619 = vunpack.c.l.b16 %v1083
    %v1620 = vunpack.c.l.b16 %v1084
    %v1621 = vunpack.c.l.b16 %v1085
    %v1622 = vunpack.c.l.b16 %v1086
    %v1623 = vunpack.c.l.b16 %v1087
    %v1624 = vunpack.c.l.b16 %v1088
    %v1625 = vunpack.c.l.b16 %v1089
    %v1626 = vunpack.c.l.b16 %v1090
    %v1627 = vunpack.c.l.b16 %v1091
    %v1628 = vunpack.c.l.b16 %v1092
    %v1629 = vunpack.c.l.b16 %v1093
    %v1630 = vunpack.c.l.b16 %v1094
    %v1631 = vunpack.c.l.b16 %v1095
    %v1632 = vunpack.c.l.b16 %v1096
    %v1633 = vunpack.c.l.b16 %v1097
    %v1634 = vunpack.c.l.b16 %v1098
    %v1635 = vpack.c.b16 %v1620, %v1619
    %v1636 = vpack.c.b16 %v1622, %v1621
    %v1637 = vpack.c.b16 %v1624, %v1623
    %v1638 = vpack.c.b16 %v1626, %v1625
    %v1639 = vpack.c.b16 %v1628, %v1627
    %v1640 = vpack.c.b16 %v1630, %v1629
    %v1641 = vpack.c.b16 %v1632, %v1631
    %v1642 = vpack.c.b16 %v1634, %v1633
    %1651 = vmatprep.subr.bf16.mxu0 0
    %1652 = vmatpush1.bf16.msra.mxu0 %v1635
    %1653 = vmatprep.subr.bf16.mxu0 0
    %1654 = vmatpush1.bf16.msra.mxu0 %v1636
    %1655 = vmatprep.subr.bf16.mxu0 0
    %1656 = vmatpush1.bf16.msra.mxu0 %v1637
    %1657 = vmatprep.subr.bf16.mxu0 0
    %1658 = vmatpush1.bf16.msra.mxu0 %v1638
    %1659 = vmatprep.subr.bf16.mxu0 0
    %1660 = vmatpush1.bf16.msra.mxu0 %v1639
    %1661 = vmatprep.subr.bf16.mxu0 0
    %1662 = vmatpush1.bf16.msra.mxu0 %v1640
    %1663 = vmatprep.subr.bf16.mxu0 0
    %1664 = vmatpush1.bf16.msra.mxu0 %v1641
    %1665 = vmatprep.subr.bf16.mxu0 0
    %1666 = vmatpush1.bf16.msra.mxu0 %v1642
    %1667 = vmatprep.subr.bf16.mxu0 0
    %1668 = vmatpush1.bf16.msra.mxu0 0
    %1669 = vmatprep.subr.bf16.mxu0 0
    %1670 = vmatpush1.bf16.msra.mxu0 0
    %1671 = vmatprep.subr.bf16.mxu0 0
    %1672 = vmatpush1.bf16.msra.mxu0 0
    %1673 = vmatprep.subr.bf16.mxu0 0
    %1674 = vmatpush1.bf16.msra.mxu0 0
    %1675 = vmatprep.subr.bf16.mxu0 0
    %1676 = vmatpush1.bf16.msra.mxu0 0
    %1677 = vmatprep.subr.bf16.mxu0 0
    %1678 = vmatpush1.bf16.msra.mxu0 0
    %1679 = vmatprep.subr.bf16.mxu0 0
    %1680 = vmatpush1.bf16.msra.mxu0 0
    %1681 = vmatprep.subr.bf16.mxu0 0
    %1682 = vmatpush1.bf16.msra.mxu0 0
    %1683 = vmatprep.mubr.bf16.mxu0 0
    %1684 = vmatmul.mubr.bf16.gmra.mrb[0].mxu0 %v1591
    %v1685 = vpop.f32.mrb[0].mxu0
    %v1686 = vadd.f32 %v1602, %v1685
    %v1687 = vpop.f32.mrb[0].mxu0
    %v1688 = vpop.f32.mrb[0].mxu0
    %v1689 = vadd.f32 %v1602, %v1688
    %v1690 = vpop.f32.mrb[0].mxu0
    %1691 = vmatprep.mubr.bf16.mxu0 0
    %1692 = vmatmul.mubr.bf16.gmra.mrb[0].mxu0 %v1592
    %v1693 = vpop.f32.mrb[0].mxu0
    %v1694 = vadd.f32 %v1602, %v1693
    %v1695 = vpop.f32.mrb[0].mxu0
    %v1696 = vpop.f32.mrb[0].mxu0
    %v1697 = vadd.f32 %v1602, %v1696
    %v1698 = vpop.f32.mrb[0].mxu0
    %1699 = vmatprep.mubr.bf16.mxu0 0
    %1700 = vmatmul.mubr.bf16.gmra.mrb[0].mxu0 %v1593
    %v1701 = vpop.f32.mrb[0].mxu0
    %v1702 = vadd.f32 %v1602, %v1701
    %v1703 = vpop.f32.mrb[0].mxu0
    %v1704 = vpop.f32.mrb[0].mxu0
    %v1705 = vadd.f32 %v1602, %v1704
    %v1706 = vpop.f32.mrb[0].mxu0
    %1707 = vmatprep.mubr.bf16.mxu0 0
    %1708 = vmatmul.mubr.bf16.gmra.mrb[0].mxu0 %v1594
    %v1709 = vpop.f32.mrb[0].mxu0
    %v1710 = vadd.f32 %v1602, %v1709
    %v1711 = vpop.f32.mrb[0].mxu0
    %v1712 = vpop.f32.mrb[0].mxu0
    %v1713 = vadd.f32 %v1602, %v1712
    %v1714 = vpop.f32.mrb[0].mxu0
    %1715 = vmatprep.mubr.bf16.mxu0 0
    %1716 = vmatmul.mubr.bf16.gmra.mrb[0].mxu0 %v1595
    %v1717 = vpop.f32.mrb[0].mxu0
    %v1718 = vadd.f32 %v1602, %v1717
    %v1719 = vpop.f32.mrb[0].mxu0
    %v1720 = vpop.f32.mrb[0].mxu0
    %v1721 = vadd.f32 %v1602, %v1720
    %v1722 = vpop.f32.mrb[0].mxu0
    %1723 = vmatprep.mubr.bf16.mxu0 0
    %1724 = vmatmul.mubr.bf16.gmra.mrb[0].mxu0 %v1596
    %v1725 = vpop.f32.mrb[0].mxu0
    %v1726 = vadd.f32 %v1602, %v1725
    %v1727 = vpop.f32.mrb[0].mxu0
    %v1728 = vpop.f32.mrb[0].mxu0
    %v1729 = vadd.f32 %v1602, %v1728
    %v1730 = vpop.f32.mrb[0].mxu0
    %1731 = vmatprep.mubr.bf16.mxu0 0
    %1732 = vmatmul.mubr.bf16.gmra.mrb[0].mxu0 %v1597
    %v1733 = vpop.f32.mrb[0].mxu0
    %v1734 = vadd.f32 %v1602, %v1733
    %v1735 = vpop.f32.mrb[0].mxu0
    %v1736 = vpop.f32.mrb[0].mxu0
    %v1737 = vadd.f32 %v1602, %v1736
    %v1738 = vpop.f32.mrb[0].mxu0
    %1739 = vmatprep.mubr.bf16.mxu0 0
    %1740 = vmatmul.mubr.bf16.gmra.mrb[0].mxu0 %v1598
    %v1741 = vpop.f32.mrb[0].mxu0
    %v1742 = vadd.f32 %v1602, %v1741
    %v1743 = vpop.f32.mrb[0].mxu0
    %v1744 = vpop.f32.mrb[0].mxu0
    %v1745 = vadd.f32 %v1602, %v1744
    %v1746 = vpop.f32.mrb[0].mxu0
    %1747 = vdwg.mxu0
    %v1748 = vsel %vm1453, %v1686, 0.0
    %v1749 = vsel %vm1453, %v1689, 0.0
    %v1750 = vadd.f32 %v1748, %v1749
    %v1751 = vsel %vm1453, %v1694, 0.0
    %v1752 = vadd.f32 %v1750, %v1751
    %v1753 = vsel %vm1453, %v1697, 0.0
    %v1754 = vadd.f32 %v1752, %v1753
    %v1755 = vsel %vm1453, %v1702, 0.0
    %v1756 = vadd.f32 %v1754, %v1755
    %v1757 = vsel %vm1453, %v1705, 0.0
    %v1758 = vadd.f32 %v1756, %v1757
    %v1759 = vsel %vm1453, %v1710, 0.0
    %v1760 = vadd.f32 %v1758, %v1759
    %v1761 = vsel %vm1453, %v1713, 0.0
    %v1762 = vadd.f32 %v1760, %v1761
    %v1763 = vsel %vm1453, %v1718, 0.0
    %v1764 = vadd.f32 %v1762, %v1763
    %v1765 = vsel %vm1453, %v1721, 0.0
    %v1766 = vadd.f32 %v1764, %v1765
    %v1767 = vsel %vm1453, %v1726, 0.0
    %v1768 = vadd.f32 %v1766, %v1767
    %v1769 = vsel %vm1453, %v1729, 0.0
    %v1770 = vadd.f32 %v1768, %v1769
    %v1771 = vsel %vm1453, %v1734, 0.0
    %v1772 = vadd.f32 %v1770, %v1771
    %v1773 = vsel %vm1453, %v1737, 0.0
    %v1774 = vadd.f32 %v1772, %v1773
    %v1775 = vsel %vm1453, %v1742, 0.0
    %v1776 = vadd.f32 %v1774, %v1775
    %v1777 = vsel %vm1453, %v1745, 0.0
    %v1778 = vadd.f32 %v1776, %v1777
    %v1779 = vrot.slane %v1778, 4
    %v1780 = vadd.f32 %v1778, %v1779
    %v1781 = vrot.slane %v1780, 2
    %v1782 = vadd.f32 %v1780, %v1781
    %v1783 = vrot.slane %v1782, 1
    %v1784 = vadd.f32 %v1782, %v1783
    %v1785 = vrcp.pop 128.0
    %v1786 = vmul.f32 %v1784, %v1785
    %v1787 = vsub.f32 %v1686, %v1786
    %v1788 = vsub.f32 %v1689, %v1786
    %v1789 = vsub.f32 %v1694, %v1786
    %v1790 = vsub.f32 %v1697, %v1786
    %v1791 = vsub.f32 %v1702, %v1786
    %v1792 = vsub.f32 %v1705, %v1786
    %v1793 = vsub.f32 %v1710, %v1786
    %v1794 = vsub.f32 %v1713, %v1786
    %v1795 = vsub.f32 %v1718, %v1786
    %v1796 = vsub.f32 %v1721, %v1786
    %v1797 = vsub.f32 %v1726, %v1786
    %v1798 = vsub.f32 %v1729, %v1786
    %v1799 = vsub.f32 %v1734, %v1786
    %v1800 = vsub.f32 %v1737, %v1786
    %v1801 = vsub.f32 %v1742, %v1786
    %v1802 = vsub.f32 %v1745, %v1786
    %v1803 = vmul.f32 %v1787, %v1787
    %v1804 = vmul.f32 %v1788, %v1788
    %v1805 = vmul.f32 %v1789, %v1789
    %v1806 = vmul.f32 %v1790, %v1790
    %v1807 = vmul.f32 %v1791, %v1791
    %v1808 = vmul.f32 %v1792, %v1792
    %v1809 = vmul.f32 %v1793, %v1793
    %v1810 = vmul.f32 %v1794, %v1794
    %v1811 = vmul.f32 %v1795, %v1795
    %v1812 = vmul.f32 %v1796, %v1796
    %v1813 = vmul.f32 %v1797, %v1797
    %v1814 = vmul.f32 %v1798, %v1798
    %v1815 = vmul.f32 %v1799, %v1799
    %v1816 = vmul.f32 %v1800, %v1800
    %v1817 = vmul.f32 %v1801, %v1801
    %v1818 = vmul.f32 %v1802, %v1802
    %v1819 = vsel %vm1453, %v1803, 0.0
    %v1820 = vsel %vm1453, %v1804, 0.0
    %v1821 = vadd.f32 %v1819, %v1820
    %v1822 = vsel %vm1453, %v1805, 0.0
    %v1823 = vadd.f32 %v1821, %v1822
    %v1824 = vsel %vm1453, %v1806, 0.0
    %v1825 = vadd.f32 %v1823, %v1824
    %v1826 = vsel %vm1453, %v1807, 0.0
    %v1827 = vadd.f32 %v1825, %v1826
    %v1828 = vsel %vm1453, %v1808, 0.0
    %v1829 = vadd.f32 %v1827, %v1828
    %v1830 = vsel %vm1453, %v1809, 0.0
    %v1831 = vadd.f32 %v1829, %v1830
    %v1832 = vsel %vm1453, %v1810, 0.0
    %v1833 = vadd.f32 %v1831, %v1832
    %v1834 = vsel %vm1453, %v1811, 0.0
    %v1835 = vadd.f32 %v1833, %v1834
    %v1836 = vsel %vm1453, %v1812, 0.0
    %v1837 = vadd.f32 %v1835, %v1836
    %v1838 = vsel %vm1453, %v1813, 0.0
    %v1839 = vadd.f32 %v1837, %v1838
    %v1840 = vsel %vm1453, %v1814, 0.0
    %v1841 = vadd.f32 %v1839, %v1840
    %v1842 = vsel %vm1453, %v1815, 0.0
    %v1843 = vadd.f32 %v1841, %v1842
    %v1844 = vsel %vm1453, %v1816, 0.0
    %v1845 = vadd.f32 %v1843, %v1844
    %v1846 = vsel %vm1453, %v1817, 0.0
    %v1847 = vadd.f32 %v1845, %v1846
    %v1848 = vsel %vm1453, %v1818, 0.0
    %v1849 = vadd.f32 %v1847, %v1848
    %v1850 = vrot.slane %v1849, 4
    %v1851 = vadd.f32 %v1849, %v1850
    %v1852 = vrot.slane %v1851, 2
    %v1853 = vadd.f32 %v1851, %v1852
    %v1854 = vrot.slane %v1853, 1
    %v1855 = vadd.f32 %v1853, %v1854
    %v1856 = vmul.f32 %v1855, %v1785
    %v1857 = vadd.f32 %v1856, 1e-05
    %v1858 = vrsqrt.pop %v1857
    %v1859 = vmul.f32 %v1787, %v1858
    %v1860 = vmul.f32 %v1788, %v1858
    %v1861 = vmul.f32 %v1789, %v1858
    %v1862 = vmul.f32 %v1790, %v1858
    %v1863 = vmul.f32 %v1791, %v1858
    %v1864 = vmul.f32 %v1792, %v1858
    %v1865 = vmul.f32 %v1793, %v1858
    %v1866 = vmul.f32 %v1794, %v1858
    %v1867 = vmul.f32 %v1795, %v1858
    %v1868 = vmul.f32 %v1796, %v1858
    %v1869 = vmul.f32 %v1797, %v1858
    %v1870 = vmul.f32 %v1798, %v1858
    %v1871 = vmul.f32 %v1799, %v1858
    %v1872 = vmul.f32 %v1800, %v1858
    %v1873 = vmul.f32 %v1801, %v1858
    %v1874 = vmul.f32 %v1802, %v1858
    %v1875 = vlaneseq
    %v1876 = vshrl.u32 %v1875, 7
    %v1877 = vsub.s32 4, %v1876
    %v1878 = vrot.slane %v167, %v1877
    %v1879 = vmul.f32 %v1859, %v1878
    %v1880 = vmul.f32 %v1860, %v1878
    %v1881 = vmul.f32 %v1861, %v1878
    %v1882 = vmul.f32 %v1862, %v1878
    %v1883 = vmul.f32 %v1863, %v1878
    %v1884 = vmul.f32 %v1864, %v1878
    %v1885 = vmul.f32 %v1865, %v1878
    %v1886 = vmul.f32 %v1866, %v1878
    %v1887 = vmul.f32 %v1867, %v1878
    %v1888 = vmul.f32 %v1868, %v1878
    %v1889 = vmul.f32 %v1869, %v1878
    %v1890 = vmul.f32 %v1870, %v1878
    %v1891 = vmul.f32 %v1871, %v1878
    %v1892 = vmul.f32 %v1872, %v1878
    %v1893 = vmul.f32 %v1873, %v1878
    %v1894 = vmul.f32 %v1874, %v1878
    %v1895 = vlaneseq
    %v1896 = vshrl.u32 %v1895, 7
    %v1897 = vsub.s32 5, %v1896
    %v1898 = vrot.slane %v167, %v1897
    %v1899 = vadd.f32 %v1879, %v1898
    %v1900 = vadd.f32 %v1880, %v1898
    %v1901 = vadd.f32 %v1881, %v1898
    %v1902 = vadd.f32 %v1882, %v1898
    %v1903 = vadd.f32 %v1883, %v1898
    %v1904 = vadd.f32 %v1884, %v1898
    %v1905 = vadd.f32 %v1885, %v1898
    %v1906 = vadd.f32 %v1886, %v1898
    %v1907 = vadd.f32 %v1887, %v1898
    %v1908 = vadd.f32 %v1888, %v1898
    %v1909 = vadd.f32 %v1889, %v1898
    %v1910 = vadd.f32 %v1890, %v1898
    %v1911 = vadd.f32 %v1891, %v1898
    %v1912 = vadd.f32 %v1892, %v1898
    %v1913 = vadd.f32 %v1893, %v1898
    %v1914 = vadd.f32 %v1894, %v1898
    %v1915 = vmax.f32 %v1899, 0.0
    %v1916 = vmax.f32 %v1900, 0.0
    %v1917 = vmax.f32 %v1901, 0.0
    %v1918 = vmax.f32 %v1902, 0.0
    %v1919 = vmax.f32 %v1903, 0.0
    %v1920 = vmax.f32 %v1904, 0.0
    %v1921 = vmax.f32 %v1905, 0.0
    %v1922 = vmax.f32 %v1906, 0.0
    %v1923 = vmax.f32 %v1907, 0.0
    %v1924 = vmax.f32 %v1908, 0.0
    %v1925 = vmax.f32 %v1909, 0.0
    %v1926 = vmax.f32 %v1910, 0.0
    %v1927 = vmax.f32 %v1911, 0.0
    %v1928 = vmax.f32 %v1912, 0.0
    %v1929 = vmax.f32 %v1913, 0.0
    %v1930 = vmax.f32 %v1914, 0.0
    %v1931 = vld [vmem:[#allocation14 + $0x10] sm:$0xf]
    %v1932 = vld [vmem:[#allocation14 + $0x14] sm:$0xf]
    %v1933 = vld [vmem:[#allocation14 + $0x18] sm:$0xf]
    %v1934 = vld [vmem:[#allocation14 + $0x1c] sm:$0xf]
    %v1935 = vld [vmem:[#allocation16 + $0x40] sm:$0xf]
    %v1936 = vld [vmem:[#allocation16 + $0x44] sm:$0xf]
    %v1937 = vld [vmem:[#allocation16 + $0x48] sm:$0xf]
    %v1938 = vld [vmem:[#allocation16 + $0x4c] sm:$0xf]
    %v1939 = vld [vmem:[#allocation16 + $0x50] sm:$0xf]
    %v1940 = vld [vmem:[#allocation16 + $0x54] sm:$0xf]
    %v1941 = vld [vmem:[#allocation16 + $0x58] sm:$0xf]
    %v1942 = vld [vmem:[#allocation16 + $0x5c] sm:$0xf]
    %v1943 = vld [vmem:[#allocation16 + $0x60] sm:$0xf]
    %v1944 = vld [vmem:[#allocation16 + $0x64] sm:$0xf]
    %v1945 = vld [vmem:[#allocation16 + $0x68] sm:$0xf]
    %v1946 = vld [vmem:[#allocation16 + $0x6c] sm:$0xf]
    %v1947 = vld [vmem:[#allocation16 + $0x70] sm:$0xf]
    %v1948 = vld [vmem:[#allocation16 + $0x74] sm:$0xf]
    %v1949 = vld [vmem:[#allocation16 + $0x78] sm:$0xf]
    %v1950 = vld [vmem:[#allocation16 + $0x7c] sm:$0xf]
    %v1951 = vpack.c.bf16 %v1916, %v1915
    %v1952 = vpack.c.bf16 %v1918, %v1917
    %v1953 = vpack.c.bf16 %v1920, %v1919
    %v1954 = vpack.c.bf16 %v1922, %v1921
    %v1955 = vpack.c.bf16 %v1924, %v1923
    %v1956 = vpack.c.bf16 %v1926, %v1925
    %v1957 = vpack.c.bf16 %v1928, %v1927
    %v1958 = vpack.c.bf16 %v1930, %v1929
    %1959 = vmatprep.subr.bf16.mxu0 0
    %1960 = vmatpush1.bf16.msra.mxu0 %v1951
    %1961 = vmatprep.subr.bf16.mxu0 0
    %1962 = vmatpush1.bf16.msra.mxu0 %v1952
    %1963 = vmatprep.subr.bf16.mxu0 0
    %1964 = vmatpush1.bf16.msra.mxu0 %v1953
    %1965 = vmatprep.subr.bf16.mxu0 0
    %1966 = vmatpush1.bf16.msra.mxu0 %v1954
    %1967 = vmatprep.subr.bf16.mxu0 0
    %1968 = vmatpush1.bf16.msra.mxu0 %v1955
    %1969 = vmatprep.subr.bf16.mxu0 0
    %1970 = vmatpush1.bf16.msra.mxu0 %v1956
    %1971 = vmatprep.subr.bf16.mxu0 0
    %1972 = vmatpush1.bf16.msra.mxu0 %v1957
    %1973 = vmatprep.subr.bf16.mxu0 0
    %1974 = vmatpush1.bf16.msra.mxu0 %v1958
    %1975 = vmatprep.subr.bf16.mxu0 0
    %1976 = vmatpush1.bf16.msra.mxu0 0
    %1977 = vmatprep.subr.bf16.mxu0 0
    %1978 = vmatpush1.bf16.msra.mxu0 0
    %1979 = vmatprep.subr.bf16.mxu0 0
    %1980 = vmatpush1.bf16.msra.mxu0 0
    %1981 = vmatprep.subr.bf16.mxu0 0
    %1982 = vmatpush1.bf16.msra.mxu0 0
    %1983 = vmatprep.subr.bf16.mxu0 0
    %1984 = vmatpush1.bf16.msra.mxu0 0
    %1985 = vmatprep.subr.bf16.mxu0 0
    %1986 = vmatpush1.bf16.msra.mxu0 0
    %1987 = vmatprep.subr.bf16.mxu0 0
    %1988 = vmatpush1.bf16.msra.mxu0 0
    %1989 = vmatprep.subr.bf16.mxu0 0
    %1990 = vmatpush1.bf16.msra.mxu0 0
    %1991 = vmatprep.mubr.bf16.mxu0 0
    %1992 = vmatmul.mubr.bf16.gmra.mrb[0].mxu0 %v918
    %v1993 = vpop.f32.mrb[0].mxu0
    %v1994 = vadd.f32 %v564, %v1993
    %v1995 = vpop.f32.mrb[0].mxu0
    %v1996 = vpop.f32.mrb[0].mxu0
    %v1997 = vadd.f32 %v567, %v1996
    %v1998 = vpop.f32.mrb[0].mxu0
    %1999 = vmatprep.mubr.bf16.mxu0 0
    %2000 = vmatmul.mubr.bf16.gmra.mrb[0].mxu0 %v919
    %v2001 = vpop.f32.mrb[0].mxu0
    %v2002 = vadd.f32 %v572, %v2001
    %v2003 = vpop.f32.mrb[0].mxu0
    %v2004 = vpop.f32.mrb[0].mxu0
    %v2005 = vadd.f32 %v575, %v2004
    %v2006 = vpop.f32.mrb[0].mxu0
    %2007 = vmatprep.mubr.bf16.mxu0 0
    %2008 = vmatmul.mubr.bf16.gmra.mrb[0].mxu0 %v920
    %v2009 = vpop.f32.mrb[0].mxu0
    %v2010 = vadd.f32 %v580, %v2009
    %v2011 = vpop.f32.mrb[0].mxu0
    %v2012 = vpop.f32.mrb[0].mxu0
    %v2013 = vadd.f32 %v583, %v2012
    %v2014 = vpop.f32.mrb[0].mxu0
    %2015 = vmatprep.mubr.bf16.mxu0 0
    %2016 = vmatmul.mubr.bf16.gmra.mrb[0].mxu0 %v921
    %v2017 = vpop.f32.mrb[0].mxu0
    %v2018 = vadd.f32 %v588, %v2017
    %v2019 = vpop.f32.mrb[0].mxu0
    %v2020 = vpop.f32.mrb[0].mxu0
    %v2021 = vadd.f32 %v591, %v2020
    %v2022 = vpop.f32.mrb[0].mxu0
    %2023 = vmatprep.mubr.bf16.mxu0 0
    %2024 = vmatmul.mubr.bf16.gmra.mrb[0].mxu0 %v922
    %v2025 = vpop.f32.mrb[0].mxu0
    %v2026 = vadd.f32 %v596, %v2025
    %v2027 = vpop.f32.mrb[0].mxu0
    %v2028 = vpop.f32.mrb[0].mxu0
    %v2029 = vadd.f32 %v599, %v2028
    %v2030 = vpop.f32.mrb[0].mxu0
    %2031 = vmatprep.mubr.bf16.mxu0 0
    %2032 = vmatmul.mubr.bf16.gmra.mrb[0].mxu0 %v923
    %v2033 = vpop.f32.mrb[0].mxu0
    %v2034 = vadd.f32 %v604, %v2033
    %v2035 = vpop.f32.mrb[0].mxu0
    %v2036 = vpop.f32.mrb[0].mxu0
    %v2037 = vadd.f32 %v607, %v2036
    %v2038 = vpop.f32.mrb[0].mxu0
    %2039 = vmatprep.mubr.bf16.mxu0 0
    %2040 = vmatmul.mubr.bf16.gmra.mrb[0].mxu0 %v924
    %v2041 = vpop.f32.mrb[0].mxu0
    %v2042 = vadd.f32 %v612, %v2041
    %v2043 = vpop.f32.mrb[0].mxu0
    %v2044 = vpop.f32.mrb[0].mxu0
    %v2045 = vadd.f32 %v615, %v2044
    %v2046 = vpop.f32.mrb[0].mxu0
    %2047 = vmatprep.mubr.bf16.mxu0 0
    %2048 = vmatmul.mubr.bf16.gmra.mrb[0].mxu0 %v925
    %v2049 = vpop.f32.mrb[0].mxu0
    %v2050 = vadd.f32 %v620, %v2049
    %v2051 = vpop.f32.mrb[0].mxu0
    %v2052 = vpop.f32.mrb[0].mxu0
    %v2053 = vadd.f32 %v623, %v2052
    %v2054 = vpop.f32.mrb[0].mxu0
    %2055 = vmatprep.mubr.bf16.mxu0 0
    %2056 = vmatmul.mubr.bf16.gmra.mrb[0].mxu0 %v926
    %v2057 = vpop.f32.mrb[0].mxu0
    %v2058 = vadd.f32 %v628, %v2057
    %v2059 = vpop.f32.mrb[0].mxu0
    %v2060 = vpop.f32.mrb[0].mxu0
    %v2061 = vadd.f32 %v631, %v2060
    %v2062 = vpop.f32.mrb[0].mxu0
    %2063 = vmatprep.mubr.bf16.mxu0 0
    %2064 = vmatmul.mubr.bf16.gmra.mrb[0].mxu0 %v927
    %v2065 = vpop.f32.mrb[0].mxu0
    %v2066 = vadd.f32 %v636, %v2065
    %v2067 = vpop.f32.mrb[0].mxu0
    %v2068 = vpop.f32.mrb[0].mxu0
    %v2069 = vadd.f32 %v639, %v2068
    %v2070 = vpop.f32.mrb[0].mxu0
    %2071 = vmatprep.mubr.bf16.mxu0 0
    %2072 = vmatmul.mubr.bf16.gmra.mrb[0].mxu0 %v928
    %v2073 = vpop.f32.mrb[0].mxu0
    %v2074 = vadd.f32 %v644, %v2073
    %v2075 = vpop.f32.mrb[0].mxu0
    %v2076 = vpop.f32.mrb[0].mxu0
    %v2077 = vadd.f32 %v647, %v2076
    %v2078 = vpop.f32.mrb[0].mxu0
    %2079 = vmatprep.mubr.bf16.mxu0 0
    %2080 = vmatmul.mubr.bf16.gmra.mrb[0].mxu0 %v929
    %v2081 = vpop.f32.mrb[0].mxu0
    %v2082 = vadd.f32 %v652, %v2081
    %v2083 = vpop.f32.mrb[0].mxu0
    %v2084 = vpop.f32.mrb[0].mxu0
    %v2085 = vadd.f32 %v655, %v2084
    %v2086 = vpop.f32.mrb[0].mxu0
    %2087 = vmatprep.mubr.bf16.mxu0 0
    %2088 = vmatmul.mubr.bf16.gmra.mrb[0].mxu0 %v930
    %v2089 = vpop.f32.mrb[0].mxu0
    %v2090 = vadd.f32 %v660, %v2089
    %v2091 = vpop.f32.mrb[0].mxu0
    %v2092 = vpop.f32.mrb[0].mxu0
    %v2093 = vadd.f32 %v663, %v2092
    %v2094 = vpop.f32.mrb[0].mxu0
    %2095 = vmatprep.mubr.bf16.mxu0 0
    %2096 = vmatmul.mubr.bf16.gmra.mrb[0].mxu0 %v931
    %v2097 = vpop.f32.mrb[0].mxu0
    %v2098 = vadd.f32 %v668, %v2097
    %v2099 = vpop.f32.mrb[0].mxu0
    %v2100 = vpop.f32.mrb[0].mxu0
    %v2101 = vadd.f32 %v671, %v2100
    %v2102 = vpop.f32.mrb[0].mxu0
    %2103 = vmatprep.mubr.bf16.mxu0 0
    %2104 = vmatmul.mubr.bf16.gmra.mrb[0].mxu0 %v932
    %v2105 = vpop.f32.mrb[0].mxu0
    %v2106 = vadd.f32 %v676, %v2105
    %v2107 = vpop.f32.mrb[0].mxu0
    %v2108 = vpop.f32.mrb[0].mxu0
    %v2109 = vadd.f32 %v679, %v2108
    %v2110 = vpop.f32.mrb[0].mxu0
    %2111 = vmatprep.mubr.bf16.mxu0 0
    %2112 = vmatmul.mubr.bf16.gmra.mrb[0].mxu0 %v933
    %v2113 = vpop.f32.mrb[0].mxu0
    %v2114 = vadd.f32 %v684, %v2113
    %v2115 = vpop.f32.mrb[0].mxu0
    %v2116 = vpop.f32.mrb[0].mxu0
    %v2117 = vadd.f32 %v687, %v2116
    %v2118 = vpop.f32.mrb[0].mxu0
    %2119 = vdwg.mxu0
    %v2120 = vmax.f32 %v1994, 0.0
    %v2121 = vmax.f32 %v1997, 0.0
    %v2122 = vmax.f32 %v2002, 0.0
    %v2123 = vmax.f32 %v2005, 0.0
    %v2124 = vmax.f32 %v2010, 0.0
    %v2125 = vmax.f32 %v2013, 0.0
    %v2126 = vmax.f32 %v2018, 0.0
    %v2127 = vmax.f32 %v2021, 0.0
    %v2128 = vmax.f32 %v2026, 0.0
    %v2129 = vmax.f32 %v2029, 0.0
    %v2130 = vmax.f32 %v2034, 0.0
    %v2131 = vmax.f32 %v2037, 0.0
    %v2132 = vmax.f32 %v2042, 0.0
    %v2133 = vmax.f32 %v2045, 0.0
    %v2134 = vmax.f32 %v2050, 0.0
    %v2135 = vmax.f32 %v2053, 0.0
    %v2136 = vmax.f32 %v2058, 0.0
    %v2137 = vmax.f32 %v2061, 0.0
    %v2138 = vmax.f32 %v2066, 0.0
    %v2139 = vmax.f32 %v2069, 0.0
    %v2140 = vmax.f32 %v2074, 0.0
    %v2141 = vmax.f32 %v2077, 0.0
    %v2142 = vmax.f32 %v2082, 0.0
    %v2143 = vmax.f32 %v2085, 0.0
    %v2144 = vmax.f32 %v2090, 0.0
    %v2145 = vmax.f32 %v2093, 0.0
    %v2146 = vmax.f32 %v2098, 0.0
    %v2147 = vmax.f32 %v2101, 0.0
    %v2148 = vmax.f32 %v2106, 0.0
    %v2149 = vmax.f32 %v2109, 0.0
    %v2150 = vmax.f32 %v2114, 0.0
    %v2151 = vmax.f32 %v2117, 0.0
    %v2152 = vpack.c.bf16 %v2121, %v2120
    %v2153 = vpack.c.bf16 %v2123, %v2122
    %v2154 = vpack.c.bf16 %v2125, %v2124
    %v2155 = vpack.c.bf16 %v2127, %v2126
    %v2156 = vpack.c.bf16 %v2129, %v2128
    %v2157 = vpack.c.bf16 %v2131, %v2130
    %v2158 = vpack.c.bf16 %v2133, %v2132
    %v2159 = vpack.c.bf16 %v2135, %v2134
    %v2160 = vpack.c.bf16 %v2137, %v2136
    %v2161 = vpack.c.bf16 %v2139, %v2138
    %v2162 = vpack.c.bf16 %v2141, %v2140
    %v2163 = vpack.c.bf16 %v2143, %v2142
    %v2164 = vpack.c.bf16 %v2145, %v2144
    %v2165 = vpack.c.bf16 %v2147, %v2146
    %v2166 = vpack.c.bf16 %v2149, %v2148
    %v2167 = vpack.c.bf16 %v2151, %v2150
    %2168 = vmatprep.subr.bf16.mxu0 0
    %2169 = vmatpush1.bf16.msra.mxu0 %v2152
    %2170 = vmatprep.subr.bf16.mxu0 0
    %2171 = vmatpush1.bf16.msra.mxu0 %v2153
    %2172 = vmatprep.subr.bf16.mxu0 0
    %2173 = vmatpush1.bf16.msra.mxu0 %v2154
    %2174 = vmatprep.subr.bf16.mxu0 0
    %2175 = vmatpush1.bf16.msra.mxu0 %v2155
    %2176 = vmatprep.subr.bf16.mxu0 0
    %2177 = vmatpush1.bf16.msra.mxu0 %v2156
    %2178 = vmatprep.subr.bf16.mxu0 0
    %2179 = vmatpush1.bf16.msra.mxu0 %v2157
    %2180 = vmatprep.subr.bf16.mxu0 0
    %2181 = vmatpush1.bf16.msra.mxu0 %v2158
    %2182 = vmatprep.subr.bf16.mxu0 0
    %2183 = vmatpush1.bf16.msra.mxu0 %v2159
    %2184 = vmatprep.subr.bf16.mxu0 0
    %2185 = vmatpush1.bf16.msra.mxu0 %v2160
    %2186 = vmatprep.subr.bf16.mxu0 0
    %2187 = vmatpush1.bf16.msra.mxu0 %v2161
    %2188 = vmatprep.subr.bf16.mxu0 0
    %2189 = vmatpush1.bf16.msra.mxu0 %v2162
    %2190 = vmatprep.subr.bf16.mxu0 0
    %2191 = vmatpush1.bf16.msra.mxu0 %v2163
    %2192 = vmatprep.subr.bf16.mxu0 0
    %2193 = vmatpush1.bf16.msra.mxu0 %v2164
    %2194 = vmatprep.subr.bf16.mxu0 0
    %2195 = vmatpush1.bf16.msra.mxu0 %v2165
    %2196 = vmatprep.subr.bf16.mxu0 0
    %2197 = vmatpush1.bf16.msra.mxu0 %v2166
    %2198 = vmatprep.subr.bf16.mxu0 0
    %2199 = vmatpush1.bf16.msra.mxu0 %v2167
    %2200 = vmatprep.mubr.bf16.mxu0 %v1056
    %2201 = vmatmul.mubr.bf16.gmra.mrb[0].mxu0 %v1055
    %v2202 = vpop.f32.mrb[0].mxu0
    %v2203 = vadd.f32 0.0, %v2202
    %v2204 = vpop.f32.mrb[0].mxu0
    %v2205 = vpop.f32.mrb[0].mxu0
    %v2206 = vadd.f32 0.0, %v2205
    %v2207 = vpop.f32.mrb[0].mxu0
    %2208 = vmatprep.mubr.bf16.mxu0 %v1058
    %2209 = vmatmul.mubr.bf16.gmra.mrb[0].mxu0 %v1057
    %v2210 = vpop.f32.mrb[0].mxu0
    %v2211 = vadd.f32 0.0, %v2210
    %v2212 = vpop.f32.mrb[0].mxu0
    %v2213 = vpop.f32.mrb[0].mxu0
    %v2214 = vadd.f32 0.0, %v2213
    %v2215 = vpop.f32.mrb[0].mxu0
    %2216 = vmatprep.mubr.bf16.mxu0 %v1060
    %2217 = vmatmul.mubr.bf16.gmra.mrb[0].mxu0 %v1059
    %v2218 = vpop.f32.mrb[0].mxu0
    %v2219 = vadd.f32 0.0, %v2218
    %v2220 = vpop.f32.mrb[0].mxu0
    %v2221 = vpop.f32.mrb[0].mxu0
    %v2222 = vadd.f32 0.0, %v2221
    %v2223 = vpop.f32.mrb[0].mxu0
    %2224 = vmatprep.mubr.bf16.mxu0 %v1062
    %2225 = vmatmul.mubr.bf16.gmra.mrb[0].mxu0 %v1061
    %v2226 = vpop.f32.mrb[0].mxu0
    %v2227 = vadd.f32 0.0, %v2226
    %v2228 = vpop.f32.mrb[0].mxu0
    %v2229 = vpop.f32.mrb[0].mxu0
    %v2230 = vadd.f32 0.0, %v2229
    %v2231 = vpop.f32.mrb[0].mxu0
    %2232 = vmatprep.mubr.bf16.mxu0 %v1064
    %2233 = vmatmul.mubr.bf16.gmra.mrb[0].mxu0 %v1063
    %v2234 = vpop.f32.mrb[0].mxu0
    %v2235 = vadd.f32 0.0, %v2234
    %v2236 = vpop.f32.mrb[0].mxu0
    %v2237 = vpop.f32.mrb[0].mxu0
    %v2238 = vadd.f32 0.0, %v2237
    %v2239 = vpop.f32.mrb[0].mxu0
    %2240 = vmatprep.mubr.bf16.mxu0 %v1066
    %2241 = vmatmul.mubr.bf16.gmra.mrb[0].mxu0 %v1065
    %v2242 = vpop.f32.mrb[0].mxu0
    %v2243 = vadd.f32 0.0, %v2242
    %v2244 = vpop.f32.mrb[0].mxu0
    %v2245 = vpop.f32.mrb[0].mxu0
    %v2246 = vadd.f32 0.0, %v2245
    %v2247 = vpop.f32.mrb[0].mxu0
    %2248 = vmatprep.mubr.bf16.mxu0 %v1068
    %2249 = vmatmul.mubr.bf16.gmra.mrb[0].mxu0 %v1067
    %v2250 = vpop.f32.mrb[0].mxu0
    %v2251 = vadd.f32 0.0, %v2250
    %v2252 = vpop.f32.mrb[0].mxu0
    %v2253 = vpop.f32.mrb[0].mxu0
    %v2254 = vadd.f32 0.0, %v2253
    %v2255 = vpop.f32.mrb[0].mxu0
    %2256 = vmatprep.mubr.bf16.mxu0 %v1070
    %2257 = vmatmul.mubr.bf16.gmra.mrb[0].mxu0 %v1069
    %v2258 = vpop.f32.mrb[0].mxu0
    %v2259 = vadd.f32 0.0, %v2258
    %v2260 = vpop.f32.mrb[0].mxu0
    %v2261 = vpop.f32.mrb[0].mxu0
    %v2262 = vadd.f32 0.0, %v2261
    %v2263 = vpop.f32.mrb[0].mxu0
    %2264 = vdwg.mxu0
    %v2265 = vadd.f32 %v1915, %v2203
    %v2266 = vadd.f32 %v1916, %v2206
    %v2267 = vadd.f32 %v1917, %v2211
    %v2268 = vadd.f32 %v1918, %v2214
    %v2269 = vadd.f32 %v1919, %v2219
    %v2270 = vadd.f32 %v1920, %v2222
    %v2271 = vadd.f32 %v1921, %v2227
    %v2272 = vadd.f32 %v1922, %v2230
    %v2273 = vadd.f32 %v1923, %v2235
    %v2274 = vadd.f32 %v1924, %v2238
    %v2275 = vadd.f32 %v1925, %v2243
    %v2276 = vadd.f32 %v1926, %v2246
    %v2277 = vadd.f32 %v1927, %v2251
    %v2278 = vadd.f32 %v1928, %v2254
    %v2279 = vadd.f32 %v1929, %v2259
    %v2280 = vadd.f32 %v1930, %v2262
    %v2281 = vpack.c.bf16 %v2266, %v2265
    %v2282 = vpack.c.bf16 %v2268, %v2267
    %v2283 = vpack.c.bf16 %v2270, %v2269
    %v2284 = vpack.c.bf16 %v2272, %v2271
    %v2285 = vpack.c.bf16 %v2274, %v2273
    %v2286 = vpack.c.bf16 %v2276, %v2275
    %v2287 = vpack.c.bf16 %v2278, %v2277
    %v2288 = vpack.c.bf16 %v2280, %v2279
    %v2289 = vlaneseq
    %v2290 = vshrl.u32 %v2289, 7
    %v2291 = vsub.s32 6, %v2290
    %v2292 = vrot.slane %v167, %v2291
    %v2297 = vunpack.c.l.b16 %v1931
    %v2298 = vunpack.c.l.b16 %v1932
    %v2299 = vunpack.c.l.b16 %v1933
    %v2300 = vunpack.c.l.b16 %v1934
    %v2301 = vpack.c.b16 %v2298, %v2297
    %v2302 = vpack.c.b16 %v2300, %v2299
    %v2306 = vsel %vm1453, %v2281, 0
    %v2309 = vsel %vm1453, %v2282, 0
    %v2312 = vsel %vm1453, %v2283, 0
    %v2315 = vsel %vm1453, %v2284, 0
    %v2318 = vsel %vm1453, %v2285, 0
    %v2321 = vsel %vm1453, %v2286, 0
    %v2324 = vsel %vm1453, %v2287, 0
    %v2327 = vsel %vm1453, %v2288, 0
    %2329 = vmatprep.subr.bf16.mxu0 0
    %2330 = vmatpush1.bf16.msra.mxu0 %v2301
    %2331 = vmatprep.subr.bf16.mxu0 0
    %2332 = vmatpush1.bf16.msra.mxu0 %v2302
    %2333 = vmatprep.subr.bf16.mxu0 0
    %2334 = vmatpush1.bf16.msra.mxu0 0
    %2335 = vmatprep.subr.bf16.mxu0 0
    %2336 = vmatpush1.bf16.msra.mxu0 0
    %2337 = vmatprep.subr.bf16.mxu0 0
    %2338 = vmatpush1.bf16.msra.mxu0 0
    %2339 = vmatprep.subr.bf16.mxu0 0
    %2340 = vmatpush1.bf16.msra.mxu0 0
    %2341 = vmatprep.subr.bf16.mxu0 0
    %2342 = vmatpush1.bf16.msra.mxu0 0
    %2343 = vmatprep.subr.bf16.mxu0 0
    %2344 = vmatpush1.bf16.msra.mxu0 0
    %2345 = vmatprep.subr.bf16.mxu0 0
    %2346 = vmatpush1.bf16.msra.mxu0 0
    %2347 = vmatprep.subr.bf16.mxu0 0
    %2348 = vmatpush1.bf16.msra.mxu0 0
    %2349 = vmatprep.subr.bf16.mxu0 0
    %2350 = vmatpush1.bf16.msra.mxu0 0
    %2351 = vmatprep.subr.bf16.mxu0 0
    %2352 = vmatpush1.bf16.msra.mxu0 0
    %2353 = vmatprep.subr.bf16.mxu0 0
    %2354 = vmatpush1.bf16.msra.mxu0 0
    %2355 = vmatprep.subr.bf16.mxu0 0
    %2356 = vmatpush1.bf16.msra.mxu0 0
    %2357 = vmatprep.subr.bf16.mxu0 0
    %2358 = vmatpush1.bf16.msra.mxu0 0
    %2359 = vmatprep.subr.bf16.mxu0 0
    %2360 = vmatpush1.bf16.msra.mxu0 0
    %2361 = vmatprep.mubr.bf16.mxu0 0
    %2362 = vmatmul.mubr.bf16.gmra.mrb[0].mxu0 %v2306
    %v2363 = vpop.f32.mrb[0].mxu0
    %v2364 = vadd.f32 %v2292, %v2363
    %v2365 = vpop.f32.mrb[0].mxu0
    %v2366 = vpop.f32.mrb[0].mxu0
    %v2367 = vadd.f32 %v2292, %v2366
    %v2368 = vpop.f32.mrb[0].mxu0
    %2369 = vmatprep.mubr.bf16.mxu0 0
    %2370 = vmatmul.mubr.bf16.gmra.mrb[0].mxu0 %v2309
    %v2371 = vpop.f32.mrb[0].mxu0
    %v2372 = vadd.f32 %v2292, %v2371
    %v2373 = vpop.f32.mrb[0].mxu0
    %v2374 = vpop.f32.mrb[0].mxu0
    %v2375 = vadd.f32 %v2292, %v2374
    %v2376 = vpop.f32.mrb[0].mxu0
    %2377 = vmatprep.mubr.bf16.mxu0 0
    %2378 = vmatmul.mubr.bf16.gmra.mrb[0].mxu0 %v2312
    %v2379 = vpop.f32.mrb[0].mxu0
    %v2380 = vadd.f32 %v2292, %v2379
    %v2381 = vpop.f32.mrb[0].mxu0
    %v2382 = vpop.f32.mrb[0].mxu0
    %v2383 = vadd.f32 %v2292, %v2382
    %v2384 = vpop.f32.mrb[0].mxu0
    %2385 = vmatprep.mubr.bf16.mxu0 0
    %2386 = vmatmul.mubr.bf16.gmra.mrb[0].mxu0 %v2315
    %v2387 = vpop.f32.mrb[0].mxu0
    %v2388 = vadd.f32 %v2292, %v2387
    %v2389 = vpop.f32.mrb[0].mxu0
    %v2390 = vpop.f32.mrb[0].mxu0
    %v2391 = vadd.f32 %v2292, %v2390
    %v2392 = vpop.f32.mrb[0].mxu0
    %2393 = vmatprep.mubr.bf16.mxu0 0
    %2394 = vmatmul.mubr.bf16.gmra.mrb[0].mxu0 %v2318
    %v2395 = vpop.f32.mrb[0].mxu0
    %v2396 = vadd.f32 %v2292, %v2395
    %v2397 = vpop.f32.mrb[0].mxu0
    %v2398 = vpop.f32.mrb[0].mxu0
    %v2399 = vadd.f32 %v2292, %v2398
    %v2400 = vpop.f32.mrb[0].mxu0
    %2401 = vmatprep.mubr.bf16.mxu0 0
    %2402 = vmatmul.mubr.bf16.gmra.mrb[0].mxu0 %v2321
    %v2403 = vpop.f32.mrb[0].mxu0
    %v2404 = vadd.f32 %v2292, %v2403
    %v2405 = vpop.f32.mrb[0].mxu0
    %v2406 = vpop.f32.mrb[0].mxu0
    %v2407 = vadd.f32 %v2292, %v2406
    %v2408 = vpop.f32.mrb[0].mxu0
    %2409 = vmatprep.mubr.bf16.mxu0 0
    %2410 = vmatmul.mubr.bf16.gmra.mrb[0].mxu0 %v2324
    %v2411 = vpop.f32.mrb[0].mxu0
    %v2412 = vadd.f32 %v2292, %v2411
    %v2413 = vpop.f32.mrb[0].mxu0
    %v2414 = vpop.f32.mrb[0].mxu0
    %v2415 = vadd.f32 %v2292, %v2414
    %v2416 = vpop.f32.mrb[0].mxu0
    %2417 = vmatprep.mubr.bf16.mxu0 0
    %2418 = vmatmul.mubr.bf16.gmra.mrb[0].mxu0 %v2327
    %v2419 = vpop.f32.mrb[0].mxu0
    %v2420 = vadd.f32 %v2292, %v2419
    %v2421 = vpop.f32.mrb[0].mxu0
    %v2422 = vpop.f32.mrb[0].mxu0
    %v2423 = vadd.f32 %v2292, %v2422
    %v2424 = vpop.f32.mrb[0].mxu0
    %2425 = vdwg.mxu0
    %v2426 = vmax.f32 %v2364, 0.0
    %v2427 = vmax.f32 %v2367, 0.0
    %v2428 = vmax.f32 %v2372, 0.0
    %v2429 = vmax.f32 %v2375, 0.0
    %v2430 = vmax.f32 %v2380, 0.0
    %v2431 = vmax.f32 %v2383, 0.0
    %v2432 = vmax.f32 %v2388, 0.0
    %v2433 = vmax.f32 %v2391, 0.0
    %v2434 = vmax.f32 %v2396, 0.0
    %v2435 = vmax.f32 %v2399, 0.0
    %v2436 = vmax.f32 %v2404, 0.0
    %v2437 = vmax.f32 %v2407, 0.0
    %v2438 = vmax.f32 %v2412, 0.0
    %v2439 = vmax.f32 %v2415, 0.0
    %v2440 = vmax.f32 %v2420, 0.0
    %v2441 = vmax.f32 %v2423, 0.0
    %v2442 = vpack.c.bf16 %v2427, %v2426
    %v2443 = vpack.c.bf16 %v2429, %v2428
    %v2444 = vpack.c.bf16 %v2431, %v2430
    %v2445 = vpack.c.bf16 %v2433, %v2432
    %v2446 = vpack.c.bf16 %v2435, %v2434
    %v2447 = vpack.c.bf16 %v2437, %v2436
    %v2448 = vpack.c.bf16 %v2439, %v2438
    %v2449 = vpack.c.bf16 %v2441, %v2440
    %v2450 = vlaneseq
    %v2451 = vshrl.u32 %v2450, 7
    %v2452 = vsub.s32 7, %v2451
    %v2453 = vrot.slane %v167, %v2452
    %v2470 = vunpack.c.l.b16 %v1935
    %v2471 = vunpack.c.l.b16 %v1936
    %v2472 = vunpack.c.l.b16 %v1937
    %v2473 = vunpack.c.l.b16 %v1938
    %v2474 = vunpack.c.l.b16 %v1939
    %v2475 = vunpack.c.l.b16 %v1940
    %v2476 = vunpack.c.l.b16 %v1941
    %v2477 = vunpack.c.l.b16 %v1942
    %v2478 = vunpack.c.l.b16 %v1943
    %v2479 = vunpack.c.l.b16 %v1944
    %v2480 = vunpack.c.l.b16 %v1945
    %v2481 = vunpack.c.l.b16 %v1946
    %v2482 = vunpack.c.l.b16 %v1947
    %v2483 = vunpack.c.l.b16 %v1948
    %v2484 = vunpack.c.l.b16 %v1949
    %v2485 = vunpack.c.l.b16 %v1950
    %v2486 = vpack.c.b16 %v2471, %v2470
    %v2487 = vpack.c.b16 %v2473, %v2472
    %v2488 = vpack.c.b16 %v2475, %v2474
    %v2489 = vpack.c.b16 %v2477, %v2476
    %v2490 = vpack.c.b16 %v2479, %v2478
    %v2491 = vpack.c.b16 %v2481, %v2480
    %v2492 = vpack.c.b16 %v2483, %v2482
    %v2493 = vpack.c.b16 %v2485, %v2484
    %2502 = vmatprep.subr.bf16.mxu0 0
    %2503 = vmatpush1.bf16.msra.mxu0 %v2486
    %2504 = vmatprep.subr.bf16.mxu0 0
    %2505 = vmatpush1.bf16.msra.mxu0 %v2487
    %2506 = vmatprep.subr.bf16.mxu0 0
    %2507 = vmatpush1.bf16.msra.mxu0 %v2488
    %2508 = vmatprep.subr.bf16.mxu0 0
    %2509 = vmatpush1.bf16.msra.mxu0 %v2489
    %2510 = vmatprep.subr.bf16.mxu0 0
    %2511 = vmatpush1.bf16.msra.mxu0 %v2490
    %2512 = vmatprep.subr.bf16.mxu0 0
    %2513 = vmatpush1.bf16.msra.mxu0 %v2491
    %2514 = vmatprep.subr.bf16.mxu0 0
    %2515 = vmatpush1.bf16.msra.mxu0 %v2492
    %2516 = vmatprep.subr.bf16.mxu0 0
    %2517 = vmatpush1.bf16.msra.mxu0 %v2493
    %2518 = vmatprep.subr.bf16.mxu0 0
    %2519 = vmatpush1.bf16.msra.mxu0 0
    %2520 = vmatprep.subr.bf16.mxu0 0
    %2521 = vmatpush1.bf16.msra.mxu0 0
    %2522 = vmatprep.subr.bf16.mxu0 0
    %2523 = vmatpush1.bf16.msra.mxu0 0
    %2524 = vmatprep.subr.bf16.mxu0 0
    %2525 = vmatpush1.bf16.msra.mxu0 0
    %2526 = vmatprep.subr.bf16.mxu0 0
    %2527 = vmatpush1.bf16.msra.mxu0 0
    %2528 = vmatprep.subr.bf16.mxu0 0
    %2529 = vmatpush1.bf16.msra.mxu0 0
    %2530 = vmatprep.subr.bf16.mxu0 0
    %2531 = vmatpush1.bf16.msra.mxu0 0
    %2532 = vmatprep.subr.bf16.mxu0 0
    %2533 = vmatpush1.bf16.msra.mxu0 0
    %2534 = vmatprep.mubr.bf16.mxu0 0
    %2535 = vmatmul.mubr.bf16.gmra.mrb[0].mxu0 %v2442
    %v2536 = vpop.f32.mrb[0].mxu0
    %v2537 = vadd.f32 %v2453, %v2536
    %v2538 = vpop.f32.mrb[0].mxu0
    %v2539 = vpop.f32.mrb[0].mxu0
    %v2540 = vadd.f32 %v2453, %v2539
    %v2541 = vpop.f32.mrb[0].mxu0
    %2542 = vmatprep.mubr.bf16.mxu0 0
    %2543 = vmatmul.mubr.bf16.gmra.mrb[0].mxu0 %v2443
    %v2544 = vpop.f32.mrb[0].mxu0
    %v2545 = vadd.f32 %v2453, %v2544
    %v2546 = vpop.f32.mrb[0].mxu0
    %v2547 = vpop.f32.mrb[0].mxu0
    %v2548 = vadd.f32 %v2453, %v2547
    %v2549 = vpop.f32.mrb[0].mxu0
    %2550 = vmatprep.mubr.bf16.mxu0 0
    %2551 = vmatmul.mubr.bf16.gmra.mrb[0].mxu0 %v2444
    %v2552 = vpop.f32.mrb[0].mxu0
    %v2553 = vadd.f32 %v2453, %v2552
    %v2554 = vpop.f32.mrb[0].mxu0
    %v2555 = vpop.f32.mrb[0].mxu0
    %v2556 = vadd.f32 %v2453, %v2555
    %v2557 = vpop.f32.mrb[0].mxu0
    %2558 = vmatprep.mubr.bf16.mxu0 0
    %2559 = vmatmul.mubr.bf16.gmra.mrb[0].mxu0 %v2445
    %v2560 = vpop.f32.mrb[0].mxu0
    %v2561 = vadd.f32 %v2453, %v2560
    %v2562 = vpop.f32.mrb[0].mxu0
    %v2563 = vpop.f32.mrb[0].mxu0
    %v2564 = vadd.f32 %v2453, %v2563
    %v2565 = vpop.f32.mrb[0].mxu0
    %2566 = vmatprep.mubr.bf16.mxu0 0
    %2567 = vmatmul.mubr.bf16.gmra.mrb[0].mxu0 %v2446
    %v2568 = vpop.f32.mrb[0].mxu0
    %v2569 = vadd.f32 %v2453, %v2568
    %v2570 = vpop.f32.mrb[0].mxu0
    %v2571 = vpop.f32.mrb[0].mxu0
    %v2572 = vadd.f32 %v2453, %v2571
    %v2573 = vpop.f32.mrb[0].mxu0
    %2574 = vmatprep.mubr.bf16.mxu0 0
    %2575 = vmatmul.mubr.bf16.gmra.mrb[0].mxu0 %v2447
    %v2576 = vpop.f32.mrb[0].mxu0
    %v2577 = vadd.f32 %v2453, %v2576
    %v2578 = vpop.f32.mrb[0].mxu0
    %v2579 = vpop.f32.mrb[0].mxu0
    %v2580 = vadd.f32 %v2453, %v2579
    %v2581 = vpop.f32.mrb[0].mxu0
    %2582 = vmatprep.mubr.bf16.mxu0 0
    %2583 = vmatmul.mubr.bf16.gmra.mrb[0].mxu0 %v2448
    %v2584 = vpop.f32.mrb[0].mxu0
    %v2585 = vadd.f32 %v2453, %v2584
    %v2586 = vpop.f32.mrb[0].mxu0
    %v2587 = vpop.f32.mrb[0].mxu0
    %v2588 = vadd.f32 %v2453, %v2587
    %v2589 = vpop.f32.mrb[0].mxu0
    %2590 = vmatprep.mubr.bf16.mxu0 0
    %2591 = vmatmul.mubr.bf16.gmra.mrb[0].mxu0 %v2449
    %v2592 = vpop.f32.mrb[0].mxu0
    %v2593 = vadd.f32 %v2453, %v2592
    %v2594 = vpop.f32.mrb[0].mxu0
    %v2595 = vpop.f32.mrb[0].mxu0
    %v2596 = vadd.f32 %v2453, %v2595
    %v2597 = vpop.f32.mrb[0].mxu0
    %2598 = vdwg.mxu0
    %v2599 = vsel %vm1453, %v2537, 0.0
    %v2600 = vsel %vm1453, %v2540, 0.0
    %v2601 = vadd.f32 %v2599, %v2600
    %v2602 = vsel %vm1453, %v2545, 0.0
    %v2603 = vadd.f32 %v2601, %v2602
    %v2604 = vsel %vm1453, %v2548, 0.0
    %v2605 = vadd.f32 %v2603, %v2604
    %v2606 = vsel %vm1453, %v2553, 0.0
    %v2607 = vadd.f32 %v2605, %v2606
    %v2608 = vsel %vm1453, %v2556, 0.0
    %v2609 = vadd.f32 %v2607, %v2608
    %v2610 = vsel %vm1453, %v2561, 0.0
    %v2611 = vadd.f32 %v2609, %v2610
    %v2612 = vsel %vm1453, %v2564, 0.0
    %v2613 = vadd.f32 %v2611, %v2612
    %v2614 = vsel %vm1453, %v2569, 0.0
    %v2615 = vadd.f32 %v2613, %v2614
    %v2616 = vsel %vm1453, %v2572, 0.0
    %v2617 = vadd.f32 %v2615, %v2616
    %v2618 = vsel %vm1453, %v2577, 0.0
    %v2619 = vadd.f32 %v2617, %v2618
    %v2620 = vsel %vm1453, %v2580, 0.0
    %v2621 = vadd.f32 %v2619, %v2620
    %v2622 = vsel %vm1453, %v2585, 0.0
    %v2623 = vadd.f32 %v2621, %v2622
    %v2624 = vsel %vm1453, %v2588, 0.0
    %v2625 = vadd.f32 %v2623, %v2624
    %v2626 = vsel %vm1453, %v2593, 0.0
    %v2627 = vadd.f32 %v2625, %v2626
    %v2628 = vsel %vm1453, %v2596, 0.0
    %v2629 = vadd.f32 %v2627, %v2628
    %v2630 = vrot.slane %v2629, 4
    %v2631 = vadd.f32 %v2629, %v2630
    %v2632 = vrot.slane %v2631, 2
    %v2633 = vadd.f32 %v2631, %v2632
    %v2634 = vrot.slane %v2633, 1
    %v2635 = vadd.f32 %v2633, %v2634
    %v2636 = vmul.f32 %v2635, %v1785
    %v2637 = vsub.f32 %v2537, %v2636
    %v2638 = vsub.f32 %v2540, %v2636
    %v2639 = vsub.f32 %v2545, %v2636
    %v2640 = vsub.f32 %v2548, %v2636
    %v2641 = vsub.f32 %v2553, %v2636
    %v2642 = vsub.f32 %v2556, %v2636
    %v2643 = vsub.f32 %v2561, %v2636
    %v2644 = vsub.f32 %v2564, %v2636
    %v2645 = vsub.f32 %v2569, %v2636
    %v2646 = vsub.f32 %v2572, %v2636
    %v2647 = vsub.f32 %v2577, %v2636
    %v2648 = vsub.f32 %v2580, %v2636
    %v2649 = vsub.f32 %v2585, %v2636
    %v2650 = vsub.f32 %v2588, %v2636
    %v2651 = vsub.f32 %v2593, %v2636
    %v2652 = vsub.f32 %v2596, %v2636
    %v2653 = vmul.f32 %v2637, %v2637
    %v2654 = vmul.f32 %v2638, %v2638
    %v2655 = vmul.f32 %v2639, %v2639
    %v2656 = vmul.f32 %v2640, %v2640
    %v2657 = vmul.f32 %v2641, %v2641
    %v2658 = vmul.f32 %v2642, %v2642
    %v2659 = vmul.f32 %v2643, %v2643
    %v2660 = vmul.f32 %v2644, %v2644
    %v2661 = vmul.f32 %v2645, %v2645
    %v2662 = vmul.f32 %v2646, %v2646
    %v2663 = vmul.f32 %v2647, %v2647
    %v2664 = vmul.f32 %v2648, %v2648
    %v2665 = vmul.f32 %v2649, %v2649
    %v2666 = vmul.f32 %v2650, %v2650
    %v2667 = vmul.f32 %v2651, %v2651
    %v2668 = vmul.f32 %v2652, %v2652
    %v2669 = vsel %vm1453, %v2653, 0.0
    %v2670 = vsel %vm1453, %v2654, 0.0
    %v2671 = vadd.f32 %v2669, %v2670
    %v2672 = vsel %vm1453, %v2655, 0.0
    %v2673 = vadd.f32 %v2671, %v2672
    %v2674 = vsel %vm1453, %v2656, 0.0
    %v2675 = vadd.f32 %v2673, %v2674
    %v2676 = vsel %vm1453, %v2657, 0.0
    %v2677 = vadd.f32 %v2675, %v2676
    %v2678 = vsel %vm1453, %v2658, 0.0
    %v2679 = vadd.f32 %v2677, %v2678
    %v2680 = vsel %vm1453, %v2659, 0.0
    %v2681 = vadd.f32 %v2679, %v2680
    %v2682 = vsel %vm1453, %v2660, 0.0
    %v2683 = vadd.f32 %v2681, %v2682
    %v2684 = vsel %vm1453, %v2661, 0.0
    %v2685 = vadd.f32 %v2683, %v2684
    %v2686 = vsel %vm1453, %v2662, 0.0
    %v2687 = vadd.f32 %v2685, %v2686
    %v2688 = vsel %vm1453, %v2663, 0.0
    %v2689 = vadd.f32 %v2687, %v2688
    %v2690 = vsel %vm1453, %v2664, 0.0
    %v2691 = vadd.f32 %v2689, %v2690
    %v2692 = vsel %vm1453, %v2665, 0.0
    %v2693 = vadd.f32 %v2691, %v2692
    %v2694 = vsel %vm1453, %v2666, 0.0
    %v2695 = vadd.f32 %v2693, %v2694
    %v2696 = vsel %vm1453, %v2667, 0.0
    %v2697 = vadd.f32 %v2695, %v2696
    %v2698 = vsel %vm1453, %v2668, 0.0
    %v2699 = vadd.f32 %v2697, %v2698
    %v2700 = vrot.slane %v2699, 4
    %v2701 = vadd.f32 %v2699, %v2700
    %v2702 = vrot.slane %v2701, 2
    %v2703 = vadd.f32 %v2701, %v2702
    %v2704 = vrot.slane %v2703, 1
    %v2705 = vadd.f32 %v2703, %v2704
    %v2706 = vmul.f32 %v2705, %v1785
    %v2707 = vadd.f32 %v2706, 1e-05
    %v2708 = vrsqrt.pop %v2707
    %v2709 = vmul.f32 %v2637, %v2708
    %v2710 = vmul.f32 %v2638, %v2708
    %v2711 = vmul.f32 %v2639, %v2708
    %v2712 = vmul.f32 %v2640, %v2708
    %v2713 = vmul.f32 %v2641, %v2708
    %v2714 = vmul.f32 %v2642, %v2708
    %v2715 = vmul.f32 %v2643, %v2708
    %v2716 = vmul.f32 %v2644, %v2708
    %v2717 = vmul.f32 %v2645, %v2708
    %v2718 = vmul.f32 %v2646, %v2708
    %v2719 = vmul.f32 %v2647, %v2708
    %v2720 = vmul.f32 %v2648, %v2708
    %v2721 = vmul.f32 %v2649, %v2708
    %v2722 = vmul.f32 %v2650, %v2708
    %v2723 = vmul.f32 %v2651, %v2708
    %v2724 = vmul.f32 %v2652, %v2708
    %v2725 = vlaneseq
    %v2726 = vshrl.u32 %v2725, 7
    %v2727 = vsub.s32 0, %v2726
    %v2728 = vrot.slane %v168, %v2727
    %v2729 = vmul.f32 %v2709, %v2728
    %v2730 = vmul.f32 %v2710, %v2728
    %v2731 = vmul.f32 %v2711, %v2728
    %v2732 = vmul.f32 %v2712, %v2728
    %v2733 = vmul.f32 %v2713, %v2728
    %v2734 = vmul.f32 %v2714, %v2728
    %v2735 = vmul.f32 %v2715, %v2728
    %v2736 = vmul.f32 %v2716, %v2728
    %v2737 = vmul.f32 %v2717, %v2728
    %v2738 = vmul.f32 %v2718, %v2728
    %v2739 = vmul.f32 %v2719, %v2728
    %v2740 = vmul.f32 %v2720, %v2728
    %v2741 = vmul.f32 %v2721, %v2728
    %v2742 = vmul.f32 %v2722, %v2728
    %v2743 = vmul.f32 %v2723, %v2728
    %v2744 = vmul.f32 %v2724, %v2728
    %v2745 = vlaneseq
    %v2746 = vshrl.u32 %v2745, 7
    %v2747 = vsub.s32 1, %v2746
    %v2748 = vrot.slane %v168, %v2747
    %v2749 = vadd.f32 %v2729, %v2748
    %v2750 = vadd.f32 %v2730, %v2748
    %v2751 = vadd.f32 %v2731, %v2748
    %v2752 = vadd.f32 %v2732, %v2748
    %v2753 = vadd.f32 %v2733, %v2748
    %v2754 = vadd.f32 %v2734, %v2748
    %v2755 = vadd.f32 %v2735, %v2748
    %v2756 = vadd.f32 %v2736, %v2748
    %v2757 = vadd.f32 %v2737, %v2748
    %v2758 = vadd.f32 %v2738, %v2748
    %v2759 = vadd.f32 %v2739, %v2748
    %v2760 = vadd.f32 %v2740, %v2748
    %v2761 = vadd.f32 %v2741, %v2748
    %v2762 = vadd.f32 %v2742, %v2748
    %v2763 = vadd.f32 %v2743, %v2748
    %v2764 = vadd.f32 %v2744, %v2748
    %v2765 = vmax.f32 %v2749, 0.0
    %v2766 = vmax.f32 %v2750, 0.0
    %v2767 = vmax.f32 %v2751, 0.0
    %v2768 = vmax.f32 %v2752, 0.0
    %v2769 = vmax.f32 %v2753, 0.0
    %v2770 = vmax.f32 %v2754, 0.0
    %v2771 = vmax.f32 %v2755, 0.0
    %v2772 = vmax.f32 %v2756, 0.0
    %v2773 = vmax.f32 %v2757, 0.0
    %v2774 = vmax.f32 %v2758, 0.0
    %v2775 = vmax.f32 %v2759, 0.0
    %v2776 = vmax.f32 %v2760, 0.0
    %v2777 = vmax.f32 %v2761, 0.0
    %v2778 = vmax.f32 %v2762, 0.0
    %v2779 = vmax.f32 %v2763, 0.0
    %v2780 = vmax.f32 %v2764, 0.0
    %v2781 = vpack.c.bf16 %v2766, %v2765
    %v2782 = vpack.c.bf16 %v2768, %v2767
    %v2783 = vpack.c.bf16 %v2770, %v2769
    %v2784 = vpack.c.bf16 %v2772, %v2771
    %v2785 = vpack.c.bf16 %v2774, %v2773
    %v2786 = vpack.c.bf16 %v2776, %v2775
    %v2787 = vpack.c.bf16 %v2778, %v2777
    %v2788 = vpack.c.bf16 %v2780, %v2779
    %2789 = vmatprep.subr.bf16.mxu0 0
    %2790 = vmatpush1.bf16.msra.mxu0 %v2781
    %2791 = vmatprep.subr.bf16.mxu0 0
    %2792 = vmatpush1.bf16.msra.mxu0 %v2782
    %2793 = vmatprep.subr.bf16.mxu0 0
    %2794 = vmatpush1.bf16.msra.mxu0 %v2783
    %2795 = vmatprep.subr.bf16.mxu0 0
    %2796 = vmatpush1.bf16.msra.mxu0 %v2784
    %2797 = vmatprep.subr.bf16.mxu0 0
    %2798 = vmatpush1.bf16.msra.mxu0 %v2785
    %2799 = vmatprep.subr.bf16.mxu0 0
    %2800 = vmatpush1.bf16.msra.mxu0 %v2786
    %2801 = vmatprep.subr.bf16.mxu0 0
    %2802 = vmatpush1.bf16.msra.mxu0 %v2787
    %2803 = vmatprep.subr.bf16.mxu0 0
    %2804 = vmatpush1.bf16.msra.mxu0 %v2788
    %2805 = vmatprep.subr.bf16.mxu0 0
    %2806 = vmatpush1.bf16.msra.mxu0 0
    %2807 = vmatprep.subr.bf16.mxu0 0
    %2808 = vmatpush1.bf16.msra.mxu0 0
    %2809 = vmatprep.subr.bf16.mxu0 0
    %2810 = vmatpush1.bf16.msra.mxu0 0
    %2811 = vmatprep.subr.bf16.mxu0 0
    %2812 = vmatpush1.bf16.msra.mxu0 0
    %2813 = vmatprep.subr.bf16.mxu0 0
    %2814 = vmatpush1.bf16.msra.mxu0 0
    %2815 = vmatprep.subr.bf16.mxu0 0
    %2816 = vmatpush1.bf16.msra.mxu0 0
    %2817 = vmatprep.subr.bf16.mxu0 0
    %2818 = vmatpush1.bf16.msra.mxu0 0
    %2819 = vmatprep.subr.bf16.mxu0 0
    %2820 = vmatpush1.bf16.msra.mxu0 0
    %2821 = vmatprep.mubr.bf16.mxu0 0
    %2822 = vmatmul.mubr.bf16.gmra.mrb[0].mxu0 %v1078
    %v2823 = vpop.f32.mrb[0].mxu0
    %v2824 = vadd.f32 0.0, %v2823
    %v2825 = vpop.f32.mrb[0].mxu0
    %v2826 = vpop.f32.mrb[0].mxu0
    %v2827 = vpop.f32.mrb[0].mxu0
    %2828 = vdwg.mxu0
    %v2829 = vld [vmem:[#allocation11] sm:$0xff]
    %2831 = vset.pattern.permute.xlu0 0
    %2832 = vperm.xlu0 %2831, %v2829
    %v2833 = vpop.permute.xlu0 %2832
    %v2835 = vmul.f32 %v2824, %v2833
    %v2836 = vld [vmem:[#allocation16 + $0x80] sm:$0xf]
    %v2837 = vld [vmem:[#allocation16 + $0x84] sm:$0xf]
    %v2838 = vld [vmem:[#allocation16 + $0x88] sm:$0xf]
    %v2839 = vld [vmem:[#allocation16 + $0x8c] sm:$0xf]
    %v2840 = vld [vmem:[#allocation16 + $0x90] sm:$0xf]
    %v2841 = vld [vmem:[#allocation16 + $0x94] sm:$0xf]
    %v2842 = vld [vmem:[#allocation16 + $0x98] sm:$0xf]
    %v2843 = vld [vmem:[#allocation16 + $0x9c] sm:$0xf]
    %v2844 = vpack.c.bf16 %v2835, %v2835
    %v2845 = vlaneseq
    %v2846 = vshrl.u32 %v2845, 7
    %v2847 = vsub.s32 2, %v2846
    %v2848 = vrot.slane %v168, %v2847
    %v2853 = vunpack.c.l.b16 %v2836
    %v2854 = vunpack.c.l.b16 %v2837
    %v2855 = vunpack.c.l.b16 %v2838
    %v2856 = vunpack.c.l.b16 %v2839
    %v2857 = vpack.c.b16 %v2854, %v2853
    %v2858 = vpack.c.b16 %v2856, %v2855
    %v2862 = vsel %vm1453, %v2844, 0
    %2864 = vmatprep.subr.bf16.mxu0 0
    %2865 = vmatpush1.bf16.msra.mxu0 %v2857
    %2866 = vmatprep.subr.bf16.mxu0 0
    %2867 = vmatpush1.bf16.msra.mxu0 %v2858
    %2868 = vmatprep.subr.bf16.mxu0 0
    %2869 = vmatpush1.bf16.msra.mxu0 0
    %2870 = vmatprep.subr.bf16.mxu0 0
    %2871 = vmatpush1.bf16.msra.mxu0 0
    %2872 = vmatprep.subr.bf16.mxu0 0
    %2873 = vmatpush1.bf16.msra.mxu0 0
    %2874 = vmatprep.subr.bf16.mxu0 0
    %2875 = vmatpush1.bf16.msra.mxu0 0
    %2876 = vmatprep.subr.bf16.mxu0 0
    %2877 = vmatpush1.bf16.msra.mxu0 0
    %2878 = vmatprep.subr.bf16.mxu0 0
    %2879 = vmatpush1.bf16.msra.mxu0 0
    %2880 = vmatprep.subr.bf16.mxu0 0
    %2881 = vmatpush1.bf16.msra.mxu0 0
    %2882 = vmatprep.subr.bf16.mxu0 0
    %2883 = vmatpush1.bf16.msra.mxu0 0
    %2884 = vmatprep.subr.bf16.mxu0 0
    %2885 = vmatpush1.bf16.msra.mxu0 0
    %2886 = vmatprep.subr.bf16.mxu0 0
    %2887 = vmatpush1.bf16.msra.mxu0 0
    %2888 = vmatprep.subr.bf16.mxu0 0
    %2889 = vmatpush1.bf16.msra.mxu0 0
    %2890 = vmatprep.subr.bf16.mxu0 0
    %2891 = vmatpush1.bf16.msra.mxu0 0
    %2892 = vmatprep.subr.bf16.mxu0 0
    %2893 = vmatpush1.bf16.msra.mxu0 0
    %2894 = vmatprep.subr.bf16.mxu0 0
    %2895 = vmatpush1.bf16.msra.mxu0 0
    %2896 = vmatprep.mubr.bf16.mxu0 0
    %2897 = vmatmul.mubr.bf16.gmra.mrb[0].mxu0 %v2862
    %v2898 = vpop.f32.mrb[0].mxu0
    %v2899 = vadd.f32 %v2848, %v2898
    %v2900 = vpop.f32.mrb[0].mxu0
    %v2901 = vpop.f32.mrb[0].mxu0
    %v2902 = vpop.f32.mrb[0].mxu0
    %2903 = vdwg.mxu0
    %v2904 = vmax.f32 %v2899, 0.0
    %v2905 = vpack.c.bf16 %v2904, %v2904
    %v2906 = vlaneseq
    %v2907 = vshrl.u32 %v2906, 7
    %v2908 = vsub.s32 3, %v2907
    %v2909 = vrot.slane %v168, %v2908
    %v2914 = vunpack.c.l.b16 %v2840
    %v2915 = vunpack.c.l.b16 %v2841
    %v2916 = vunpack.c.l.b16 %v2842
    %v2917 = vunpack.c.l.b16 %v2843
    %v2918 = vpack.c.b16 %v2915, %v2914
    %v2919 = vpack.c.b16 %v2917, %v2916
    %v2923 = vsel %vm1453, %v2905, 0
    %2925 = vmatprep.subr.bf16.mxu0 0
    %2926 = vmatpush1.bf16.msra.mxu0 %v2918
    %2927 = vmatprep.subr.bf16.mxu0 0
    %2928 = vmatpush1.bf16.msra.mxu0 %v2919
    %2929 = vmatprep.subr.bf16.mxu0 0
    %2930 = vmatpush1.bf16.msra.mxu0 0
    %2931 = vmatprep.subr.bf16.mxu0 0
    %2932 = vmatpush1.bf16.msra.mxu0 0
    %2933 = vmatprep.subr.bf16.mxu0 0
    %2934 = vmatpush1.bf16.msra.mxu0 0
    %2935 = vmatprep.subr.bf16.mxu0 0
    %2936 = vmatpush1.bf16.msra.mxu0 0
    %2937 = vmatprep.subr.bf16.mxu0 0
    %2938 = vmatpush1.bf16.msra.mxu0 0
    %2939 = vmatprep.subr.bf16.mxu0 0
    %2940 = vmatpush1.bf16.msra.mxu0 0
    %2941 = vmatprep.subr.bf16.mxu0 0
    %2942 = vmatpush1.bf16.msra.mxu0 0
    %2943 = vmatprep.subr.bf16.mxu0 0
    %2944 = vmatpush1.bf16.msra.mxu0 0
    %2945 = vmatprep.subr.bf16.mxu0 0
    %2946 = vmatpush1.bf16.msra.mxu0 0
    %2947 = vmatprep.subr.bf16.mxu0 0
    %2948 = vmatpush1.bf16.msra.mxu0 0
    %2949 = vmatprep.subr.bf16.mxu0 0
    %2950 = vmatpush1.bf16.msra.mxu0 0
    %2951 = vmatprep.subr.bf16.mxu0 0
    %2952 = vmatpush1.bf16.msra.mxu0 0
    %2953 = vmatprep.subr.bf16.mxu0 0
    %2954 = vmatpush1.bf16.msra.mxu0 0
    %2955 = vmatprep.subr.bf16.mxu0 0
    %2956 = vmatpush1.bf16.msra.mxu0 0
    %2957 = vmatprep.mubr.bf16.mxu0 0
    %2958 = vmatmul.mubr.bf16.gmra.mrb[0].mxu0 %v2923
    %v2959 = vpop.f32.mrb[0].mxu0
    %v2960 = vadd.f32 %v2909, %v2959
    %v2961 = vpop.f32.mrb[0].mxu0
    %v2962 = vpop.f32.mrb[0].mxu0
    %v2963 = vpop.f32.mrb[0].mxu0
    %2964 = vdwg.mxu0
    %vm2965 = vcmask 15360
    %2966 = vst.msk [vmem:[#allocation19] sm:$0xff] %vm2965, %v2960
    // Predicated region
    $region82: #{mutag_forward.1} parent=1 // pred_check
      _
    $region83: #{mutag_forward.1} parent=1 // pred_check_branch
      %2968 = sbr.rel (0) target = $region85
    $region84: #{mutag_forward.1} parent=1 // pred_region
      %s2970 = ssub.s32 128, 128
      %2971 = vsyncadd [#allocation4], %s2970
      %s2973 = sshll.u32 [#allocation19], 4
      %s2974 = int_to_ptr.vmem [resolvable:$true] %s2973
      %2976 = dma.vmem_to_hbm [thread:$0]  %s2974, 128, %s10, [#allocation4]
    $region85: #{mutag_forward.1} parent=1 // pred_fallthru
      _
    // Predicated region
    $region86: #{mutag_forward.1} parent=1 // pred_check
      _
    $region87: #{mutag_forward.1} parent=1 // pred_check_branch
      %2978 = sbr.rel (0) target = $region89
    $region88: #{mutag_forward.1} parent=1 // pred_region
      %2979 = dma.done [#allocation4], 128
    $region89: #{mutag_forward.1} parent=1 // pred_fallthru
      _
    %2980 = vsyncpa [#allocation3], 1
    %2981 = vsyncpa [#allocation6], 1
    %2982 = vsyncpa [#allocation9], 1
    %2983 = vsyncpa [#allocation12], 1
    %2984 = vsyncpa [#allocation15], 1
    %2985 = vsyncpa [#allocation18], 1
    %2986 = vsyncpa [#allocation4], 1

</llo_original>
